<compile_context>
chip_gen: v7x
topology: tpu7x:2x2x1
jax: 0.10.0
libtpu: 0.0.40
codegen_flags: <defaults>
</compile_context>

<pallas_src>
import functools

import jax
import jax.numpy as jnp
from jax import lax
from jax.experimental import pallas as pl
from jax.experimental.pallas import tpu as pltpu


# ---------------- configuration (mirrors the PyTorch `args`) ----------------
class Args:
    SEASONALITY = 4
    INPUT_SIZE = 4          # window length fed to the DRNN
    OUTPUT_SIZE = 4
    STATE_H_SIZE = 32
    DILATIONS = ((1, 2), (2, 4))
    RNN_CELL_TYPE = "LSTM"


ARGS = Args()
_N_LSTM_LAYERS = sum(len(g) for g in ARGS.DILATIONS)
_MAX_RATE = max(r for g in ARGS.DILATIONS for r in g)
_OUT_PAD = 128   # lane-dense padded scoring-head width


# --------------------------------------------------------------------------------
# Fused Pallas kernel: ResidualDRNN (4 dilated LSTM layers) + residual add +
# nl_layer -> Tanh -> scoring head.
# Layout inside the kernel is flattened time-major: row index = t*B + b,
# features (H=32, 4H=128) on the lane axis.
# --------------------------------------------------------------------------------
def _make_series_kernel(T, B, H, dilations):
    n_lstm = sum(len(g) for g in dilations)

    def kernel(*refs):
        x_ref = refs[0]                                           # (N, IN)
        w_refs = refs[1:1 + 3 * n_lstm]                           # (wih_t, whh_t, bias) x layers
        nlw_ref, nlb_ref, scw_ref, scb_ref = refs[1 + 3 * n_lstm:5 + 3 * n_lstm]
        out_ref = refs[5 + 3 * n_lstm]                            # (N, 128) lane-dense
        bufs = list(refs[6 + 3 * n_lstm:9 + 3 * n_lstm])          # 3 x (N, H) ping-pong
        pregates = refs[9 + 3 * n_lstm]                           # (N, 4H)
        c_state = refs[10 + 3 * n_lstm]                           # (>=MAX_RATE*B, H)

        def run_lstm_layer(in_ref, out_buf, wih_ref, whh_ref, b_ref, rate):
            # Hoisted input projection: ONE (N, Din) @ (Din, 4H) matmul with the
            # combined bias (b_ih + b_hh) folded in -- removed from the serial chain.
            pregates[...] = (
                jnp.dot(in_ref[...], wih_ref[...], preferred_element_type=jnp.float32)
                + b_ref[...])
            whh = whh_ref[...]               # W_hh resident in vregs for the whole layer

            # Phase-batched, fully unrolled recurrence.  Super-step s covers the
            # `rate` (or fewer, on the tail) timesteps t0..t0+m-1, which are
            # mutually independent; their dilated predecessors h[t-rate] are the
            # previous super-step's rows of this layer's own output buffer.  This
            # is exactly the reference DRNN's pad->interleave->LSTM->de-interleave
            # (the end-padding is causal, so it never affects real steps).
            n_super = (T + rate - 1) // rate
            for s in range(n_super):
                t0 = s * rate
                m = min(rate, T - t0)        # valid phases in this super-step
                r0, r1 = t0 * B, (t0 + m) * B
                nrow = r1 - r0
                gates = pregates[r0:r1, :]
                if s > 0:
                    p0 = (s - 1) * rate * B
                    gates = gates + jnp.dot(out_buf[p0:p0 + nrow, :], whh,
                                            preferred_element_type=jnp.float32)
                # Full-width nonlinearities, then slice (PyTorch gate order i,f,g,o).
                sig = jax.nn.sigmoid(gates)
                th = jnp.tanh(gates)
                i_g = sig[:, 0 * H:1 * H]
                f_g = sig[:, 1 * H:2 * H]
                g_g = th[:, 2 * H:3 * H]
                o_g = sig[:, 3 * H:4 * H]
                if s == 0:
                    c_new = i_g * g_g                            # c0 == 0, skip f*c
                else:
                    c_new = f_g * c_state[0:nrow, :] + i_g * g_g
                c_state[0:nrow, :] = c_new
                out_buf[r0:r1, :] = o_g * jnp.tanh(c_new)

        cur_ref, cur_idx = x_ref, -1
        layer = 0
        for g, grp in enumerate(dilations):
            grp_in, grp_in_idx = cur_ref, cur_idx
            for rate in grp:
                out_idx = [i for i in range(3) if i not in (grp_in_idx, cur_idx)][0]
                run_lstm_layer(cur_ref, bufs[out_idx],
                               w_refs[3 * layer], w_refs[3 * layer + 1],
                               w_refs[3 * layer + 2], rate)
                cur_ref, cur_idx = bufs[out_idx], out_idx
                layer += 1
            if g > 0:                        # ResidualDRNN: out += residual (group input)
                cur_ref[...] = cur_ref[...] + grp_in[...]

        # nl_layer -> Tanh -> scoring head on the whole (N, H) slab at once.
        # Scoring weights/bias are zero-padded to 128 lanes -> unmasked store.
        hmid = jnp.tanh(
            jnp.dot(cur_ref[...], nlw_ref[...], preferred_element_type=jnp.float32)
            + nlb_ref[...])
        out_ref[...] = (
            jnp.dot(hmid, scw_ref[...], preferred_element_type=jnp.float32)
            + scb_ref[...]).astype(out_ref.dtype)

    return kernel


def series_forward(window_input, prep):
    """window_input: (T, B, INPUT_SIZE) -> (T, B, OUTPUT_SIZE) via one pallas_call."""
    T, B, in_dim = window_input.shape
    H = ARGS.STATE_H_SIZE
    out_dim = ARGS.OUTPUT_SIZE
    N = T * B
    vmem = pl.BlockSpec(memory_space=pltpu.MemorySpace.VMEM)
    n_inputs = 1 + 3 * _N_LSTM_LAYERS + 4
    out2d = pl.pallas_call(
        _make_series_kernel(T, B, H, ARGS.DILATIONS),
        out_shape=jax.ShapeDtypeStruct((N, _OUT_PAD), jnp.float32),
        in_specs=[vmem] * n_inputs,
        out_specs=vmem,
        scratch_shapes=[
            pltpu.VMEM((N, H), jnp.float32),                      # activation buffer A
            pltpu.VMEM((N, H), jnp.float32),                      # activation buffer B
            pltpu.VMEM((N, H), jnp.float32),                      # activation buffer C
            pltpu.VMEM((N, 4 * H), jnp.float32),                  # hoisted pregates
            pltpu.VMEM((max(8, _MAX_RATE * B), H), jnp.float32),  # per-phase c state
        ],
    )(window_input.reshape(N, in_dim).astype(jnp.float32),
      *prep["lstm_flat"],
      prep["nl_w_t"], prep["nl_b2"], prep["score_w_pad"], prep["score_b_pad"])
    return out2d[:, :out_dim].reshape(T, B, out_dim)


# --------------------------------------------------------------------------------
# ESRNN forward: exponential smoothing (rolling ring-buffer scan) + vectorized
# windowing + ONE fused network evaluation.
# TODO(synk): the smoothing scan + window gather could also be folded into the
# Pallas kernel (scalars in SMEM); kept in jitted XLA here for clarity.
# --------------------------------------------------------------------------------
@functools.partial(jax.jit, static_argnames=("testing",))
def esrnn_forward(prep, train, val, test, testing=False):
    lev_sms = jax.nn.sigmoid(jnp.squeeze(prep["init_lev_sm"]))
    seas_sms = jax.nn.sigmoid(jnp.squeeze(prep["init_seas_sm"]))
    init_seas = prep["init_seasonalities"].reshape(1, -1)

    if testing:
        train = jnp.concatenate([train, val], axis=1)
    train = train.astype(jnp.float32)
    B, T = train.shape
    S = ARGS.SEASONALITY

    # Initial seasonalities: exp(init[0..S-1]) plus the wrap-around exp(init[0]).
    init_seas_used = [jnp.broadcast_to(jnp.exp(init_seas[:, i]), (B,)) for i in range(S)]
    init_seas_used.append(jnp.broadcast_to(jnp.exp(init_seas[:, 0]), (B,)))

    lev0 = train[:, 0] / init_seas_used[0]
    # Ring buffer of the S seasonalities consumed at steps 1..S (rolling write).
    seas_buf0 = jnp.stack(init_seas_used[1:S + 1], axis=0)            # (S, B)

    def smooth_step(carry, x_t):
        lev_prev, seas_buf, pos = carry
        s_t = lax.dynamic_index_in_dim(seas_buf, pos, axis=0, keepdims=False)
        new_lev = lev_sms * (x_t / s_t) + (1.0 - lev_sms) * lev_prev
        s_new = seas_sms * (x_t / new_lev) + (1.0 - seas_sms) * s_t
        seas_buf = lax.dynamic_update_index_in_dim(seas_buf, s_new, pos, axis=0)
        pos = (pos + 1) % S
        return (new_lev, seas_buf, pos), (new_lev, s_new)

    (_, _, _), (levs_rest, seas_rest) = lax.scan(
        smooth_step, (lev0, seas_buf0, jnp.int32(0)), jnp.transpose(train[:, 1:]))

    levs_stacked = jnp.transpose(jnp.concatenate([lev0[None, :], levs_rest], axis=0))
    seasonalities_stacked = jnp.transpose(
        jnp.concatenate([jnp.stack(init_seas_used, axis=0), seas_rest], axis=0))

    # Reference hard-codes this loss term to 0 (log-diffs of levels are never used).
    loss_mean_sq_log_diff_level = 0

    if ARGS.OUTPUT_SIZE > S:
        start = seasonalities_stacked.shape[1] - S
        end = start + ARGS.OUTPUT_SIZE - S
        seasonalities_stacked = jnp.concatenate(
            [seasonalities_stacked, seasonalities_stacked[:, start:end]], axis=1)

    # ---- vectorized de-seasonalized / level-normalized windows ----
    num_win = T - ARGS.INPUT_SIZE + 1
    num_out_win = T - ARGS.OUTPUT_SIZE - (ARGS.INPUT_SIZE - 1)
    lev_anchor = levs_stacked[:, ARGS.INPUT_SIZE - 1:]                     # (B, num_win)

    in_idx = jnp.arange(num_win)[:, None] + jnp.arange(ARGS.INPUT_SIZE)[None, :]
    window_input = jnp.transpose(
        (train[:, in_idx] / seasonalities_stacked[:, in_idx]) / lev_anchor[:, :, None],
        (1, 0, 2))                                                         # (num_win, B, IN)

    out_idx = (jnp.arange(num_out_win)[:, None] + ARGS.INPUT_SIZE
               + jnp.arange(ARGS.OUTPUT_SIZE)[None, :])
    window_output = jnp.transpose(
        (train[:, out_idx] / seasonalities_stacked[:, out_idx])
        / lev_anchor[:, :num_out_win, None], (1, 0, 2))                    # (num_out_win, B, OUT)

    # Single network evaluation; the dilated-LSTM stack is causal (padding only at
    # the tail of each phase), so the training prediction equals the prefix slice.
    network_output_non_train = series_forward(window_input, prep)
    network_pred = network_output_non_train[:num_win - ARGS.OUTPUT_SIZE]
    network_act = window_output

    hold_out_output_reseas = (network_output_non_train[-1]
                              * seasonalities_stacked[:, -ARGS.OUTPUT_SIZE:])
    hold_out_output_renorm = hold_out_output_reseas * levs_stacked[:, -1][:, None]
    hold_out_pred = hold_out_output_renorm * (hold_out_output_renorm > 0).astype(jnp.float32)
    hold_out_act = test if testing else val
    hold_out_act_deseas = (hold_out_act.astype(jnp.float32)
                           / seasonalities_stacked[:, -ARGS.OUTPUT_SIZE:])
    hold_out_act_deases_norm = hold_out_act_deseas / levs_stacked[:, -1][:, None]

    return (network_pred, network_act,
            (hold_out_pred, network_output_non_train),
            (hold_out_act, hold_out_act_deases_norm),
            loss_mean_sq_log_diff_level)


# ---------------- parameter initialization + one-time kernel prep ----------------
def _init_linear(key, out_f, in_f):
    k = 1.0 / (in_f ** 0.5)
    kw, kb = jax.random.split(key)
    w = jax.random.uniform(kw, (out_f, in_f), jnp.float32, -k, k)
    b = jax.random.uniform(kb, (out_f,), jnp.float32, -k, k)
    return w, b


def _init_lstm(key, in_f, hidden):
    k = 1.0 / (hidden ** 0.5)
    k1, k2, k3, k4 = jax.random.split(key, 4)
    w_ih = jax.random.uniform(k1, (4 * hidden, in_f), jnp.float32, -k, k)
    w_hh = jax.random.uniform(k2, (4 * hidden, hidden), jnp.float32, -k, k)
    b_ih = jax.random.uniform(k3, (4 * hidden,), jnp.float32, -k, k)
    b_hh = jax.random.uniform(k4, (4 * hidden,), jnp.float32, -k, k)
    return (w_ih, w_hh, b_ih, b_hh)


def init_params(key):
    H = ARGS.STATE_H_SIZE
    n_cells = sum(len(g) for g in ARGS.DILATIONS)
    keys = iter(jax.random.split(key, n_cells + 2))
    drnn = []
    for g, dils in enumerate(ARGS.DILATIONS):
        cells = []
        for l in range(len(dils)):
            in_f = ARGS.INPUT_SIZE if (g == 0 and l == 0) else H
            cells.append(_init_lstm(next(keys), in_f, H))
        drnn.append(cells)
    nl_w, nl_b = _init_linear(next(keys), H, H)
    score_w, score_b = _init_linear(next(keys), ARGS.OUTPUT_SIZE, H)
    return {
        "init_lev_sm": jnp.array([0.5], jnp.float32),
        "init_seas_sm": jnp.array([0.5], jnp.float32),
        "init_seasonalities": jnp.ones((ARGS.SEASONALITY,), jnp.float32) * 0.5,
        "drnn": drnn,
        "nl_w": nl_w, "nl_b": nl_b,
        "score_w": score_w, "score_b": score_b,
    }


def prepare_params(params):
    """One-time weight prep: pre-transposed, combined-bias, lane-padded copies."""
    lstm_flat = []
    for cells in params["drnn"]:
        for (w_ih, w_hh, b_ih, b_hh) in cells:
            lstm_flat.append(jnp.transpose(w_ih).astype(jnp.float32))       # (Din, 4H)
            lstm_flat.append(jnp.transpose(w_hh).astype(jnp.float32))       # (H, 4H)
            lstm_flat.append((b_ih + b_hh).reshape(1, -1).astype(jnp.float32))
    prep = dict(params)
    prep["lstm_flat"] = tuple(lstm_flat)
    prep["nl_w_t"] = jnp.transpose(params["nl_w"]).astype(jnp.float32)
    prep["nl_b2"] = params["nl_b"].reshape(1, -1).astype(jnp.float32)
    # Lane-dense scoring head: zero-pad to 128 output lanes (sliced back in JAX).
    pad = _OUT_PAD - ARGS.OUTPUT_SIZE
    prep["score_w_pad"] = jnp.pad(
        jnp.transpose(params["score_w"]).astype(jnp.float32), ((0, 0), (0, pad)))
    prep["score_b_pad"] = jnp.pad(
        params["score_b"].astype(jnp.float32), (0, pad)).reshape(1, -1)
    return prep


if __name__ == "__main__":
    key = jax.random.PRNGKey(0)
    kp, k1, k2, k3 = jax.random.split(key, 4)
    params = init_params(kp)
    prep = prepare_params(params)   # hoisted one-time weight transposes / padding

    # Batch must be 1: the PyTorch module's torch.stack over per-step seasonalities
    # only type-checks for a single series (init seasonalities have shape (1,)).
    B, T = 1, 16
    train = jax.random.uniform(k1, (B, T), jnp.float32, 0.5, 1.5)
    val = jax.random.uniform(k2, (B, ARGS.OUTPUT_SIZE), jnp.float32, 0.5, 1.5)
    test = jax.random.uniform(k3, (B, ARGS.OUTPUT_SIZE), jnp.float32, 0.5, 1.5)

    outputs = esrnn_forward(prep, train, val, test, testing=False)
    jax.block_until_ready(outputs)
    print("KERNEL_OK")
</pallas_src>

<mosaic_0001>
module attributes {stable_mosaic.version = 11 : i64} {
  func.func @kernel(%arg0: memref<13x4xf32, #tpu.memory_space<vmem>>, %arg1: memref<4x128xf32, #tpu.memory_space<vmem>>, %arg2: memref<32x128xf32, #tpu.memory_space<vmem>>, %arg3: memref<1x128xf32, #tpu.memory_space<vmem>>, %arg4: memref<32x128xf32, #tpu.memory_space<vmem>>, %arg5: memref<32x128xf32, #tpu.memory_space<vmem>>, %arg6: memref<1x128xf32, #tpu.memory_space<vmem>>, %arg7: memref<32x128xf32, #tpu.memory_space<vmem>>, %arg8: memref<32x128xf32, #tpu.memory_space<vmem>>, %arg9: memref<1x128xf32, #tpu.memory_space<vmem>>, %arg10: memref<32x128xf32, #tpu.memory_space<vmem>>, %arg11: memref<32x128xf32, #tpu.memory_space<vmem>>, %arg12: memref<1x128xf32, #tpu.memory_space<vmem>>, %arg13: memref<32x32xf32, #tpu.memory_space<vmem>>, %arg14: memref<1x32xf32, #tpu.memory_space<vmem>>, %arg15: memref<32x128xf32, #tpu.memory_space<vmem>>, %arg16: memref<1x128xf32, #tpu.memory_space<vmem>>, %arg17: memref<13x128xf32, #tpu.memory_space<vmem>>, %arg18: memref<13x32xf32, #tpu.memory_space<vmem>>, %arg19: memref<13x32xf32, #tpu.memory_space<vmem>>, %arg20: memref<13x32xf32, #tpu.memory_space<vmem>>, %arg21: memref<13x128xf32, #tpu.memory_space<vmem>>, %arg22: memref<8x32xf32, #tpu.memory_space<vmem>>) attributes {dimension_semantics = [], scalar_prefetch = 0 : i64, scratch_operands = 5 : i64, tpu.core_type = #tpu.core_type<tc>} {
    %c0 = arith.constant 0 : index
    %c0_0 = arith.constant 0 : index
    %0 = vector.load %arg0[%c0, %c0_0] : memref<13x4xf32, #tpu.memory_space<vmem>>, vector<13x4xf32>
    %c0_1 = arith.constant 0 : index
    %c0_2 = arith.constant 0 : index
    %1 = vector.load %arg1[%c0_1, %c0_2] : memref<4x128xf32, #tpu.memory_space<vmem>>, vector<4x128xf32>
    %cst = arith.constant dense<0.000000e+00> : vector<13x128xf32>
    %2 = tpu.matmul %0, %1, %cst {dimension_numbers = #tpu.dot_dimension_numbers<[1], [0], [0], [1], [0, 0, 1, 1], [], []>} : vector<13x4xf32>, vector<4x128xf32>, vector<13x128xf32> -> vector<13x128xf32>
    %c0_3 = arith.constant 0 : index
    %c0_4 = arith.constant 0 : index
    %3 = vector.load %arg3[%c0_3, %c0_4] : memref<1x128xf32, #tpu.memory_space<vmem>>, vector<1x128xf32>
    %4 = vector.broadcast %3 : vector<1x128xf32> to vector<13x128xf32>
    %5 = arith.addf %2, %4 : vector<13x128xf32>
    %c0_5 = arith.constant 0 : index
    %c0_6 = arith.constant 0 : index
    %6 = vector.load %arg21[%c0_5, %c0_6] : memref<13x128xf32, #tpu.memory_space<vmem>>, vector<13x128xf32>
    tpu.vector_store %arg21[%c0_5, %c0_6], %5 {strides = array<i32>} : memref<13x128xf32, #tpu.memory_space<vmem>>, vector<13x128xf32>,
    %c0_7 = arith.constant 0 : index
    %c0_8 = arith.constant 0 : index
    %7 = vector.load %arg2[%c0_7, %c0_8] : memref<32x128xf32, #tpu.memory_space<vmem>>, vector<32x128xf32>
    %c0_9 = arith.constant 0 : index
    %c0_10 = arith.constant 0 : index
    %8 = vector.load %arg21[%c0_9, %c0_10] : memref<13x128xf32, #tpu.memory_space<vmem>>, vector<1x128xf32>
    %9 = arith.negf %8 : vector<1x128xf32>
    %10 = math.exp %9 : vector<1x128xf32>
    %cst_11 = arith.constant 1.000000e+00 : f32
    %11 = vector.broadcast %cst_11 : f32 to vector<1x128xf32>
    %12 = arith.addf %11, %10 : vector<1x128xf32>
    %13 = arith.divf %11, %12 : vector<1x128xf32>
    %14 = math.tanh %8 : vector<1x128xf32>
    %15 = vector.extract_strided_slice %13 {offsets = [0, 0], sizes = [1, 32], strides = [1, 1]} : vector<1x128xf32> to vector<1x32xf32>
    %16 = vector.extract_strided_slice %14 {offsets = [0, 64], sizes = [1, 32], strides = [1, 1]} : vector<1x128xf32> to vector<1x32xf32>
    %17 = vector.extract_strided_slice %13 {offsets = [0, 96], sizes = [1, 32], strides = [1, 1]} : vector<1x128xf32> to vector<1x32xf32>
    %18 = arith.mulf %15, %16 : vector<1x32xf32>
    %c0_12 = arith.constant 0 : index
    %c0_13 = arith.constant 0 : index
    %19 = vector.load %arg22[%c0_12, %c0_13] : memref<8x32xf32, #tpu.memory_space<vmem>>, vector<1x32xf32>
    tpu.vector_store %arg22[%c0_12, %c0_13], %18 {strides = array<i32>} : memref<8x32xf32, #tpu.memory_space<vmem>>, vector<1x32xf32>,
    %20 = math.tanh %18 : vector<1x32xf32>
    %21 = arith.mulf %17, %20 : vector<1x32xf32>
    %c0_14 = arith.constant 0 : index
    %c0_15 = arith.constant 0 : index
    %22 = vector.load %arg18[%c0_14, %c0_15] : memref<13x32xf32, #tpu.memory_space<vmem>>, vector<1x32xf32>
    tpu.vector_store %arg18[%c0_14, %c0_15], %21 {strides = array<i32>} : memref<13x32xf32, #tpu.memory_space<vmem>>, vector<1x32xf32>,
    %c1 = arith.constant 1 : index
    %c0_16 = arith.constant 0 : index
    %23 = vector.load %arg21[%c1, %c0_16] : memref<13x128xf32, #tpu.memory_space<vmem>>, vector<1x128xf32>
    %c0_17 = arith.constant 0 : index
    %c0_18 = arith.constant 0 : index
    %24 = vector.load %arg18[%c0_17, %c0_18] : memref<13x32xf32, #tpu.memory_space<vmem>>, vector<1x32xf32>
    %cst_19 = arith.constant dense<0.000000e+00> : vector<1x128xf32>
    %25 = tpu.matmul %24, %7, %cst_19 {dimension_numbers = #tpu.dot_dimension_numbers<[1], [0], [0], [1], [0, 0, 1, 1], [], []>} : vector<1x32xf32>, vector<32x128xf32>, vector<1x128xf32> -> vector<1x128xf32>
    %26 = arith.addf %23, %25 : vector<1x128xf32>
    %27 = arith.negf %26 : vector<1x128xf32>
    %28 = math.exp %27 : vector<1x128xf32>
    %cst_20 = arith.constant 1.000000e+00 : f32
    %29 = vector.broadcast %cst_20 : f32 to vector<1x128xf32>
    %30 = arith.addf %29, %28 : vector<1x128xf32>
    %31 = arith.divf %29, %30 : vector<1x128xf32>
    %32 = math.tanh %26 : vector<1x128xf32>
    %33 = vector.extract_strided_slice %31 {offsets = [0, 0], sizes = [1, 32], strides = [1, 1]} : vector<1x128xf32> to vector<1x32xf32>
    %34 = vector.extract_strided_slice %31 {offsets = [0, 32], sizes = [1, 32], strides = [1, 1]} : vector<1x128xf32> to vector<1x32xf32>
    %35 = vector.extract_strided_slice %32 {offsets = [0, 64], sizes = [1, 32], strides = [1, 1]} : vector<1x128xf32> to vector<1x32xf32>
    %36 = vector.extract_strided_slice %31 {offsets = [0, 96], sizes = [1, 32], strides = [1, 1]} : vector<1x128xf32> to vector<1x32xf32>
    %c0_21 = arith.constant 0 : index
    %c0_22 = arith.constant 0 : index
    %37 = vector.load %arg22[%c0_21, %c0_22] : memref<8x32xf32, #tpu.memory_space<vmem>>, vector<1x32xf32>
    %38 = arith.mulf %34, %37 : vector<1x32xf32>
    %39 = arith.mulf %33, %35 : vector<1x32xf32>
    %40 = arith.addf %38, %39 : vector<1x32xf32>
    %c0_23 = arith.constant 0 : index
    %c0_24 = arith.constant 0 : index
    %41 = vector.load %arg22[%c0_23, %c0_24] : memref<8x32xf32, #tpu.memory_space<vmem>>, vector<1x32xf32>
    tpu.vector_store %arg22[%c0_23, %c0_24], %40 {strides = array<i32>} : memref<8x32xf32, #tpu.memory_space<vmem>>, vector<1x32xf32>,
    %42 = math.tanh %40 : vector<1x32xf32>
    %43 = arith.mulf %36, %42 : vector<1x32xf32>
    %c1_25 = arith.constant 1 : index
    %c0_26 = arith.constant 0 : index
    %44 = vector.load %arg18[%c1_25, %c0_26] : memref<13x32xf32, #tpu.memory_space<vmem>>, vector<1x32xf32>
    tpu.vector_store %arg18[%c1_25, %c0_26], %43 {strides = array<i32>} : memref<13x32xf32, #tpu.memory_space<vmem>>, vector<1x32xf32>,
    %c2 = arith.constant 2 : index
    %c0_27 = arith.constant 0 : index
    %45 = vector.load %arg21[%c2, %c0_27] : memref<13x128xf32, #tpu.memory_space<vmem>>, vector<1x128xf32>
    %c1_28 = arith.constant 1 : index
    %c0_29 = arith.constant 0 : index
    %46 = vector.load %arg18[%c1_28, %c0_29] : memref<13x32xf32, #tpu.memory_space<vmem>>, vector<1x32xf32>
    %cst_30 = arith.constant dense<0.000000e+00> : vector<1x128xf32>
    %47 = tpu.matmul %46, %7, %cst_30 {dimension_numbers = #tpu.dot_dimension_numbers<[1], [0], [0], [1], [0, 0, 1, 1], [], []>} : vector<1x32xf32>, vector<32x128xf32>, vector<1x128xf32> -> vector<1x128xf32>
    %48 = arith.addf %45, %47 : vector<1x128xf32>
    %49 = arith.negf %48 : vector<1x128xf32>
    %50 = math.exp %49 : vector<1x128xf32>
    %cst_31 = arith.constant 1.000000e+00 : f32
    %51 = vector.broadcast %cst_31 : f32 to vector<1x128xf32>
    %52 = arith.addf %51, %50 : vector<1x128xf32>
    %53 = arith.divf %51, %52 : vector<1x128xf32>
    %54 = math.tanh %48 : vector<1x128xf32>
    %55 = vector.extract_strided_slice %53 {offsets = [0, 0], sizes = [1, 32], strides = [1, 1]} : vector<1x128xf32> to vector<1x32xf32>
    %56 = vector.extract_strided_slice %53 {offsets = [0, 32], sizes = [1, 32], strides = [1, 1]} : vector<1x128xf32> to vector<1x32xf32>
    %57 = vector.extract_strided_slice %54 {offsets = [0, 64], sizes = [1, 32], strides = [1, 1]} : vector<1x128xf32> to vector<1x32xf32>
    %58 = vector.extract_strided_slice %53 {offsets = [0, 96], sizes = [1, 32], strides = [1, 1]} : vector<1x128xf32> to vector<1x32xf32>
    %c0_32 = arith.constant 0 : index
    %c0_33 = arith.constant 0 : index
    %59 = vector.load %arg22[%c0_32, %c0_33] : memref<8x32xf32, #tpu.memory_space<vmem>>, vector<1x32xf32>
    %60 = arith.mulf %56, %59 : vector<1x32xf32>
    %61 = arith.mulf %55, %57 : vector<1x32xf32>
    %62 = arith.addf %60, %61 : vector<1x32xf32>
    %c0_34 = arith.constant 0 : index
    %c0_35 = arith.constant 0 : index
    %63 = vector.load %arg22[%c0_34, %c0_35] : memref<8x32xf32, #tpu.memory_space<vmem>>, vector<1x32xf32>
    tpu.vector_store %arg22[%c0_34, %c0_35], %62 {strides = array<i32>} : memref<8x32xf32, #tpu.memory_space<vmem>>, vector<1x32xf32>,
    %64 = math.tanh %62 : vector<1x32xf32>
    %65 = arith.mulf %58, %64 : vector<1x32xf32>
    %c2_36 = arith.constant 2 : index
    %c0_37 = arith.constant 0 : index
    %66 = vector.load %arg18[%c2_36, %c0_37] : memref<13x32xf32, #tpu.memory_space<vmem>>, vector<1x32xf32>
    tpu.vector_store %arg18[%c2_36, %c0_37], %65 {strides = array<i32>} : memref<13x32xf32, #tpu.memory_space<vmem>>, vector<1x32xf32>,
    %c3 = arith.constant 3 : index
    %c0_38 = arith.constant 0 : index
    %67 = vector.load %arg21[%c3, %c0_38] : memref<13x128xf32, #tpu.memory_space<vmem>>, vector<1x128xf32>
    %c2_39 = arith.constant 2 : index
    %c0_40 = arith.constant 0 : index
    %68 = vector.load %arg18[%c2_39, %c0_40] : memref<13x32xf32, #tpu.memory_space<vmem>>, vector<1x32xf32>
    %cst_41 = arith.constant dense<0.000000e+00> : vector<1x128xf32>
    %69 = tpu.matmul %68, %7, %cst_41 {dimension_numbers = #tpu.dot_dimension_numbers<[1], [0], [0], [1], [0, 0, 1, 1], [], []>} : vector<1x32xf32>, vector<32x128xf32>, vector<1x128xf32> -> vector<1x128xf32>
    %70 = arith.addf %67, %69 : vector<1x128xf32>
    %71 = arith.negf %70 : vector<1x128xf32>
    %72 = math.exp %71 : vector<1x128xf32>
    %cst_42 = arith.constant 1.000000e+00 : f32
    %73 = vector.broadcast %cst_42 : f32 to vector<1x128xf32>
    %74 = arith.addf %73, %72 : vector<1x128xf32>
    %75 = arith.divf %73, %74 : vector<1x128xf32>
    %76 = math.tanh %70 : vector<1x128xf32>
    %77 = vector.extract_strided_slice %75 {offsets = [0, 0], sizes = [1, 32], strides = [1, 1]} : vector<1x128xf32> to vector<1x32xf32>
    %78 = vector.extract_strided_slice %75 {offsets = [0, 32], sizes = [1, 32], strides = [1, 1]} : vector<1x128xf32> to vector<1x32xf32>
    %79 = vector.extract_strided_slice %76 {offsets = [0, 64], sizes = [1, 32], strides = [1, 1]} : vector<1x128xf32> to vector<1x32xf32>
    %80 = vector.extract_strided_slice %75 {offsets = [0, 96], sizes = [1, 32], strides = [1, 1]} : vector<1x128xf32> to vector<1x32xf32>
    %c0_43 = arith.constant 0 : index
    %c0_44 = arith.constant 0 : index
    %81 = vector.load %arg22[%c0_43, %c0_44] : memref<8x32xf32, #tpu.memory_space<vmem>>, vector<1x32xf32>
    %82 = arith.mulf %78, %81 : vector<1x32xf32>
    %83 = arith.mulf %77, %79 : vector<1x32xf32>
    %84 = arith.addf %82, %83 : vector<1x32xf32>
    %c0_45 = arith.constant 0 : index
    %c0_46 = arith.constant 0 : index
    %85 = vector.load %arg22[%c0_45, %c0_46] : memref<8x32xf32, #tpu.memory_space<vmem>>, vector<1x32xf32>
    tpu.vector_store %arg22[%c0_45, %c0_46], %84 {strides = array<i32>} : memref<8x32xf32, #tpu.memory_space<vmem>>, vector<1x32xf32>,
    %86 = math.tanh %84 : vector<1x32xf32>
    %87 = arith.mulf %80, %86 : vector<1x32xf32>
    %c3_47 = arith.constant 3 : index
    %c0_48 = arith.constant 0 : index
    %88 = vector.load %arg18[%c3_47, %c0_48] : memref<13x32xf32, #tpu.memory_space<vmem>>, vector<1x32xf32>
    tpu.vector_store %arg18[%c3_47, %c0_48], %87 {strides = array<i32>} : memref<13x32xf32, #tpu.memory_space<vmem>>, vector<1x32xf32>,
    %c4 = arith.constant 4 : index
    %c0_49 = arith.constant 0 : index
    %89 = vector.load %arg21[%c4, %c0_49] : memref<13x128xf32, #tpu.memory_space<vmem>>, vector<1x128xf32>
    %c3_50 = arith.constant 3 : index
    %c0_51 = arith.constant 0 : index
    %90 = vector.load %arg18[%c3_50, %c0_51] : memref<13x32xf32, #tpu.memory_space<vmem>>, vector<1x32xf32>
    %cst_52 = arith.constant dense<0.000000e+00> : vector<1x128xf32>
    %91 = tpu.matmul %90, %7, %cst_52 {dimension_numbers = #tpu.dot_dimension_numbers<[1], [0], [0], [1], [0, 0, 1, 1], [], []>} : vector<1x32xf32>, vector<32x128xf32>, vector<1x128xf32> -> vector<1x128xf32>
    %92 = arith.addf %89, %91 : vector<1x128xf32>
    %93 = arith.negf %92 : vector<1x128xf32>
    %94 = math.exp %93 : vector<1x128xf32>
    %cst_53 = arith.constant 1.000000e+00 : f32
    %95 = vector.broadcast %cst_53 : f32 to vector<1x128xf32>
    %96 = arith.addf %95, %94 : vector<1x128xf32>
    %97 = arith.divf %95, %96 : vector<1x128xf32>
    %98 = math.tanh %92 : vector<1x128xf32>
    %99 = vector.extract_strided_slice %97 {offsets = [0, 0], sizes = [1, 32], strides = [1, 1]} : vector<1x128xf32> to vector<1x32xf32>
    %100 = vector.extract_strided_slice %97 {offsets = [0, 32], sizes = [1, 32], strides = [1, 1]} : vector<1x128xf32> to vector<1x32xf32>
    %101 = vector.extract_strided_slice %98 {offsets = [0, 64], sizes = [1, 32], strides = [1, 1]} : vector<1x128xf32> to vector<1x32xf32>
    %102 = vector.extract_strided_slice %97 {offsets = [0, 96], sizes = [1, 32], strides = [1, 1]} : vector<1x128xf32> to vector<1x32xf32>
    %c0_54 = arith.constant 0 : index
    %c0_55 = arith.constant 0 : index
    %103 = vector.load %arg22[%c0_54, %c0_55] : memref<8x32xf32, #tpu.memory_space<vmem>>, vector<1x32xf32>
    %104 = arith.mulf %100, %103 : vector<1x32xf32>
    %105 = arith.mulf %99, %101 : vector<1x32xf32>
    %106 = arith.addf %104, %105 : vector<1x32xf32>
    %c0_56 = arith.constant 0 : index
    %c0_57 = arith.constant 0 : index
    %107 = vector.load %arg22[%c0_56, %c0_57] : memref<8x32xf32, #tpu.memory_space<vmem>>, vector<1x32xf32>
    tpu.vector_store %arg22[%c0_56, %c0_57], %106 {strides = array<i32>} : memref<8x32xf32, #tpu.memory_space<vmem>>, vector<1x32xf32>,
    %108 = math.tanh %106 : vector<1x32xf32>
    %109 = arith.mulf %102, %108 : vector<1x32xf32>
    %c4_58 = arith.constant 4 : index
    %c0_59 = arith.constant 0 : index
    %110 = vector.load %arg18[%c4_58, %c0_59] : memref<13x32xf32, #tpu.memory_space<vmem>>, vector<1x32xf32>
    tpu.vector_store %arg18[%c4_58, %c0_59], %109 {strides = array<i32>} : memref<13x32xf32, #tpu.memory_space<vmem>>, vector<1x32xf32>,
    %c5 = arith.constant 5 : index
    %c0_60 = arith.constant 0 : index
    %111 = vector.load %arg21[%c5, %c0_60] : memref<13x128xf32, #tpu.memory_space<vmem>>, vector<1x128xf32>
    %c4_61 = arith.constant 4 : index
    %c0_62 = arith.constant 0 : index
    %112 = vector.load %arg18[%c4_61, %c0_62] : memref<13x32xf32, #tpu.memory_space<vmem>>, vector<1x32xf32>
    %cst_63 = arith.constant dense<0.000000e+00> : vector<1x128xf32>
    %113 = tpu.matmul %112, %7, %cst_63 {dimension_numbers = #tpu.dot_dimension_numbers<[1], [0], [0], [1], [0, 0, 1, 1], [], []>} : vector<1x32xf32>, vector<32x128xf32>, vector<1x128xf32> -> vector<1x128xf32>
    %114 = arith.addf %111, %113 : vector<1x128xf32>
    %115 = arith.negf %114 : vector<1x128xf32>
    %116 = math.exp %115 : vector<1x128xf32>
    %cst_64 = arith.constant 1.000000e+00 : f32
    %117 = vector.broadcast %cst_64 : f32 to vector<1x128xf32>
    %118 = arith.addf %117, %116 : vector<1x128xf32>
    %119 = arith.divf %117, %118 : vector<1x128xf32>
    %120 = math.tanh %114 : vector<1x128xf32>
    %121 = vector.extract_strided_slice %119 {offsets = [0, 0], sizes = [1, 32], strides = [1, 1]} : vector<1x128xf32> to vector<1x32xf32>
    %122 = vector.extract_strided_slice %119 {offsets = [0, 32], sizes = [1, 32], strides = [1, 1]} : vector<1x128xf32> to vector<1x32xf32>
    %123 = vector.extract_strided_slice %120 {offsets = [0, 64], sizes = [1, 32], strides = [1, 1]} : vector<1x128xf32> to vector<1x32xf32>
    %124 = vector.extract_strided_slice %119 {offsets = [0, 96], sizes = [1, 32], strides = [1, 1]} : vector<1x128xf32> to vector<1x32xf32>
    %c0_65 = arith.constant 0 : index
    %c0_66 = arith.constant 0 : index
    %125 = vector.load %arg22[%c0_65, %c0_66] : memref<8x32xf32, #tpu.memory_space<vmem>>, vector<1x32xf32>
    %126 = arith.mulf %122, %125 : vector<1x32xf32>
    %127 = arith.mulf %121, %123 : vector<1x32xf32>
    %128 = arith.addf %126, %127 : vector<1x32xf32>
    %c0_67 = arith.constant 0 : index
    %c0_68 = arith.constant 0 : index
    %129 = vector.load %arg22[%c0_67, %c0_68] : memref<8x32xf32, #tpu.memory_space<vmem>>, vector<1x32xf32>
    tpu.vector_store %arg22[%c0_67, %c0_68], %128 {strides = array<i32>} : memref<8x32xf32, #tpu.memory_space<vmem>>, vector<1x32xf32>,
    %130 = math.tanh %128 : vector<1x32xf32>
    %131 = arith.mulf %124, %130 : vector<1x32xf32>
    %c5_69 = arith.constant 5 : index
    %c0_70 = arith.constant 0 : index
    %132 = vector.load %arg18[%c5_69, %c0_70] : memref<13x32xf32, #tpu.memory_space<vmem>>, vector<1x32xf32>
    tpu.vector_store %arg18[%c5_69, %c0_70], %131 {strides = array<i32>} : memref<13x32xf32, #tpu.memory_space<vmem>>, vector<1x32xf32>,
    %c6 = arith.constant 6 : index
    %c0_71 = arith.constant 0 : index
    %133 = vector.load %arg21[%c6, %c0_71] : memref<13x128xf32, #tpu.memory_space<vmem>>, vector<1x128xf32>
    %c5_72 = arith.constant 5 : index
    %c0_73 = arith.constant 0 : index
    %134 = vector.load %arg18[%c5_72, %c0_73] : memref<13x32xf32, #tpu.memory_space<vmem>>, vector<1x32xf32>
    %cst_74 = arith.constant dense<0.000000e+00> : vector<1x128xf32>
    %135 = tpu.matmul %134, %7, %cst_74 {dimension_numbers = #tpu.dot_dimension_numbers<[1], [0], [0], [1], [0, 0, 1, 1], [], []>} : vector<1x32xf32>, vector<32x128xf32>, vector<1x128xf32> -> vector<1x128xf32>
    %136 = arith.addf %133, %135 : vector<1x128xf32>
    %137 = arith.negf %136 : vector<1x128xf32>
    %138 = math.exp %137 : vector<1x128xf32>
    %cst_75 = arith.constant 1.000000e+00 : f32
    %139 = vector.broadcast %cst_75 : f32 to vector<1x128xf32>
    %140 = arith.addf %139, %138 : vector<1x128xf32>
    %141 = arith.divf %139, %140 : vector<1x128xf32>
    %142 = math.tanh %136 : vector<1x128xf32>
    %143 = vector.extract_strided_slice %141 {offsets = [0, 0], sizes = [1, 32], strides = [1, 1]} : vector<1x128xf32> to vector<1x32xf32>
    %144 = vector.extract_strided_slice %141 {offsets = [0, 32], sizes = [1, 32], strides = [1, 1]} : vector<1x128xf32> to vector<1x32xf32>
    %145 = vector.extract_strided_slice %142 {offsets = [0, 64], sizes = [1, 32], strides = [1, 1]} : vector<1x128xf32> to vector<1x32xf32>
    %146 = vector.extract_strided_slice %141 {offsets = [0, 96], sizes = [1, 32], strides = [1, 1]} : vector<1x128xf32> to vector<1x32xf32>
    %c0_76 = arith.constant 0 : index
    %c0_77 = arith.constant 0 : index
    %147 = vector.load %arg22[%c0_76, %c0_77] : memref<8x32xf32, #tpu.memory_space<vmem>>, vector<1x32xf32>
    %148 = arith.mulf %144, %147 : vector<1x32xf32>
    %149 = arith.mulf %143, %145 : vector<1x32xf32>
    %150 = arith.addf %148, %149 : vector<1x32xf32>
    %c0_78 = arith.constant 0 : index
    %c0_79 = arith.constant 0 : index
    %151 = vector.load %arg22[%c0_78, %c0_79] : memref<8x32xf32, #tpu.memory_space<vmem>>, vector<1x32xf32>
    tpu.vector_store %arg22[%c0_78, %c0_79], %150 {strides = array<i32>} : memref<8x32xf32, #tpu.memory_space<vmem>>, vector<1x32xf32>,
    %152 = math.tanh %150 : vector<1x32xf32>
    %153 = arith.mulf %146, %152 : vector<1x32xf32>
    %c6_80 = arith.constant 6 : index
    %c0_81 = arith.constant 0 : index
    %154 = vector.load %arg18[%c6_80, %c0_81] : memref<13x32xf32, #tpu.memory_space<vmem>>, vector<1x32xf32>
    tpu.vector_store %arg18[%c6_80, %c0_81], %153 {strides = array<i32>} : memref<13x32xf32, #tpu.memory_space<vmem>>, vector<1x32xf32>,
    %c7 = arith.constant 7 : index
    %c0_82 = arith.constant 0 : index
    %155 = vector.load %arg21[%c7, %c0_82] : memref<13x128xf32, #tpu.memory_space<vmem>>, vector<1x128xf32>
    %c6_83 = arith.constant 6 : index
    %c0_84 = arith.constant 0 : index
    %156 = vector.load %arg18[%c6_83, %c0_84] : memref<13x32xf32, #tpu.memory_space<vmem>>, vector<1x32xf32>
    %cst_85 = arith.constant dense<0.000000e+00> : vector<1x128xf32>
    %157 = tpu.matmul %156, %7, %cst_85 {dimension_numbers = #tpu.dot_dimension_numbers<[1], [0], [0], [1], [0, 0, 1, 1], [], []>} : vector<1x32xf32>, vector<32x128xf32>, vector<1x128xf32> -> vector<1x128xf32>
    %158 = arith.addf %155, %157 : vector<1x128xf32>
    %159 = arith.negf %158 : vector<1x128xf32>
    %160 = math.exp %159 : vector<1x128xf32>
    %cst_86 = arith.constant 1.000000e+00 : f32
    %161 = vector.broadcast %cst_86 : f32 to vector<1x128xf32>
    %162 = arith.addf %161, %160 : vector<1x128xf32>
    %163 = arith.divf %161, %162 : vector<1x128xf32>
    %164 = math.tanh %158 : vector<1x128xf32>
    %165 = vector.extract_strided_slice %163 {offsets = [0, 0], sizes = [1, 32], strides = [1, 1]} : vector<1x128xf32> to vector<1x32xf32>
    %166 = vector.extract_strided_slice %163 {offsets = [0, 32], sizes = [1, 32], strides = [1, 1]} : vector<1x128xf32> to vector<1x32xf32>
    %167 = vector.extract_strided_slice %164 {offsets = [0, 64], sizes = [1, 32], strides = [1, 1]} : vector<1x128xf32> to vector<1x32xf32>
    %168 = vector.extract_strided_slice %163 {offsets = [0, 96], sizes = [1, 32], strides = [1, 1]} : vector<1x128xf32> to vector<1x32xf32>
    %c0_87 = arith.constant 0 : index
    %c0_88 = arith.constant 0 : index
    %169 = vector.load %arg22[%c0_87, %c0_88] : memref<8x32xf32, #tpu.memory_space<vmem>>, vector<1x32xf32>
    %170 = arith.mulf %166, %169 : vector<1x32xf32>
    %171 = arith.mulf %165, %167 : vector<1x32xf32>
    %172 = arith.addf %170, %171 : vector<1x32xf32>
    %c0_89 = arith.constant 0 : index
    %c0_90 = arith.constant 0 : index
    %173 = vector.load %arg22[%c0_89, %c0_90] : memref<8x32xf32, #tpu.memory_space<vmem>>, vector<1x32xf32>
    tpu.vector_store %arg22[%c0_89, %c0_90], %172 {strides = array<i32>} : memref<8x32xf32, #tpu.memory_space<vmem>>, vector<1x32xf32>,
    %174 = math.tanh %172 : vector<1x32xf32>
    %175 = arith.mulf %168, %174 : vector<1x32xf32>
    %c7_91 = arith.constant 7 : index
    %c0_92 = arith.constant 0 : index
    %176 = vector.load %arg18[%c7_91, %c0_92] : memref<13x32xf32, #tpu.memory_space<vmem>>, vector<1x32xf32>
    tpu.vector_store %arg18[%c7_91, %c0_92], %175 {strides = array<i32>} : memref<13x32xf32, #tpu.memory_space<vmem>>, vector<1x32xf32>,
    %c8 = arith.constant 8 : index
    %c0_93 = arith.constant 0 : index
    %177 = vector.load %arg21[%c8, %c0_93] : memref<13x128xf32, #tpu.memory_space<vmem>>, vector<1x128xf32>
    %c7_94 = arith.constant 7 : index
    %c0_95 = arith.constant 0 : index
    %178 = vector.load %arg18[%c7_94, %c0_95] : memref<13x32xf32, #tpu.memory_space<vmem>>, vector<1x32xf32>
    %cst_96 = arith.constant dense<0.000000e+00> : vector<1x128xf32>
    %179 = tpu.matmul %178, %7, %cst_96 {dimension_numbers = #tpu.dot_dimension_numbers<[1], [0], [0], [1], [0, 0, 1, 1], [], []>} : vector<1x32xf32>, vector<32x128xf32>, vector<1x128xf32> -> vector<1x128xf32>
    %180 = arith.addf %177, %179 : vector<1x128xf32>
    %181 = arith.negf %180 : vector<1x128xf32>
    %182 = math.exp %181 : vector<1x128xf32>
    %cst_97 = arith.constant 1.000000e+00 : f32
    %183 = vector.broadcast %cst_97 : f32 to vector<1x128xf32>
    %184 = arith.addf %183, %182 : vector<1x128xf32>
    %185 = arith.divf %183, %184 : vector<1x128xf32>
    %186 = math.tanh %180 : vector<1x128xf32>
    %187 = vector.extract_strided_slice %185 {offsets = [0, 0], sizes = [1, 32], strides = [1, 1]} : vector<1x128xf32> to vector<1x32xf32>
    %188 = vector.extract_strided_slice %185 {offsets = [0, 32], sizes = [1, 32], strides = [1, 1]} : vector<1x128xf32> to vector<1x32xf32>
    %189 = vector.extract_strided_slice %186 {offsets = [0, 64], sizes = [1, 32], strides = [1, 1]} : vector<1x128xf32> to vector<1x32xf32>
    %190 = vector.extract_strided_slice %185 {offsets = [0, 96], sizes = [1, 32], strides = [1, 1]} : vector<1x128xf32> to vector<1x32xf32>
    %c0_98 = arith.constant 0 : index
    %c0_99 = arith.constant 0 : index
    %191 = vector.load %arg22[%c0_98, %c0_99] : memref<8x32xf32, #tpu.memory_space<vmem>>, vector<1x32xf32>
    %192 = arith.mulf %188, %191 : vector<1x32xf32>
    %193 = arith.mulf %187, %189 : vector<1x32xf32>
    %194 = arith.addf %192, %193 : vector<1x32xf32>
    %c0_100 = arith.constant 0 : index
    %c0_101 = arith.constant 0 : index
    %195 = vector.load %arg22[%c0_100, %c0_101] : memref<8x32xf32, #tpu.memory_space<vmem>>, vector<1x32xf32>
    tpu.vector_store %arg22[%c0_100, %c0_101], %194 {strides = array<i32>} : memref<8x32xf32, #tpu.memory_space<vmem>>, vector<1x32xf32>,
    %196 = math.tanh %194 : vector<1x32xf32>
    %197 = arith.mulf %190, %196 : vector<1x32xf32>
    %c8_102 = arith.constant 8 : index
    %c0_103 = arith.constant 0 : index
    %198 = vector.load %arg18[%c8_102, %c0_103] : memref<13x32xf32, #tpu.memory_space<vmem>>, vector<1x32xf32>
    tpu.vector_store %arg18[%c8_102, %c0_103], %197 {strides = array<i32>} : memref<13x32xf32, #tpu.memory_space<vmem>>, vector<1x32xf32>,
    %c9 = arith.constant 9 : index
    %c0_104 = arith.constant 0 : index
    %199 = vector.load %arg21[%c9, %c0_104] : memref<13x128xf32, #tpu.memory_space<vmem>>, vector<1x128xf32>
    %c8_105 = arith.constant 8 : index
    %c0_106 = arith.constant 0 : index
    %200 = vector.load %arg18[%c8_105, %c0_106] : memref<13x32xf32, #tpu.memory_space<vmem>>, vector<1x32xf32>
    %cst_107 = arith.constant dense<0.000000e+00> : vector<1x128xf32>
    %201 = tpu.matmul %200, %7, %cst_107 {dimension_numbers = #tpu.dot_dimension_numbers<[1], [0], [0], [1], [0, 0, 1, 1], [], []>} : vector<1x32xf32>, vector<32x128xf32>, vector<1x128xf32> -> vector<1x128xf32>
    %202 = arith.addf %199, %201 : vector<1x128xf32>
    %203 = arith.negf %202 : vector<1x128xf32>
    %204 = math.exp %203 : vector<1x128xf32>
    %cst_108 = arith.constant 1.000000e+00 : f32
    %205 = vector.broadcast %cst_108 : f32 to vector<1x128xf32>
    %206 = arith.addf %205, %204 : vector<1x128xf32>
    %207 = arith.divf %205, %206 : vector<1x128xf32>
    %208 = math.tanh %202 : vector<1x128xf32>
    %209 = vector.extract_strided_slice %207 {offsets = [0, 0], sizes = [1, 32], strides = [1, 1]} : vector<1x128xf32> to vector<1x32xf32>
    %210 = vector.extract_strided_slice %207 {offsets = [0, 32], sizes = [1, 32], strides = [1, 1]} : vector<1x128xf32> to vector<1x32xf32>
    %211 = vector.extract_strided_slice %208 {offsets = [0, 64], sizes = [1, 32], strides = [1, 1]} : vector<1x128xf32> to vector<1x32xf32>
    %212 = vector.extract_strided_slice %207 {offsets = [0, 96], sizes = [1, 32], strides = [1, 1]} : vector<1x128xf32> to vector<1x32xf32>
    %c0_109 = arith.constant 0 : index
    %c0_110 = arith.constant 0 : index
    %213 = vector.load %arg22[%c0_109, %c0_110] : memref<8x32xf32, #tpu.memory_space<vmem>>, vector<1x32xf32>
    %214 = arith.mulf %210, %213 : vector<1x32xf32>
    %215 = arith.mulf %209, %211 : vector<1x32xf32>
    %216 = arith.addf %214, %215 : vector<1x32xf32>
    %c0_111 = arith.constant 0 : index
    %c0_112 = arith.constant 0 : index
    %217 = vector.load %arg22[%c0_111, %c0_112] : memref<8x32xf32, #tpu.memory_space<vmem>>, vector<1x32xf32>
    tpu.vector_store %arg22[%c0_111, %c0_112], %216 {strides = array<i32>} : memref<8x32xf32, #tpu.memory_space<vmem>>, vector<1x32xf32>,
    %218 = math.tanh %216 : vector<1x32xf32>
    %219 = arith.mulf %212, %218 : vector<1x32xf32>
    %c9_113 = arith.constant 9 : index
    %c0_114 = arith.constant 0 : index
    %220 = vector.load %arg18[%c9_113, %c0_114] : memref<13x32xf32, #tpu.memory_space<vmem>>, vector<1x32xf32>
    tpu.vector_store %arg18[%c9_113, %c0_114], %219 {strides = array<i32>} : memref<13x32xf32, #tpu.memory_space<vmem>>, vector<1x32xf32>,
    %c10 = arith.constant 10 : index
    %c0_115 = arith.constant 0 : index
    %221 = vector.load %arg21[%c10, %c0_115] : memref<13x128xf32, #tpu.memory_space<vmem>>, vector<1x128xf32>
    %c9_116 = arith.constant 9 : index
    %c0_117 = arith.constant 0 : index
    %222 = vector.load %arg18[%c9_116, %c0_117] : memref<13x32xf32, #tpu.memory_space<vmem>>, vector<1x32xf32>
    %cst_118 = arith.constant dense<0.000000e+00> : vector<1x128xf32>
    %223 = tpu.matmul %222, %7, %cst_118 {dimension_numbers = #tpu.dot_dimension_numbers<[1], [0], [0], [1], [0, 0, 1, 1], [], []>} : vector<1x32xf32>, vector<32x128xf32>, vector<1x128xf32> -> vector<1x128xf32>
    %224 = arith.addf %221, %223 : vector<1x128xf32>
    %225 = arith.negf %224 : vector<1x128xf32>
    %226 = math.exp %225 : vector<1x128xf32>
    %cst_119 = arith.constant 1.000000e+00 : f32
    %227 = vector.broadcast %cst_119 : f32 to vector<1x128xf32>
    %228 = arith.addf %227, %226 : vector<1x128xf32>
    %229 = arith.divf %227, %228 : vector<1x128xf32>
    %230 = math.tanh %224 : vector<1x128xf32>
    %231 = vector.extract_strided_slice %229 {offsets = [0, 0], sizes = [1, 32], strides = [1, 1]} : vector<1x128xf32> to vector<1x32xf32>
    %232 = vector.extract_strided_slice %229 {offsets = [0, 32], sizes = [1, 32], strides = [1, 1]} : vector<1x128xf32> to vector<1x32xf32>
    %233 = vector.extract_strided_slice %230 {offsets = [0, 64], sizes = [1, 32], strides = [1, 1]} : vector<1x128xf32> to vector<1x32xf32>
    %234 = vector.extract_strided_slice %229 {offsets = [0, 96], sizes = [1, 32], strides = [1, 1]} : vector<1x128xf32> to vector<1x32xf32>
    %c0_120 = arith.constant 0 : index
    %c0_121 = arith.constant 0 : index
    %235 = vector.load %arg22[%c0_120, %c0_121] : memref<8x32xf32, #tpu.memory_space<vmem>>, vector<1x32xf32>
    %236 = arith.mulf %232, %235 : vector<1x32xf32>
    %237 = arith.mulf %231, %233 : vector<1x32xf32>
    %238 = arith.addf %236, %237 : vector<1x32xf32>
    %c0_122 = arith.constant 0 : index
    %c0_123 = arith.constant 0 : index
    %239 = vector.load %arg22[%c0_122, %c0_123] : memref<8x32xf32, #tpu.memory_space<vmem>>, vector<1x32xf32>
    tpu.vector_store %arg22[%c0_122, %c0_123], %238 {strides = array<i32>} : memref<8x32xf32, #tpu.memory_space<vmem>>, vector<1x32xf32>,
    %240 = math.tanh %238 : vector<1x32xf32>
    %241 = arith.mulf %234, %240 : vector<1x32xf32>
    %c10_124 = arith.constant 10 : index
    %c0_125 = arith.constant 0 : index
    %242 = vector.load %arg18[%c10_124, %c0_125] : memref<13x32xf32, #tpu.memory_space<vmem>>, vector<1x32xf32>
    tpu.vector_store %arg18[%c10_124, %c0_125], %241 {strides = array<i32>} : memref<13x32xf32, #tpu.memory_space<vmem>>, vector<1x32xf32>,
    %c11 = arith.constant 11 : index
    %c0_126 = arith.constant 0 : index
    %243 = vector.load %arg21[%c11, %c0_126] : memref<13x128xf32, #tpu.memory_space<vmem>>, vector<1x128xf32>
    %c10_127 = arith.constant 10 : index
    %c0_128 = arith.constant 0 : index
    %244 = vector.load %arg18[%c10_127, %c0_128] : memref<13x32xf32, #tpu.memory_space<vmem>>, vector<1x32xf32>
    %cst_129 = arith.constant dense<0.000000e+00> : vector<1x128xf32>
    %245 = tpu.matmul %244, %7, %cst_129 {dimension_numbers = #tpu.dot_dimension_numbers<[1], [0], [0], [1], [0, 0, 1, 1], [], []>} : vector<1x32xf32>, vector<32x128xf32>, vector<1x128xf32> -> vector<1x128xf32>
    %246 = arith.addf %243, %245 : vector<1x128xf32>
    %247 = arith.negf %246 : vector<1x128xf32>
    %248 = math.exp %247 : vector<1x128xf32>
    %cst_130 = arith.constant 1.000000e+00 : f32
    %249 = vector.broadcast %cst_130 : f32 to vector<1x128xf32>
    %250 = arith.addf %249, %248 : vector<1x128xf32>
    %251 = arith.divf %249, %250 : vector<1x128xf32>
    %252 = math.tanh %246 : vector<1x128xf32>
    %253 = vector.extract_strided_slice %251 {offsets = [0, 0], sizes = [1, 32], strides = [1, 1]} : vector<1x128xf32> to vector<1x32xf32>
    %254 = vector.extract_strided_slice %251 {offsets = [0, 32], sizes = [1, 32], strides = [1, 1]} : vector<1x128xf32> to vector<1x32xf32>
    %255 = vector.extract_strided_slice %252 {offsets = [0, 64], sizes = [1, 32], strides = [1, 1]} : vector<1x128xf32> to vector<1x32xf32>
    %256 = vector.extract_strided_slice %251 {offsets = [0, 96], sizes = [1, 32], strides = [1, 1]} : vector<1x128xf32> to vector<1x32xf32>
    %c0_131 = arith.constant 0 : index
    %c0_132 = arith.constant 0 : index
    %257 = vector.load %arg22[%c0_131, %c0_132] : memref<8x32xf32, #tpu.memory_space<vmem>>, vector<1x32xf32>
    %258 = arith.mulf %254, %257 : vector<1x32xf32>
    %259 = arith.mulf %253, %255 : vector<1x32xf32>
    %260 = arith.addf %258, %259 : vector<1x32xf32>
    %c0_133 = arith.constant 0 : index
    %c0_134 = arith.constant 0 : index
    %261 = vector.load %arg22[%c0_133, %c0_134] : memref<8x32xf32, #tpu.memory_space<vmem>>, vector<1x32xf32>
    tpu.vector_store %arg22[%c0_133, %c0_134], %260 {strides = array<i32>} : memref<8x32xf32, #tpu.memory_space<vmem>>, vector<1x32xf32>,
    %262 = math.tanh %260 : vector<1x32xf32>
    %263 = arith.mulf %256, %262 : vector<1x32xf32>
    %c11_135 = arith.constant 11 : index
    %c0_136 = arith.constant 0 : index
    %264 = vector.load %arg18[%c11_135, %c0_136] : memref<13x32xf32, #tpu.memory_space<vmem>>, vector<1x32xf32>
    tpu.vector_store %arg18[%c11_135, %c0_136], %263 {strides = array<i32>} : memref<13x32xf32, #tpu.memory_space<vmem>>, vector<1x32xf32>,
    %c12 = arith.constant 12 : index
    %c0_137 = arith.constant 0 : index
    %265 = vector.load %arg21[%c12, %c0_137] : memref<13x128xf32, #tpu.memory_space<vmem>>, vector<1x128xf32>
    %c11_138 = arith.constant 11 : index
    %c0_139 = arith.constant 0 : index
    %266 = vector.load %arg18[%c11_138, %c0_139] : memref<13x32xf32, #tpu.memory_space<vmem>>, vector<1x32xf32>
    %cst_140 = arith.constant dense<0.000000e+00> : vector<1x128xf32>
    %267 = tpu.matmul %266, %7, %cst_140 {dimension_numbers = #tpu.dot_dimension_numbers<[1], [0], [0], [1], [0, 0, 1, 1], [], []>} : vector<1x32xf32>, vector<32x128xf32>, vector<1x128xf32> -> vector<1x128xf32>
    %268 = arith.addf %265, %267 : vector<1x128xf32>
    %269 = arith.negf %268 : vector<1x128xf32>
    %270 = math.exp %269 : vector<1x128xf32>
    %cst_141 = arith.constant 1.000000e+00 : f32
    %271 = vector.broadcast %cst_141 : f32 to vector<1x128xf32>
    %272 = arith.addf %271, %270 : vector<1x128xf32>
    %273 = arith.divf %271, %272 : vector<1x128xf32>
    %274 = math.tanh %268 : vector<1x128xf32>
    %275 = vector.extract_strided_slice %273 {offsets = [0, 0], sizes = [1, 32], strides = [1, 1]} : vector<1x128xf32> to vector<1x32xf32>
    %276 = vector.extract_strided_slice %273 {offsets = [0, 32], sizes = [1, 32], strides = [1, 1]} : vector<1x128xf32> to vector<1x32xf32>
    %277 = vector.extract_strided_slice %274 {offsets = [0, 64], sizes = [1, 32], strides = [1, 1]} : vector<1x128xf32> to vector<1x32xf32>
    %278 = vector.extract_strided_slice %273 {offsets = [0, 96], sizes = [1, 32], strides = [1, 1]} : vector<1x128xf32> to vector<1x32xf32>
    %c0_142 = arith.constant 0 : index
    %c0_143 = arith.constant 0 : index
    %279 = vector.load %arg22[%c0_142, %c0_143] : memref<8x32xf32, #tpu.memory_space<vmem>>, vector<1x32xf32>
    %280 = arith.mulf %276, %279 : vector<1x32xf32>
    %281 = arith.mulf %275, %277 : vector<1x32xf32>
    %282 = arith.addf %280, %281 : vector<1x32xf32>
    %c0_144 = arith.constant 0 : index
    %c0_145 = arith.constant 0 : index
    %283 = vector.load %arg22[%c0_144, %c0_145] : memref<8x32xf32, #tpu.memory_space<vmem>>, vector<1x32xf32>
    tpu.vector_store %arg22[%c0_144, %c0_145], %282 {strides = array<i32>} : memref<8x32xf32, #tpu.memory_space<vmem>>, vector<1x32xf32>,
    %284 = math.tanh %282 : vector<1x32xf32>
    %285 = arith.mulf %278, %284 : vector<1x32xf32>
    %c12_146 = arith.constant 12 : index
    %c0_147 = arith.constant 0 : index
    %286 = vector.load %arg18[%c12_146, %c0_147] : memref<13x32xf32, #tpu.memory_space<vmem>>, vector<1x32xf32>
    tpu.vector_store %arg18[%c12_146, %c0_147], %285 {strides = array<i32>} : memref<13x32xf32, #tpu.memory_space<vmem>>, vector<1x32xf32>,
    %c0_148 = arith.constant 0 : index
    %c0_149 = arith.constant 0 : index
    %287 = vector.load %arg18[%c0_148, %c0_149] : memref<13x32xf32, #tpu.memory_space<vmem>>, vector<13x32xf32>
    %c0_150 = arith.constant 0 : index
    %c0_151 = arith.constant 0 : index
    %288 = vector.load %arg4[%c0_150, %c0_151] : memref<32x128xf32, #tpu.memory_space<vmem>>, vector<32x128xf32>
    %cst_152 = arith.constant dense<0.000000e+00> : vector<13x128xf32>
    %289 = tpu.matmul %287, %288, %cst_152 {dimension_numbers = #tpu.dot_dimension_numbers<[1], [0], [0], [1], [0, 0, 1, 1], [], []>} : vector<13x32xf32>, vector<32x128xf32>, vector<13x128xf32> -> vector<13x128xf32>
    %c0_153 = arith.constant 0 : index
    %c0_154 = arith.constant 0 : index
    %290 = vector.load %arg6[%c0_153, %c0_154] : memref<1x128xf32, #tpu.memory_space<vmem>>, vector<1x128xf32>
    %291 = vector.broadcast %290 : vector<1x128xf32> to vector<13x128xf32>
    %292 = arith.addf %289, %291 : vector<13x128xf32>
    %c0_155 = arith.constant 0 : index
    %c0_156 = arith.constant 0 : index
    %293 = vector.load %arg21[%c0_155, %c0_156] : memref<13x128xf32, #tpu.memory_space<vmem>>, vector<13x128xf32>
    tpu.vector_store %arg21[%c0_155, %c0_156], %292 {strides = array<i32>} : memref<13x128xf32, #tpu.memory_space<vmem>>, vector<13x128xf32>,
    %c0_157 = arith.constant 0 : index
    %c0_158 = arith.constant 0 : index
    %294 = vector.load %arg5[%c0_157, %c0_158] : memref<32x128xf32, #tpu.memory_space<vmem>>, vector<32x128xf32>
    %c0_159 = arith.constant 0 : index
    %c0_160 = arith.constant 0 : index
    %295 = vector.load %arg21[%c0_159, %c0_160] : memref<13x128xf32, #tpu.memory_space<vmem>>, vector<2x128xf32>
    %296 = arith.negf %295 : vector<2x128xf32>
    %297 = math.exp %296 : vector<2x128xf32>
    %cst_161 = arith.constant 1.000000e+00 : f32
    %298 = vector.broadcast %cst_161 : f32 to vector<2x128xf32>
    %299 = arith.addf %298, %297 : vector<2x128xf32>
    %300 = arith.divf %298, %299 : vector<2x128xf32>
    %301 = math.tanh %295 : vector<2x128xf32>
    %302 = vector.extract_strided_slice %300 {offsets = [0, 0], sizes = [2, 32], strides = [1, 1]} : vector<2x128xf32> to vector<2x32xf32>
    %303 = vector.extract_strided_slice %301 {offsets = [0, 64], sizes = [2, 32], strides = [1, 1]} : vector<2x128xf32> to vector<2x32xf32>
    %304 = vector.extract_strided_slice %300 {offsets = [0, 96], sizes = [2, 32], strides = [1, 1]} : vector<2x128xf32> to vector<2x32xf32>
    %305 = arith.mulf %302, %303 : vector<2x32xf32>
    %c0_162 = arith.constant 0 : index
    %c0_163 = arith.constant 0 : index
    %306 = vector.load %arg22[%c0_162, %c0_163] : memref<8x32xf32, #tpu.memory_space<vmem>>, vector<2x32xf32>
    tpu.vector_store %arg22[%c0_162, %c0_163], %305 {strides = array<i32>} : memref<8x32xf32, #tpu.memory_space<vmem>>, vector<2x32xf32>,
    %307 = math.tanh %305 : vector<2x32xf32>
    %308 = arith.mulf %304, %307 : vector<2x32xf32>
    %c0_164 = arith.constant 0 : index
    %c0_165 = arith.constant 0 : index
    %309 = vector.load %arg19[%c0_164, %c0_165] : memref<13x32xf32, #tpu.memory_space<vmem>>, vector<2x32xf32>
    tpu.vector_store %arg19[%c0_164, %c0_165], %308 {strides = array<i32>} : memref<13x32xf32, #tpu.memory_space<vmem>>, vector<2x32xf32>,
    %c2_166 = arith.constant 2 : index
    %c0_167 = arith.constant 0 : index
    %310 = vector.load %arg21[%c2_166, %c0_167] : memref<13x128xf32, #tpu.memory_space<vmem>>, vector<2x128xf32>
    %c0_168 = arith.constant 0 : index
    %c0_169 = arith.constant 0 : index
    %311 = vector.load %arg19[%c0_168, %c0_169] : memref<13x32xf32, #tpu.memory_space<vmem>>, vector<2x32xf32>
    %cst_170 = arith.constant dense<0.000000e+00> : vector<2x128xf32>
    %312 = tpu.matmul %311, %294, %cst_170 {dimension_numbers = #tpu.dot_dimension_numbers<[1], [0], [0], [1], [0, 0, 1, 1], [], []>} : vector<2x32xf32>, vector<32x128xf32>, vector<2x128xf32> -> vector<2x128xf32>
    %313 = arith.addf %310, %312 : vector<2x128xf32>
    %314 = arith.negf %313 : vector<2x128xf32>
    %315 = math.exp %314 : vector<2x128xf32>
    %cst_171 = arith.constant 1.000000e+00 : f32
    %316 = vector.broadcast %cst_171 : f32 to vector<2x128xf32>
    %317 = arith.addf %316, %315 : vector<2x128xf32>
    %318 = arith.divf %316, %317 : vector<2x128xf32>
    %319 = math.tanh %313 : vector<2x128xf32>
    %320 = vector.extract_strided_slice %318 {offsets = [0, 0], sizes = [2, 32], strides = [1, 1]} : vector<2x128xf32> to vector<2x32xf32>
    %321 = vector.extract_strided_slice %318 {offsets = [0, 32], sizes = [2, 32], strides = [1, 1]} : vector<2x128xf32> to vector<2x32xf32>
    %322 = vector.extract_strided_slice %319 {offsets = [0, 64], sizes = [2, 32], strides = [1, 1]} : vector<2x128xf32> to vector<2x32xf32>
    %323 = vector.extract_strided_slice %318 {offsets = [0, 96], sizes = [2, 32], strides = [1, 1]} : vector<2x128xf32> to vector<2x32xf32>
    %c0_172 = arith.constant 0 : index
    %c0_173 = arith.constant 0 : index
    %324 = vector.load %arg22[%c0_172, %c0_173] : memref<8x32xf32, #tpu.memory_space<vmem>>, vector<2x32xf32>
    %325 = arith.mulf %321, %324 : vector<2x32xf32>
    %326 = arith.mulf %320, %322 : vector<2x32xf32>
    %327 = arith.addf %325, %326 : vector<2x32xf32>
    %c0_174 = arith.constant 0 : index
    %c0_175 = arith.constant 0 : index
    %328 = vector.load %arg22[%c0_174, %c0_175] : memref<8x32xf32, #tpu.memory_space<vmem>>, vector<2x32xf32>
    tpu.vector_store %arg22[%c0_174, %c0_175], %327 {strides = array<i32>} : memref<8x32xf32, #tpu.memory_space<vmem>>, vector<2x32xf32>,
    %329 = math.tanh %327 : vector<2x32xf32>
    %330 = arith.mulf %323, %329 : vector<2x32xf32>
    %c2_176 = arith.constant 2 : index
    %c0_177 = arith.constant 0 : index
    %331 = vector.load %arg19[%c2_176, %c0_177] : memref<13x32xf32, #tpu.memory_space<vmem>>, vector<2x32xf32>
    tpu.vector_store %arg19[%c2_176, %c0_177], %330 {strides = array<i32>} : memref<13x32xf32, #tpu.memory_space<vmem>>, vector<2x32xf32>,
    %c4_178 = arith.constant 4 : index
    %c0_179 = arith.constant 0 : index
    %332 = vector.load %arg21[%c4_178, %c0_179] : memref<13x128xf32, #tpu.memory_space<vmem>>, vector<2x128xf32>
    %c2_180 = arith.constant 2 : index
    %c0_181 = arith.constant 0 : index
    %333 = vector.load %arg19[%c2_180, %c0_181] : memref<13x32xf32, #tpu.memory_space<vmem>>, vector<2x32xf32>
    %cst_182 = arith.constant dense<0.000000e+00> : vector<2x128xf32>
    %334 = tpu.matmul %333, %294, %cst_182 {dimension_numbers = #tpu.dot_dimension_numbers<[1], [0], [0], [1], [0, 0, 1, 1], [], []>} : vector<2x32xf32>, vector<32x128xf32>, vector<2x128xf32> -> vector<2x128xf32>
    %335 = arith.addf %332, %334 : vector<2x128xf32>
    %336 = arith.negf %335 : vector<2x128xf32>
    %337 = math.exp %336 : vector<2x128xf32>
    %cst_183 = arith.constant 1.000000e+00 : f32
    %338 = vector.broadcast %cst_183 : f32 to vector<2x128xf32>
    %339 = arith.addf %338, %337 : vector<2x128xf32>
    %340 = arith.divf %338, %339 : vector<2x128xf32>
    %341 = math.tanh %335 : vector<2x128xf32>
    %342 = vector.extract_strided_slice %340 {offsets = [0, 0], sizes = [2, 32], strides = [1, 1]} : vector<2x128xf32> to vector<2x32xf32>
    %343 = vector.extract_strided_slice %340 {offsets = [0, 32], sizes = [2, 32], strides = [1, 1]} : vector<2x128xf32> to vector<2x32xf32>
    %344 = vector.extract_strided_slice %341 {offsets = [0, 64], sizes = [2, 32], strides = [1, 1]} : vector<2x128xf32> to vector<2x32xf32>
    %345 = vector.extract_strided_slice %340 {offsets = [0, 96], sizes = [2, 32], strides = [1, 1]} : vector<2x128xf32> to vector<2x32xf32>
    %c0_184 = arith.constant 0 : index
    %c0_185 = arith.constant 0 : index
    %346 = vector.load %arg22[%c0_184, %c0_185] : memref<8x32xf32, #tpu.memory_space<vmem>>, vector<2x32xf32>
    %347 = arith.mulf %343, %346 : vector<2x32xf32>
    %348 = arith.mulf %342, %344 : vector<2x32xf32>
    %349 = arith.addf %347, %348 : vector<2x32xf32>
    %c0_186 = arith.constant 0 : index
    %c0_187 = arith.constant 0 : index
    %350 = vector.load %arg22[%c0_186, %c0_187] : memref<8x32xf32, #tpu.memory_space<vmem>>, vector<2x32xf32>
    tpu.vector_store %arg22[%c0_186, %c0_187], %349 {strides = array<i32>} : memref<8x32xf32, #tpu.memory_space<vmem>>, vector<2x32xf32>,
    %351 = math.tanh %349 : vector<2x32xf32>
    %352 = arith.mulf %345, %351 : vector<2x32xf32>
    %c4_188 = arith.constant 4 : index
    %c0_189 = arith.constant 0 : index
    %353 = vector.load %arg19[%c4_188, %c0_189] : memref<13x32xf32, #tpu.memory_space<vmem>>, vector<2x32xf32>
    tpu.vector_store %arg19[%c4_188, %c0_189], %352 {strides = array<i32>} : memref<13x32xf32, #tpu.memory_space<vmem>>, vector<2x32xf32>,
    %c6_190 = arith.constant 6 : index
    %c0_191 = arith.constant 0 : index
    %354 = vector.load %arg21[%c6_190, %c0_191] : memref<13x128xf32, #tpu.memory_space<vmem>>, vector<2x128xf32>
    %c4_192 = arith.constant 4 : index
    %c0_193 = arith.constant 0 : index
    %355 = vector.load %arg19[%c4_192, %c0_193] : memref<13x32xf32, #tpu.memory_space<vmem>>, vector<2x32xf32>
    %cst_194 = arith.constant dense<0.000000e+00> : vector<2x128xf32>
    %356 = tpu.matmul %355, %294, %cst_194 {dimension_numbers = #tpu.dot_dimension_numbers<[1], [0], [0], [1], [0, 0, 1, 1], [], []>} : vector<2x32xf32>, vector<32x128xf32>, vector<2x128xf32> -> vector<2x128xf32>
    %357 = arith.addf %354, %356 : vector<2x128xf32>
    %358 = arith.negf %357 : vector<2x128xf32>
    %359 = math.exp %358 : vector<2x128xf32>
    %cst_195 = arith.constant 1.000000e+00 : f32
    %360 = vector.broadcast %cst_195 : f32 to vector<2x128xf32>
    %361 = arith.addf %360, %359 : vector<2x128xf32>
    %362 = arith.divf %360, %361 : vector<2x128xf32>
    %363 = math.tanh %357 : vector<2x128xf32>
    %364 = vector.extract_strided_slice %362 {offsets = [0, 0], sizes = [2, 32], strides = [1, 1]} : vector<2x128xf32> to vector<2x32xf32>
    %365 = vector.extract_strided_slice %362 {offsets = [0, 32], sizes = [2, 32], strides = [1, 1]} : vector<2x128xf32> to vector<2x32xf32>
    %366 = vector.extract_strided_slice %363 {offsets = [0, 64], sizes = [2, 32], strides = [1, 1]} : vector<2x128xf32> to vector<2x32xf32>
    %367 = vector.extract_strided_slice %362 {offsets = [0, 96], sizes = [2, 32], strides = [1, 1]} : vector<2x128xf32> to vector<2x32xf32>
    %c0_196 = arith.constant 0 : index
    %c0_197 = arith.constant 0 : index
    %368 = vector.load %arg22[%c0_196, %c0_197] : memref<8x32xf32, #tpu.memory_space<vmem>>, vector<2x32xf32>
    %369 = arith.mulf %365, %368 : vector<2x32xf32>
    %370 = arith.mulf %364, %366 : vector<2x32xf32>
    %371 = arith.addf %369, %370 : vector<2x32xf32>
    %c0_198 = arith.constant 0 : index
    %c0_199 = arith.constant 0 : index
    %372 = vector.load %arg22[%c0_198, %c0_199] : memref<8x32xf32, #tpu.memory_space<vmem>>, vector<2x32xf32>
    tpu.vector_store %arg22[%c0_198, %c0_199], %371 {strides = array<i32>} : memref<8x32xf32, #tpu.memory_space<vmem>>, vector<2x32xf32>,
    %373 = math.tanh %371 : vector<2x32xf32>
    %374 = arith.mulf %367, %373 : vector<2x32xf32>
    %c6_200 = arith.constant 6 : index
    %c0_201 = arith.constant 0 : index
    %375 = vector.load %arg19[%c6_200, %c0_201] : memref<13x32xf32, #tpu.memory_space<vmem>>, vector<2x32xf32>
    tpu.vector_store %arg19[%c6_200, %c0_201], %374 {strides = array<i32>} : memref<13x32xf32, #tpu.memory_space<vmem>>, vector<2x32xf32>,
    %c8_202 = arith.constant 8 : index
    %c0_203 = arith.constant 0 : index
    %376 = vector.load %arg21[%c8_202, %c0_203] : memref<13x128xf32, #tpu.memory_space<vmem>>, vector<2x128xf32>
    %c6_204 = arith.constant 6 : index
    %c0_205 = arith.constant 0 : index
    %377 = vector.load %arg19[%c6_204, %c0_205] : memref<13x32xf32, #tpu.memory_space<vmem>>, vector<2x32xf32>
    %cst_206 = arith.constant dense<0.000000e+00> : vector<2x128xf32>
    %378 = tpu.matmul %377, %294, %cst_206 {dimension_numbers = #tpu.dot_dimension_numbers<[1], [0], [0], [1], [0, 0, 1, 1], [], []>} : vector<2x32xf32>, vector<32x128xf32>, vector<2x128xf32> -> vector<2x128xf32>
    %379 = arith.addf %376, %378 : vector<2x128xf32>
    %380 = arith.negf %379 : vector<2x128xf32>
    %381 = math.exp %380 : vector<2x128xf32>
    %cst_207 = arith.constant 1.000000e+00 : f32
    %382 = vector.broadcast %cst_207 : f32 to vector<2x128xf32>
    %383 = arith.addf %382, %381 : vector<2x128xf32>
    %384 = arith.divf %382, %383 : vector<2x128xf32>
    %385 = math.tanh %379 : vector<2x128xf32>
    %386 = vector.extract_strided_slice %384 {offsets = [0, 0], sizes = [2, 32], strides = [1, 1]} : vector<2x128xf32> to vector<2x32xf32>
    %387 = vector.extract_strided_slice %384 {offsets = [0, 32], sizes = [2, 32], strides = [1, 1]} : vector<2x128xf32> to vector<2x32xf32>
    %388 = vector.extract_strided_slice %385 {offsets = [0, 64], sizes = [2, 32], strides = [1, 1]} : vector<2x128xf32> to vector<2x32xf32>
    %389 = vector.extract_strided_slice %384 {offsets = [0, 96], sizes = [2, 32], strides = [1, 1]} : vector<2x128xf32> to vector<2x32xf32>
    %c0_208 = arith.constant 0 : index
    %c0_209 = arith.constant 0 : index
    %390 = vector.load %arg22[%c0_208, %c0_209] : memref<8x32xf32, #tpu.memory_space<vmem>>, vector<2x32xf32>
    %391 = arith.mulf %387, %390 : vector<2x32xf32>
    %392 = arith.mulf %386, %388 : vector<2x32xf32>
    %393 = arith.addf %391, %392 : vector<2x32xf32>
    %c0_210 = arith.constant 0 : index
    %c0_211 = arith.constant 0 : index
    %394 = vector.load %arg22[%c0_210, %c0_211] : memref<8x32xf32, #tpu.memory_space<vmem>>, vector<2x32xf32>
    tpu.vector_store %arg22[%c0_210, %c0_211], %393 {strides = array<i32>} : memref<8x32xf32, #tpu.memory_space<vmem>>, vector<2x32xf32>,
    %395 = math.tanh %393 : vector<2x32xf32>
    %396 = arith.mulf %389, %395 : vector<2x32xf32>
    %c8_212 = arith.constant 8 : index
    %c0_213 = arith.constant 0 : index
    %397 = vector.load %arg19[%c8_212, %c0_213] : memref<13x32xf32, #tpu.memory_space<vmem>>, vector<2x32xf32>
    tpu.vector_store %arg19[%c8_212, %c0_213], %396 {strides = array<i32>} : memref<13x32xf32, #tpu.memory_space<vmem>>, vector<2x32xf32>,
    %c10_214 = arith.constant 10 : index
    %c0_215 = arith.constant 0 : index
    %398 = vector.load %arg21[%c10_214, %c0_215] : memref<13x128xf32, #tpu.memory_space<vmem>>, vector<2x128xf32>
    %c8_216 = arith.constant 8 : index
    %c0_217 = arith.constant 0 : index
    %399 = vector.load %arg19[%c8_216, %c0_217] : memref<13x32xf32, #tpu.memory_space<vmem>>, vector<2x32xf32>
    %cst_218 = arith.constant dense<0.000000e+00> : vector<2x128xf32>
    %400 = tpu.matmul %399, %294, %cst_218 {dimension_numbers = #tpu.dot_dimension_numbers<[1], [0], [0], [1], [0, 0, 1, 1], [], []>} : vector<2x32xf32>, vector<32x128xf32>, vector<2x128xf32> -> vector<2x128xf32>
    %401 = arith.addf %398, %400 : vector<2x128xf32>
    %402 = arith.negf %401 : vector<2x128xf32>
    %403 = math.exp %402 : vector<2x128xf32>
    %cst_219 = arith.constant 1.000000e+00 : f32
    %404 = vector.broadcast %cst_219 : f32 to vector<2x128xf32>
    %405 = arith.addf %404, %403 : vector<2x128xf32>
    %406 = arith.divf %404, %405 : vector<2x128xf32>
    %407 = math.tanh %401 : vector<2x128xf32>
    %408 = vector.extract_strided_slice %406 {offsets = [0, 0], sizes = [2, 32], strides = [1, 1]} : vector<2x128xf32> to vector<2x32xf32>
    %409 = vector.extract_strided_slice %406 {offsets = [0, 32], sizes = [2, 32], strides = [1, 1]} : vector<2x128xf32> to vector<2x32xf32>
    %410 = vector.extract_strided_slice %407 {offsets = [0, 64], sizes = [2, 32], strides = [1, 1]} : vector<2x128xf32> to vector<2x32xf32>
    %411 = vector.extract_strided_slice %406 {offsets = [0, 96], sizes = [2, 32], strides = [1, 1]} : vector<2x128xf32> to vector<2x32xf32>
    %c0_220 = arith.constant 0 : index
    %c0_221 = arith.constant 0 : index
    %412 = vector.load %arg22[%c0_220, %c0_221] : memref<8x32xf32, #tpu.memory_space<vmem>>, vector<2x32xf32>
    %413 = arith.mulf %409, %412 : vector<2x32xf32>
    %414 = arith.mulf %408, %410 : vector<2x32xf32>
    %415 = arith.addf %413, %414 : vector<2x32xf32>
    %c0_222 = arith.constant 0 : index
    %c0_223 = arith.constant 0 : index
    %416 = vector.load %arg22[%c0_222, %c0_223] : memref<8x32xf32, #tpu.memory_space<vmem>>, vector<2x32xf32>
    tpu.vector_store %arg22[%c0_222, %c0_223], %415 {strides = array<i32>} : memref<8x32xf32, #tpu.memory_space<vmem>>, vector<2x32xf32>,
    %417 = math.tanh %415 : vector<2x32xf32>
    %418 = arith.mulf %411, %417 : vector<2x32xf32>
    %c10_224 = arith.constant 10 : index
    %c0_225 = arith.constant 0 : index
    %419 = vector.load %arg19[%c10_224, %c0_225] : memref<13x32xf32, #tpu.memory_space<vmem>>, vector<2x32xf32>
    tpu.vector_store %arg19[%c10_224, %c0_225], %418 {strides = array<i32>} : memref<13x32xf32, #tpu.memory_space<vmem>>, vector<2x32xf32>,
    %c12_226 = arith.constant 12 : index
    %c0_227 = arith.constant 0 : index
    %420 = vector.load %arg21[%c12_226, %c0_227] : memref<13x128xf32, #tpu.memory_space<vmem>>, vector<1x128xf32>
    %c10_228 = arith.constant 10 : index
    %c0_229 = arith.constant 0 : index
    %421 = vector.load %arg19[%c10_228, %c0_229] : memref<13x32xf32, #tpu.memory_space<vmem>>, vector<1x32xf32>
    %cst_230 = arith.constant dense<0.000000e+00> : vector<1x128xf32>
    %422 = tpu.matmul %421, %294, %cst_230 {dimension_numbers = #tpu.dot_dimension_numbers<[1], [0], [0], [1], [0, 0, 1, 1], [], []>} : vector<1x32xf32>, vector<32x128xf32>, vector<1x128xf32> -> vector<1x128xf32>
    %423 = arith.addf %420, %422 : vector<1x128xf32>
    %424 = arith.negf %423 : vector<1x128xf32>
    %425 = math.exp %424 : vector<1x128xf32>
    %cst_231 = arith.constant 1.000000e+00 : f32
    %426 = vector.broadcast %cst_231 : f32 to vector<1x128xf32>
    %427 = arith.addf %426, %425 : vector<1x128xf32>
    %428 = arith.divf %426, %427 : vector<1x128xf32>
    %429 = math.tanh %423 : vector<1x128xf32>
    %430 = vector.extract_strided_slice %428 {offsets = [0, 0], sizes = [1, 32], strides = [1, 1]} : vector<1x128xf32> to vector<1x32xf32>
    %431 = vector.extract_strided_slice %428 {offsets = [0, 32], sizes = [1, 32], strides = [1, 1]} : vector<1x128xf32> to vector<1x32xf32>
    %432 = vector.extract_strided_slice %429 {offsets = [0, 64], sizes = [1, 32], strides = [1, 1]} : vector<1x128xf32> to vector<1x32xf32>
    %433 = vector.extract_strided_slice %428 {offsets = [0, 96], sizes = [1, 32], strides = [1, 1]} : vector<1x128xf32> to vector<1x32xf32>
    %c0_232 = arith.constant 0 : index
    %c0_233 = arith.constant 0 : index
    %434 = vector.load %arg22[%c0_232, %c0_233] : memref<8x32xf32, #tpu.memory_space<vmem>>, vector<1x32xf32>
    %435 = arith.mulf %431, %434 : vector<1x32xf32>
    %436 = arith.mulf %430, %432 : vector<1x32xf32>
    %437 = arith.addf %435, %436 : vector<1x32xf32>
    %c0_234 = arith.constant 0 : index
    %c0_235 = arith.constant 0 : index
    %438 = vector.load %arg22[%c0_234, %c0_235] : memref<8x32xf32, #tpu.memory_space<vmem>>, vector<1x32xf32>
    tpu.vector_store %arg22[%c0_234, %c0_235], %437 {strides = array<i32>} : memref<8x32xf32, #tpu.memory_space<vmem>>, vector<1x32xf32>,
    %439 = math.tanh %437 : vector<1x32xf32>
    %440 = arith.mulf %433, %439 : vector<1x32xf32>
    %c12_236 = arith.constant 12 : index
    %c0_237 = arith.constant 0 : index
    %441 = vector.load %arg19[%c12_236, %c0_237] : memref<13x32xf32, #tpu.memory_space<vmem>>, vector<1x32xf32>
    tpu.vector_store %arg19[%c12_236, %c0_237], %440 {strides = array<i32>} : memref<13x32xf32, #tpu.memory_space<vmem>>, vector<1x32xf32>,
    %c0_238 = arith.constant 0 : index
    %c0_239 = arith.constant 0 : index
    %442 = vector.load %arg19[%c0_238, %c0_239] : memref<13x32xf32, #tpu.memory_space<vmem>>, vector<13x32xf32>
    %c0_240 = arith.constant 0 : index
    %c0_241 = arith.constant 0 : index
    %443 = vector.load %arg7[%c0_240, %c0_241] : memref<32x128xf32, #tpu.memory_space<vmem>>, vector<32x128xf32>
    %cst_242 = arith.constant dense<0.000000e+00> : vector<13x128xf32>
    %444 = tpu.matmul %442, %443, %cst_242 {dimension_numbers = #tpu.dot_dimension_numbers<[1], [0], [0], [1], [0, 0, 1, 1], [], []>} : vector<13x32xf32>, vector<32x128xf32>, vector<13x128xf32> -> vector<13x128xf32>
    %c0_243 = arith.constant 0 : index
    %c0_244 = arith.constant 0 : index
    %445 = vector.load %arg9[%c0_243, %c0_244] : memref<1x128xf32, #tpu.memory_space<vmem>>, vector<1x128xf32>
    %446 = vector.broadcast %445 : vector<1x128xf32> to vector<13x128xf32>
    %447 = arith.addf %444, %446 : vector<13x128xf32>
    %c0_245 = arith.constant 0 : index
    %c0_246 = arith.constant 0 : index
    %448 = vector.load %arg21[%c0_245, %c0_246] : memref<13x128xf32, #tpu.memory_space<vmem>>, vector<13x128xf32>
    tpu.vector_store %arg21[%c0_245, %c0_246], %447 {strides = array<i32>} : memref<13x128xf32, #tpu.memory_space<vmem>>, vector<13x128xf32>,
    %c0_247 = arith.constant 0 : index
    %c0_248 = arith.constant 0 : index
    %449 = vector.load %arg8[%c0_247, %c0_248] : memref<32x128xf32, #tpu.memory_space<vmem>>, vector<32x128xf32>
    %c0_249 = arith.constant 0 : index
    %c0_250 = arith.constant 0 : index
    %450 = vector.load %arg21[%c0_249, %c0_250] : memref<13x128xf32, #tpu.memory_space<vmem>>, vector<2x128xf32>
    %451 = arith.negf %450 : vector<2x128xf32>
    %452 = math.exp %451 : vector<2x128xf32>
    %cst_251 = arith.constant 1.000000e+00 : f32
    %453 = vector.broadcast %cst_251 : f32 to vector<2x128xf32>
    %454 = arith.addf %453, %452 : vector<2x128xf32>
    %455 = arith.divf %453, %454 : vector<2x128xf32>
    %456 = math.tanh %450 : vector<2x128xf32>
    %457 = vector.extract_strided_slice %455 {offsets = [0, 0], sizes = [2, 32], strides = [1, 1]} : vector<2x128xf32> to vector<2x32xf32>
    %458 = vector.extract_strided_slice %456 {offsets = [0, 64], sizes = [2, 32], strides = [1, 1]} : vector<2x128xf32> to vector<2x32xf32>
    %459 = vector.extract_strided_slice %455 {offsets = [0, 96], sizes = [2, 32], strides = [1, 1]} : vector<2x128xf32> to vector<2x32xf32>
    %460 = arith.mulf %457, %458 : vector<2x32xf32>
    %c0_252 = arith.constant 0 : index
    %c0_253 = arith.constant 0 : index
    %461 = vector.load %arg22[%c0_252, %c0_253] : memref<8x32xf32, #tpu.memory_space<vmem>>, vector<2x32xf32>
    tpu.vector_store %arg22[%c0_252, %c0_253], %460 {strides = array<i32>} : memref<8x32xf32, #tpu.memory_space<vmem>>, vector<2x32xf32>,
    %462 = math.tanh %460 : vector<2x32xf32>
    %463 = arith.mulf %459, %462 : vector<2x32xf32>
    %c0_254 = arith.constant 0 : index
    %c0_255 = arith.constant 0 : index
    %464 = vector.load %arg18[%c0_254, %c0_255] : memref<13x32xf32, #tpu.memory_space<vmem>>, vector<2x32xf32>
    tpu.vector_store %arg18[%c0_254, %c0_255], %463 {strides = array<i32>} : memref<13x32xf32, #tpu.memory_space<vmem>>, vector<2x32xf32>,
    %c2_256 = arith.constant 2 : index
    %c0_257 = arith.constant 0 : index
    %465 = vector.load %arg21[%c2_256, %c0_257] : memref<13x128xf32, #tpu.memory_space<vmem>>, vector<2x128xf32>
    %c0_258 = arith.constant 0 : index
    %c0_259 = arith.constant 0 : index
    %466 = vector.load %arg18[%c0_258, %c0_259] : memref<13x32xf32, #tpu.memory_space<vmem>>, vector<2x32xf32>
    %cst_260 = arith.constant dense<0.000000e+00> : vector<2x128xf32>
    %467 = tpu.matmul %466, %449, %cst_260 {dimension_numbers = #tpu.dot_dimension_numbers<[1], [0], [0], [1], [0, 0, 1, 1], [], []>} : vector<2x32xf32>, vector<32x128xf32>, vector<2x128xf32> -> vector<2x128xf32>
    %468 = arith.addf %465, %467 : vector<2x128xf32>
    %469 = arith.negf %468 : vector<2x128xf32>
    %470 = math.exp %469 : vector<2x128xf32>
    %cst_261 = arith.constant 1.000000e+00 : f32
    %471 = vector.broadcast %cst_261 : f32 to vector<2x128xf32>
    %472 = arith.addf %471, %470 : vector<2x128xf32>
    %473 = arith.divf %471, %472 : vector<2x128xf32>
    %474 = math.tanh %468 : vector<2x128xf32>
    %475 = vector.extract_strided_slice %473 {offsets = [0, 0], sizes = [2, 32], strides = [1, 1]} : vector<2x128xf32> to vector<2x32xf32>
    %476 = vector.extract_strided_slice %473 {offsets = [0, 32], sizes = [2, 32], strides = [1, 1]} : vector<2x128xf32> to vector<2x32xf32>
    %477 = vector.extract_strided_slice %474 {offsets = [0, 64], sizes = [2, 32], strides = [1, 1]} : vector<2x128xf32> to vector<2x32xf32>
    %478 = vector.extract_strided_slice %473 {offsets = [0, 96], sizes = [2, 32], strides = [1, 1]} : vector<2x128xf32> to vector<2x32xf32>
    %c0_262 = arith.constant 0 : index
    %c0_263 = arith.constant 0 : index
    %479 = vector.load %arg22[%c0_262, %c0_263] : memref<8x32xf32, #tpu.memory_space<vmem>>, vector<2x32xf32>
    %480 = arith.mulf %476, %479 : vector<2x32xf32>
    %481 = arith.mulf %475, %477 : vector<2x32xf32>
    %482 = arith.addf %480, %481 : vector<2x32xf32>
    %c0_264 = arith.constant 0 : index
    %c0_265 = arith.constant 0 : index
    %483 = vector.load %arg22[%c0_264, %c0_265] : memref<8x32xf32, #tpu.memory_space<vmem>>, vector<2x32xf32>
    tpu.vector_store %arg22[%c0_264, %c0_265], %482 {strides = array<i32>} : memref<8x32xf32, #tpu.memory_space<vmem>>, vector<2x32xf32>,
    %484 = math.tanh %482 : vector<2x32xf32>
    %485 = arith.mulf %478, %484 : vector<2x32xf32>
    %c2_266 = arith.constant 2 : index
    %c0_267 = arith.constant 0 : index
    %486 = vector.load %arg18[%c2_266, %c0_267] : memref<13x32xf32, #tpu.memory_space<vmem>>, vector<2x32xf32>
    tpu.vector_store %arg18[%c2_266, %c0_267], %485 {strides = array<i32>} : memref<13x32xf32, #tpu.memory_space<vmem>>, vector<2x32xf32>,
    %c4_268 = arith.constant 4 : index
    %c0_269 = arith.constant 0 : index
    %487 = vector.load %arg21[%c4_268, %c0_269] : memref<13x128xf32, #tpu.memory_space<vmem>>, vector<2x128xf32>
    %c2_270 = arith.constant 2 : index
    %c0_271 = arith.constant 0 : index
    %488 = vector.load %arg18[%c2_270, %c0_271] : memref<13x32xf32, #tpu.memory_space<vmem>>, vector<2x32xf32>
    %cst_272 = arith.constant dense<0.000000e+00> : vector<2x128xf32>
    %489 = tpu.matmul %488, %449, %cst_272 {dimension_numbers = #tpu.dot_dimension_numbers<[1], [0], [0], [1], [0, 0, 1, 1], [], []>} : vector<2x32xf32>, vector<32x128xf32>, vector<2x128xf32> -> vector<2x128xf32>
    %490 = arith.addf %487, %489 : vector<2x128xf32>
    %491 = arith.negf %490 : vector<2x128xf32>
    %492 = math.exp %491 : vector<2x128xf32>
    %cst_273 = arith.constant 1.000000e+00 : f32
    %493 = vector.broadcast %cst_273 : f32 to vector<2x128xf32>
    %494 = arith.addf %493, %492 : vector<2x128xf32>
    %495 = arith.divf %493, %494 : vector<2x128xf32>
    %496 = math.tanh %490 : vector<2x128xf32>
    %497 = vector.extract_strided_slice %495 {offsets = [0, 0], sizes = [2, 32], strides = [1, 1]} : vector<2x128xf32> to vector<2x32xf32>
    %498 = vector.extract_strided_slice %495 {offsets = [0, 32], sizes = [2, 32], strides = [1, 1]} : vector<2x128xf32> to vector<2x32xf32>
    %499 = vector.extract_strided_slice %496 {offsets = [0, 64], sizes = [2, 32], strides = [1, 1]} : vector<2x128xf32> to vector<2x32xf32>
    %500 = vector.extract_strided_slice %495 {offsets = [0, 96], sizes = [2, 32], strides = [1, 1]} : vector<2x128xf32> to vector<2x32xf32>
    %c0_274 = arith.constant 0 : index
    %c0_275 = arith.constant 0 : index
    %501 = vector.load %arg22[%c0_274, %c0_275] : memref<8x32xf32, #tpu.memory_space<vmem>>, vector<2x32xf32>
    %502 = arith.mulf %498, %501 : vector<2x32xf32>
    %503 = arith.mulf %497, %499 : vector<2x32xf32>
    %504 = arith.addf %502, %503 : vector<2x32xf32>
    %c0_276 = arith.constant 0 : index
    %c0_277 = arith.constant 0 : index
    %505 = vector.load %arg22[%c0_276, %c0_277] : memref<8x32xf32, #tpu.memory_space<vmem>>, vector<2x32xf32>
    tpu.vector_store %arg22[%c0_276, %c0_277], %504 {strides = array<i32>} : memref<8x32xf32, #tpu.memory_space<vmem>>, vector<2x32xf32>,
    %506 = math.tanh %504 : vector<2x32xf32>
    %507 = arith.mulf %500, %506 : vector<2x32xf32>
    %c4_278 = arith.constant 4 : index
    %c0_279 = arith.constant 0 : index
    %508 = vector.load %arg18[%c4_278, %c0_279] : memref<13x32xf32, #tpu.memory_space<vmem>>, vector<2x32xf32>
    tpu.vector_store %arg18[%c4_278, %c0_279], %507 {strides = array<i32>} : memref<13x32xf32, #tpu.memory_space<vmem>>, vector<2x32xf32>,
    %c6_280 = arith.constant 6 : index
    %c0_281 = arith.constant 0 : index
    %509 = vector.load %arg21[%c6_280, %c0_281] : memref<13x128xf32, #tpu.memory_space<vmem>>, vector<2x128xf32>
    %c4_282 = arith.constant 4 : index
    %c0_283 = arith.constant 0 : index
    %510 = vector.load %arg18[%c4_282, %c0_283] : memref<13x32xf32, #tpu.memory_space<vmem>>, vector<2x32xf32>
    %cst_284 = arith.constant dense<0.000000e+00> : vector<2x128xf32>
    %511 = tpu.matmul %510, %449, %cst_284 {dimension_numbers = #tpu.dot_dimension_numbers<[1], [0], [0], [1], [0, 0, 1, 1], [], []>} : vector<2x32xf32>, vector<32x128xf32>, vector<2x128xf32> -> vector<2x128xf32>
    %512 = arith.addf %509, %511 : vector<2x128xf32>
    %513 = arith.negf %512 : vector<2x128xf32>
    %514 = math.exp %513 : vector<2x128xf32>
    %cst_285 = arith.constant 1.000000e+00 : f32
    %515 = vector.broadcast %cst_285 : f32 to vector<2x128xf32>
    %516 = arith.addf %515, %514 : vector<2x128xf32>
    %517 = arith.divf %515, %516 : vector<2x128xf32>
    %518 = math.tanh %512 : vector<2x128xf32>
    %519 = vector.extract_strided_slice %517 {offsets = [0, 0], sizes = [2, 32], strides = [1, 1]} : vector<2x128xf32> to vector<2x32xf32>
    %520 = vector.extract_strided_slice %517 {offsets = [0, 32], sizes = [2, 32], strides = [1, 1]} : vector<2x128xf32> to vector<2x32xf32>
    %521 = vector.extract_strided_slice %518 {offsets = [0, 64], sizes = [2, 32], strides = [1, 1]} : vector<2x128xf32> to vector<2x32xf32>
    %522 = vector.extract_strided_slice %517 {offsets = [0, 96], sizes = [2, 32], strides = [1, 1]} : vector<2x128xf32> to vector<2x32xf32>
    %c0_286 = arith.constant 0 : index
    %c0_287 = arith.constant 0 : index
    %523 = vector.load %arg22[%c0_286, %c0_287] : memref<8x32xf32, #tpu.memory_space<vmem>>, vector<2x32xf32>
    %524 = arith.mulf %520, %523 : vector<2x32xf32>
    %525 = arith.mulf %519, %521 : vector<2x32xf32>
    %526 = arith.addf %524, %525 : vector<2x32xf32>
    %c0_288 = arith.constant 0 : index
    %c0_289 = arith.constant 0 : index
    %527 = vector.load %arg22[%c0_288, %c0_289] : memref<8x32xf32, #tpu.memory_space<vmem>>, vector<2x32xf32>
    tpu.vector_store %arg22[%c0_288, %c0_289], %526 {strides = array<i32>} : memref<8x32xf32, #tpu.memory_space<vmem>>, vector<2x32xf32>,
    %528 = math.tanh %526 : vector<2x32xf32>
    %529 = arith.mulf %522, %528 : vector<2x32xf32>
    %c6_290 = arith.constant 6 : index
    %c0_291 = arith.constant 0 : index
    %530 = vector.load %arg18[%c6_290, %c0_291] : memref<13x32xf32, #tpu.memory_space<vmem>>, vector<2x32xf32>
    tpu.vector_store %arg18[%c6_290, %c0_291], %529 {strides = array<i32>} : memref<13x32xf32, #tpu.memory_space<vmem>>, vector<2x32xf32>,
    %c8_292 = arith.constant 8 : index
    %c0_293 = arith.constant 0 : index
    %531 = vector.load %arg21[%c8_292, %c0_293] : memref<13x128xf32, #tpu.memory_space<vmem>>, vector<2x128xf32>
    %c6_294 = arith.constant 6 : index
    %c0_295 = arith.constant 0 : index
    %532 = vector.load %arg18[%c6_294, %c0_295] : memref<13x32xf32, #tpu.memory_space<vmem>>, vector<2x32xf32>
    %cst_296 = arith.constant dense<0.000000e+00> : vector<2x128xf32>
    %533 = tpu.matmul %532, %449, %cst_296 {dimension_numbers = #tpu.dot_dimension_numbers<[1], [0], [0], [1], [0, 0, 1, 1], [], []>} : vector<2x32xf32>, vector<32x128xf32>, vector<2x128xf32> -> vector<2x128xf32>
    %534 = arith.addf %531, %533 : vector<2x128xf32>
    %535 = arith.negf %534 : vector<2x128xf32>
    %536 = math.exp %535 : vector<2x128xf32>
    %cst_297 = arith.constant 1.000000e+00 : f32
    %537 = vector.broadcast %cst_297 : f32 to vector<2x128xf32>
    %538 = arith.addf %537, %536 : vector<2x128xf32>
    %539 = arith.divf %537, %538 : vector<2x128xf32>
    %540 = math.tanh %534 : vector<2x128xf32>
    %541 = vector.extract_strided_slice %539 {offsets = [0, 0], sizes = [2, 32], strides = [1, 1]} : vector<2x128xf32> to vector<2x32xf32>
    %542 = vector.extract_strided_slice %539 {offsets = [0, 32], sizes = [2, 32], strides = [1, 1]} : vector<2x128xf32> to vector<2x32xf32>
    %543 = vector.extract_strided_slice %540 {offsets = [0, 64], sizes = [2, 32], strides = [1, 1]} : vector<2x128xf32> to vector<2x32xf32>
    %544 = vector.extract_strided_slice %539 {offsets = [0, 96], sizes = [2, 32], strides = [1, 1]} : vector<2x128xf32> to vector<2x32xf32>
    %c0_298 = arith.constant 0 : index
    %c0_299 = arith.constant 0 : index
    %545 = vector.load %arg22[%c0_298, %c0_299] : memref<8x32xf32, #tpu.memory_space<vmem>>, vector<2x32xf32>
    %546 = arith.mulf %542, %545 : vector<2x32xf32>
    %547 = arith.mulf %541, %543 : vector<2x32xf32>
    %548 = arith.addf %546, %547 : vector<2x32xf32>
    %c0_300 = arith.constant 0 : index
    %c0_301 = arith.constant 0 : index
    %549 = vector.load %arg22[%c0_300, %c0_301] : memref<8x32xf32, #tpu.memory_space<vmem>>, vector<2x32xf32>
    tpu.vector_store %arg22[%c0_300, %c0_301], %548 {strides = array<i32>} : memref<8x32xf32, #tpu.memory_space<vmem>>, vector<2x32xf32>,
    %550 = math.tanh %548 : vector<2x32xf32>
    %551 = arith.mulf %544, %550 : vector<2x32xf32>
    %c8_302 = arith.constant 8 : index
    %c0_303 = arith.constant 0 : index
    %552 = vector.load %arg18[%c8_302, %c0_303] : memref<13x32xf32, #tpu.memory_space<vmem>>, vector<2x32xf32>
    tpu.vector_store %arg18[%c8_302, %c0_303], %551 {strides = array<i32>} : memref<13x32xf32, #tpu.memory_space<vmem>>, vector<2x32xf32>,
    %c10_304 = arith.constant 10 : index
    %c0_305 = arith.constant 0 : index
    %553 = vector.load %arg21[%c10_304, %c0_305] : memref<13x128xf32, #tpu.memory_space<vmem>>, vector<2x128xf32>
    %c8_306 = arith.constant 8 : index
    %c0_307 = arith.constant 0 : index
    %554 = vector.load %arg18[%c8_306, %c0_307] : memref<13x32xf32, #tpu.memory_space<vmem>>, vector<2x32xf32>
    %cst_308 = arith.constant dense<0.000000e+00> : vector<2x128xf32>
    %555 = tpu.matmul %554, %449, %cst_308 {dimension_numbers = #tpu.dot_dimension_numbers<[1], [0], [0], [1], [0, 0, 1, 1], [], []>} : vector<2x32xf32>, vector<32x128xf32>, vector<2x128xf32> -> vector<2x128xf32>
    %556 = arith.addf %553, %555 : vector<2x128xf32>
    %557 = arith.negf %556 : vector<2x128xf32>
    %558 = math.exp %557 : vector<2x128xf32>
    %cst_309 = arith.constant 1.000000e+00 : f32
    %559 = vector.broadcast %cst_309 : f32 to vector<2x128xf32>
    %560 = arith.addf %559, %558 : vector<2x128xf32>
    %561 = arith.divf %559, %560 : vector<2x128xf32>
    %562 = math.tanh %556 : vector<2x128xf32>
    %563 = vector.extract_strided_slice %561 {offsets = [0, 0], sizes = [2, 32], strides = [1, 1]} : vector<2x128xf32> to vector<2x32xf32>
    %564 = vector.extract_strided_slice %561 {offsets = [0, 32], sizes = [2, 32], strides = [1, 1]} : vector<2x128xf32> to vector<2x32xf32>
    %565 = vector.extract_strided_slice %562 {offsets = [0, 64], sizes = [2, 32], strides = [1, 1]} : vector<2x128xf32> to vector<2x32xf32>
    %566 = vector.extract_strided_slice %561 {offsets = [0, 96], sizes = [2, 32], strides = [1, 1]} : vector<2x128xf32> to vector<2x32xf32>
    %c0_310 = arith.constant 0 : index
    %c0_311 = arith.constant 0 : index
    %567 = vector.load %arg22[%c0_310, %c0_311] : memref<8x32xf32, #tpu.memory_space<vmem>>, vector<2x32xf32>
    %568 = arith.mulf %564, %567 : vector<2x32xf32>
    %569 = arith.mulf %563, %565 : vector<2x32xf32>
    %570 = arith.addf %568, %569 : vector<2x32xf32>
    %c0_312 = arith.constant 0 : index
    %c0_313 = arith.constant 0 : index
    %571 = vector.load %arg22[%c0_312, %c0_313] : memref<8x32xf32, #tpu.memory_space<vmem>>, vector<2x32xf32>
    tpu.vector_store %arg22[%c0_312, %c0_313], %570 {strides = array<i32>} : memref<8x32xf32, #tpu.memory_space<vmem>>, vector<2x32xf32>,
    %572 = math.tanh %570 : vector<2x32xf32>
    %573 = arith.mulf %566, %572 : vector<2x32xf32>
    %c10_314 = arith.constant 10 : index
    %c0_315 = arith.constant 0 : index
    %574 = vector.load %arg18[%c10_314, %c0_315] : memref<13x32xf32, #tpu.memory_space<vmem>>, vector<2x32xf32>
    tpu.vector_store %arg18[%c10_314, %c0_315], %573 {strides = array<i32>} : memref<13x32xf32, #tpu.memory_space<vmem>>, vector<2x32xf32>,
    %c12_316 = arith.constant 12 : index
    %c0_317 = arith.constant 0 : index
    %575 = vector.load %arg21[%c12_316, %c0_317] : memref<13x128xf32, #tpu.memory_space<vmem>>, vector<1x128xf32>
    %c10_318 = arith.constant 10 : index
    %c0_319 = arith.constant 0 : index
    %576 = vector.load %arg18[%c10_318, %c0_319] : memref<13x32xf32, #tpu.memory_space<vmem>>, vector<1x32xf32>
    %cst_320 = arith.constant dense<0.000000e+00> : vector<1x128xf32>
    %577 = tpu.matmul %576, %449, %cst_320 {dimension_numbers = #tpu.dot_dimension_numbers<[1], [0], [0], [1], [0, 0, 1, 1], [], []>} : vector<1x32xf32>, vector<32x128xf32>, vector<1x128xf32> -> vector<1x128xf32>
    %578 = arith.addf %575, %577 : vector<1x128xf32>
    %579 = arith.negf %578 : vector<1x128xf32>
    %580 = math.exp %579 : vector<1x128xf32>
    %cst_321 = arith.constant 1.000000e+00 : f32
    %581 = vector.broadcast %cst_321 : f32 to vector<1x128xf32>
    %582 = arith.addf %581, %580 : vector<1x128xf32>
    %583 = arith.divf %581, %582 : vector<1x128xf32>
    %584 = math.tanh %578 : vector<1x128xf32>
    %585 = vector.extract_strided_slice %583 {offsets = [0, 0], sizes = [1, 32], strides = [1, 1]} : vector<1x128xf32> to vector<1x32xf32>
    %586 = vector.extract_strided_slice %583 {offsets = [0, 32], sizes = [1, 32], strides = [1, 1]} : vector<1x128xf32> to vector<1x32xf32>
    %587 = vector.extract_strided_slice %584 {offsets = [0, 64], sizes = [1, 32], strides = [1, 1]} : vector<1x128xf32> to vector<1x32xf32>
    %588 = vector.extract_strided_slice %583 {offsets = [0, 96], sizes = [1, 32], strides = [1, 1]} : vector<1x128xf32> to vector<1x32xf32>
    %c0_322 = arith.constant 0 : index
    %c0_323 = arith.constant 0 : index
    %589 = vector.load %arg22[%c0_322, %c0_323] : memref<8x32xf32, #tpu.memory_space<vmem>>, vector<1x32xf32>
    %590 = arith.mulf %586, %589 : vector<1x32xf32>
    %591 = arith.mulf %585, %587 : vector<1x32xf32>
    %592 = arith.addf %590, %591 : vector<1x32xf32>
    %c0_324 = arith.constant 0 : index
    %c0_325 = arith.constant 0 : index
    %593 = vector.load %arg22[%c0_324, %c0_325] : memref<8x32xf32, #tpu.memory_space<vmem>>, vector<1x32xf32>
    tpu.vector_store %arg22[%c0_324, %c0_325], %592 {strides = array<i32>} : memref<8x32xf32, #tpu.memory_space<vmem>>, vector<1x32xf32>,
    %594 = math.tanh %592 : vector<1x32xf32>
    %595 = arith.mulf %588, %594 : vector<1x32xf32>
    %c12_326 = arith.constant 12 : index
    %c0_327 = arith.constant 0 : index
    %596 = vector.load %arg18[%c12_326, %c0_327] : memref<13x32xf32, #tpu.memory_space<vmem>>, vector<1x32xf32>
    tpu.vector_store %arg18[%c12_326, %c0_327], %595 {strides = array<i32>} : memref<13x32xf32, #tpu.memory_space<vmem>>, vector<1x32xf32>,
    %c0_328 = arith.constant 0 : index
    %c0_329 = arith.constant 0 : index
    %597 = vector.load %arg18[%c0_328, %c0_329] : memref<13x32xf32, #tpu.memory_space<vmem>>, vector<13x32xf32>
    %c0_330 = arith.constant 0 : index
    %c0_331 = arith.constant 0 : index
    %598 = vector.load %arg10[%c0_330, %c0_331] : memref<32x128xf32, #tpu.memory_space<vmem>>, vector<32x128xf32>
    %cst_332 = arith.constant dense<0.000000e+00> : vector<13x128xf32>
    %599 = tpu.matmul %597, %598, %cst_332 {dimension_numbers = #tpu.dot_dimension_numbers<[1], [0], [0], [1], [0, 0, 1, 1], [], []>} : vector<13x32xf32>, vector<32x128xf32>, vector<13x128xf32> -> vector<13x128xf32>
    %c0_333 = arith.constant 0 : index
    %c0_334 = arith.constant 0 : index
    %600 = vector.load %arg12[%c0_333, %c0_334] : memref<1x128xf32, #tpu.memory_space<vmem>>, vector<1x128xf32>
    %601 = vector.broadcast %600 : vector<1x128xf32> to vector<13x128xf32>
    %602 = arith.addf %599, %601 : vector<13x128xf32>
    %c0_335 = arith.constant 0 : index
    %c0_336 = arith.constant 0 : index
    %603 = vector.load %arg21[%c0_335, %c0_336] : memref<13x128xf32, #tpu.memory_space<vmem>>, vector<13x128xf32>
    tpu.vector_store %arg21[%c0_335, %c0_336], %602 {strides = array<i32>} : memref<13x128xf32, #tpu.memory_space<vmem>>, vector<13x128xf32>,
    %c0_337 = arith.constant 0 : index
    %c0_338 = arith.constant 0 : index
    %604 = vector.load %arg11[%c0_337, %c0_338] : memref<32x128xf32, #tpu.memory_space<vmem>>, vector<32x128xf32>
    %c0_339 = arith.constant 0 : index
    %c0_340 = arith.constant 0 : index
    %605 = vector.load %arg21[%c0_339, %c0_340] : memref<13x128xf32, #tpu.memory_space<vmem>>, vector<4x128xf32>
    %606 = arith.negf %605 : vector<4x128xf32>
    %607 = math.exp %606 : vector<4x128xf32>
    %cst_341 = arith.constant 1.000000e+00 : f32
    %608 = vector.broadcast %cst_341 : f32 to vector<4x128xf32>
    %609 = arith.addf %608, %607 : vector<4x128xf32>
    %610 = arith.divf %608, %609 : vector<4x128xf32>
    %611 = math.tanh %605 : vector<4x128xf32>
    %612 = vector.extract_strided_slice %610 {offsets = [0, 0], sizes = [4, 32], strides = [1, 1]} : vector<4x128xf32> to vector<4x32xf32>
    %613 = vector.extract_strided_slice %611 {offsets = [0, 64], sizes = [4, 32], strides = [1, 1]} : vector<4x128xf32> to vector<4x32xf32>
    %614 = vector.extract_strided_slice %610 {offsets = [0, 96], sizes = [4, 32], strides = [1, 1]} : vector<4x128xf32> to vector<4x32xf32>
    %615 = arith.mulf %612, %613 : vector<4x32xf32>
    %c0_342 = arith.constant 0 : index
    %c0_343 = arith.constant 0 : index
    %616 = vector.load %arg22[%c0_342, %c0_343] : memref<8x32xf32, #tpu.memory_space<vmem>>, vector<4x32xf32>
    tpu.vector_store %arg22[%c0_342, %c0_343], %615 {strides = array<i32>} : memref<8x32xf32, #tpu.memory_space<vmem>>, vector<4x32xf32>,
    %617 = math.tanh %615 : vector<4x32xf32>
    %618 = arith.mulf %614, %617 : vector<4x32xf32>
    %c0_344 = arith.constant 0 : index
    %c0_345 = arith.constant 0 : index
    %619 = vector.load %arg20[%c0_344, %c0_345] : memref<13x32xf32, #tpu.memory_space<vmem>>, vector<4x32xf32>
    tpu.vector_store %arg20[%c0_344, %c0_345], %618 {strides = array<i32>} : memref<13x32xf32, #tpu.memory_space<vmem>>, vector<4x32xf32>,
    %c4_346 = arith.constant 4 : index
    %c0_347 = arith.constant 0 : index
    %620 = vector.load %arg21[%c4_346, %c0_347] : memref<13x128xf32, #tpu.memory_space<vmem>>, vector<4x128xf32>
    %c0_348 = arith.constant 0 : index
    %c0_349 = arith.constant 0 : index
    %621 = vector.load %arg20[%c0_348, %c0_349] : memref<13x32xf32, #tpu.memory_space<vmem>>, vector<4x32xf32>
    %cst_350 = arith.constant dense<0.000000e+00> : vector<4x128xf32>
    %622 = tpu.matmul %621, %604, %cst_350 {dimension_numbers = #tpu.dot_dimension_numbers<[1], [0], [0], [1], [0, 0, 1, 1], [], []>} : vector<4x32xf32>, vector<32x128xf32>, vector<4x128xf32> -> vector<4x128xf32>
    %623 = arith.addf %620, %622 : vector<4x128xf32>
    %624 = arith.negf %623 : vector<4x128xf32>
    %625 = math.exp %624 : vector<4x128xf32>
    %cst_351 = arith.constant 1.000000e+00 : f32
    %626 = vector.broadcast %cst_351 : f32 to vector<4x128xf32>
    %627 = arith.addf %626, %625 : vector<4x128xf32>
    %628 = arith.divf %626, %627 : vector<4x128xf32>
    %629 = math.tanh %623 : vector<4x128xf32>
    %630 = vector.extract_strided_slice %628 {offsets = [0, 0], sizes = [4, 32], strides = [1, 1]} : vector<4x128xf32> to vector<4x32xf32>
    %631 = vector.extract_strided_slice %628 {offsets = [0, 32], sizes = [4, 32], strides = [1, 1]} : vector<4x128xf32> to vector<4x32xf32>
    %632 = vector.extract_strided_slice %629 {offsets = [0, 64], sizes = [4, 32], strides = [1, 1]} : vector<4x128xf32> to vector<4x32xf32>
    %633 = vector.extract_strided_slice %628 {offsets = [0, 96], sizes = [4, 32], strides = [1, 1]} : vector<4x128xf32> to vector<4x32xf32>
    %c0_352 = arith.constant 0 : index
    %c0_353 = arith.constant 0 : index
    %634 = vector.load %arg22[%c0_352, %c0_353] : memref<8x32xf32, #tpu.memory_space<vmem>>, vector<4x32xf32>
    %635 = arith.mulf %631, %634 : vector<4x32xf32>
    %636 = arith.mulf %630, %632 : vector<4x32xf32>
    %637 = arith.addf %635, %636 : vector<4x32xf32>
    %c0_354 = arith.constant 0 : index
    %c0_355 = arith.constant 0 : index
    %638 = vector.load %arg22[%c0_354, %c0_355] : memref<8x32xf32, #tpu.memory_space<vmem>>, vector<4x32xf32>
    tpu.vector_store %arg22[%c0_354, %c0_355], %637 {strides = array<i32>} : memref<8x32xf32, #tpu.memory_space<vmem>>, vector<4x32xf32>,
    %639 = math.tanh %637 : vector<4x32xf32>
    %640 = arith.mulf %633, %639 : vector<4x32xf32>
    %c4_356 = arith.constant 4 : index
    %c0_357 = arith.constant 0 : index
    %641 = vector.load %arg20[%c4_356, %c0_357] : memref<13x32xf32, #tpu.memory_space<vmem>>, vector<4x32xf32>
    tpu.vector_store %arg20[%c4_356, %c0_357], %640 {strides = array<i32>} : memref<13x32xf32, #tpu.memory_space<vmem>>, vector<4x32xf32>,
    %c8_358 = arith.constant 8 : index
    %c0_359 = arith.constant 0 : index
    %642 = vector.load %arg21[%c8_358, %c0_359] : memref<13x128xf32, #tpu.memory_space<vmem>>, vector<4x128xf32>
    %c4_360 = arith.constant 4 : index
    %c0_361 = arith.constant 0 : index
    %643 = vector.load %arg20[%c4_360, %c0_361] : memref<13x32xf32, #tpu.memory_space<vmem>>, vector<4x32xf32>
    %cst_362 = arith.constant dense<0.000000e+00> : vector<4x128xf32>
    %644 = tpu.matmul %643, %604, %cst_362 {dimension_numbers = #tpu.dot_dimension_numbers<[1], [0], [0], [1], [0, 0, 1, 1], [], []>} : vector<4x32xf32>, vector<32x128xf32>, vector<4x128xf32> -> vector<4x128xf32>
    %645 = arith.addf %642, %644 : vector<4x128xf32>
    %646 = arith.negf %645 : vector<4x128xf32>
    %647 = math.exp %646 : vector<4x128xf32>
    %cst_363 = arith.constant 1.000000e+00 : f32
    %648 = vector.broadcast %cst_363 : f32 to vector<4x128xf32>
    %649 = arith.addf %648, %647 : vector<4x128xf32>
    %650 = arith.divf %648, %649 : vector<4x128xf32>
    %651 = math.tanh %645 : vector<4x128xf32>
    %652 = vector.extract_strided_slice %650 {offsets = [0, 0], sizes = [4, 32], strides = [1, 1]} : vector<4x128xf32> to vector<4x32xf32>
    %653 = vector.extract_strided_slice %650 {offsets = [0, 32], sizes = [4, 32], strides = [1, 1]} : vector<4x128xf32> to vector<4x32xf32>
    %654 = vector.extract_strided_slice %651 {offsets = [0, 64], sizes = [4, 32], strides = [1, 1]} : vector<4x128xf32> to vector<4x32xf32>
    %655 = vector.extract_strided_slice %650 {offsets = [0, 96], sizes = [4, 32], strides = [1, 1]} : vector<4x128xf32> to vector<4x32xf32>
    %c0_364 = arith.constant 0 : index
    %c0_365 = arith.constant 0 : index
    %656 = vector.load %arg22[%c0_364, %c0_365] : memref<8x32xf32, #tpu.memory_space<vmem>>, vector<4x32xf32>
    %657 = arith.mulf %653, %656 : vector<4x32xf32>
    %658 = arith.mulf %652, %654 : vector<4x32xf32>
    %659 = arith.addf %657, %658 : vector<4x32xf32>
    %c0_366 = arith.constant 0 : index
    %c0_367 = arith.constant 0 : index
    %660 = vector.load %arg22[%c0_366, %c0_367] : memref<8x32xf32, #tpu.memory_space<vmem>>, vector<4x32xf32>
    tpu.vector_store %arg22[%c0_366, %c0_367], %659 {strides = array<i32>} : memref<8x32xf32, #tpu.memory_space<vmem>>, vector<4x32xf32>,
    %661 = math.tanh %659 : vector<4x32xf32>
    %662 = arith.mulf %655, %661 : vector<4x32xf32>
    %c8_368 = arith.constant 8 : index
    %c0_369 = arith.constant 0 : index
    %663 = vector.load %arg20[%c8_368, %c0_369] : memref<13x32xf32, #tpu.memory_space<vmem>>, vector<4x32xf32>
    tpu.vector_store %arg20[%c8_368, %c0_369], %662 {strides = array<i32>} : memref<13x32xf32, #tpu.memory_space<vmem>>, vector<4x32xf32>,
    %c12_370 = arith.constant 12 : index
    %c0_371 = arith.constant 0 : index
    %664 = vector.load %arg21[%c12_370, %c0_371] : memref<13x128xf32, #tpu.memory_space<vmem>>, vector<1x128xf32>
    %c8_372 = arith.constant 8 : index
    %c0_373 = arith.constant 0 : index
    %665 = vector.load %arg20[%c8_372, %c0_373] : memref<13x32xf32, #tpu.memory_space<vmem>>, vector<1x32xf32>
    %cst_374 = arith.constant dense<0.000000e+00> : vector<1x128xf32>
    %666 = tpu.matmul %665, %604, %cst_374 {dimension_numbers = #tpu.dot_dimension_numbers<[1], [0], [0], [1], [0, 0, 1, 1], [], []>} : vector<1x32xf32>, vector<32x128xf32>, vector<1x128xf32> -> vector<1x128xf32>
    %667 = arith.addf %664, %666 : vector<1x128xf32>
    %668 = arith.negf %667 : vector<1x128xf32>
    %669 = math.exp %668 : vector<1x128xf32>
    %cst_375 = arith.constant 1.000000e+00 : f32
    %670 = vector.broadcast %cst_375 : f32 to vector<1x128xf32>
    %671 = arith.addf %670, %669 : vector<1x128xf32>
    %672 = arith.divf %670, %671 : vector<1x128xf32>
    %673 = math.tanh %667 : vector<1x128xf32>
    %674 = vector.extract_strided_slice %672 {offsets = [0, 0], sizes = [1, 32], strides = [1, 1]} : vector<1x128xf32> to vector<1x32xf32>
    %675 = vector.extract_strided_slice %672 {offsets = [0, 32], sizes = [1, 32], strides = [1, 1]} : vector<1x128xf32> to vector<1x32xf32>
    %676 = vector.extract_strided_slice %673 {offsets = [0, 64], sizes = [1, 32], strides = [1, 1]} : vector<1x128xf32> to vector<1x32xf32>
    %677 = vector.extract_strided_slice %672 {offsets = [0, 96], sizes = [1, 32], strides = [1, 1]} : vector<1x128xf32> to vector<1x32xf32>
    %c0_376 = arith.constant 0 : index
    %c0_377 = arith.constant 0 : index
    %678 = vector.load %arg22[%c0_376, %c0_377] : memref<8x32xf32, #tpu.memory_space<vmem>>, vector<1x32xf32>
    %679 = arith.mulf %675, %678 : vector<1x32xf32>
    %680 = arith.mulf %674, %676 : vector<1x32xf32>
    %681 = arith.addf %679, %680 : vector<1x32xf32>
    %c0_378 = arith.constant 0 : index
    %c0_379 = arith.constant 0 : index
    %682 = vector.load %arg22[%c0_378, %c0_379] : memref<8x32xf32, #tpu.memory_space<vmem>>, vector<1x32xf32>
    tpu.vector_store %arg22[%c0_378, %c0_379], %681 {strides = array<i32>} : memref<8x32xf32, #tpu.memory_space<vmem>>, vector<1x32xf32>,
    %683 = math.tanh %681 : vector<1x32xf32>
    %684 = arith.mulf %677, %683 : vector<1x32xf32>
    %c12_380 = arith.constant 12 : index
    %c0_381 = arith.constant 0 : index
    %685 = vector.load %arg20[%c12_380, %c0_381] : memref<13x32xf32, #tpu.memory_space<vmem>>, vector<1x32xf32>
    tpu.vector_store %arg20[%c12_380, %c0_381], %684 {strides = array<i32>} : memref<13x32xf32, #tpu.memory_space<vmem>>, vector<1x32xf32>,
    %c0_382 = arith.constant 0 : index
    %c0_383 = arith.constant 0 : index
    %686 = vector.load %arg20[%c0_382, %c0_383] : memref<13x32xf32, #tpu.memory_space<vmem>>, vector<13x32xf32>
    %c0_384 = arith.constant 0 : index
    %c0_385 = arith.constant 0 : index
    %687 = vector.load %arg19[%c0_384, %c0_385] : memref<13x32xf32, #tpu.memory_space<vmem>>, vector<13x32xf32>
    %688 = arith.addf %686, %687 : vector<13x32xf32>
    %c0_386 = arith.constant 0 : index
    %c0_387 = arith.constant 0 : index
    %689 = vector.load %arg20[%c0_386, %c0_387] : memref<13x32xf32, #tpu.memory_space<vmem>>, vector<13x32xf32>
    tpu.vector_store %arg20[%c0_386, %c0_387], %688 {strides = array<i32>} : memref<13x32xf32, #tpu.memory_space<vmem>>, vector<13x32xf32>,
    %c0_388 = arith.constant 0 : index
    %c0_389 = arith.constant 0 : index
    %690 = vector.load %arg20[%c0_388, %c0_389] : memref<13x32xf32, #tpu.memory_space<vmem>>, vector<13x32xf32>
    %c0_390 = arith.constant 0 : index
    %c0_391 = arith.constant 0 : index
    %691 = vector.load %arg13[%c0_390, %c0_391] : memref<32x32xf32, #tpu.memory_space<vmem>>, vector<32x32xf32>
    %cst_392 = arith.constant dense<0.000000e+00> : vector<13x32xf32>
    %692 = tpu.matmul %690, %691, %cst_392 {dimension_numbers = #tpu.dot_dimension_numbers<[1], [0], [0], [1], [0, 0, 1, 1], [], []>} : vector<13x32xf32>, vector<32x32xf32>, vector<13x32xf32> -> vector<13x32xf32>
    %c0_393 = arith.constant 0 : index
    %c0_394 = arith.constant 0 : index
    %693 = vector.load %arg14[%c0_393, %c0_394] : memref<1x32xf32, #tpu.memory_space<vmem>>, vector<1x32xf32>
    %694 = vector.broadcast %693 : vector<1x32xf32> to vector<13x32xf32>
    %695 = arith.addf %692, %694 : vector<13x32xf32>
    %696 = math.tanh %695 : vector<13x32xf32>
    %c0_395 = arith.constant 0 : index
    %c0_396 = arith.constant 0 : index
    %697 = vector.load %arg15[%c0_395, %c0_396] : memref<32x128xf32, #tpu.memory_space<vmem>>, vector<32x128xf32>
    %cst_397 = arith.constant dense<0.000000e+00> : vector<13x128xf32>
    %698 = tpu.matmul %696, %697, %cst_397 {dimension_numbers = #tpu.dot_dimension_numbers<[1], [0], [0], [1], [0, 0, 1, 1], [], []>} : vector<13x32xf32>, vector<32x128xf32>, vector<13x128xf32> -> vector<13x128xf32>
    %c0_398 = arith.constant 0 : index
    %c0_399 = arith.constant 0 : index
    %699 = vector.load %arg16[%c0_398, %c0_399] : memref<1x128xf32, #tpu.memory_space<vmem>>, vector<1x128xf32>
    %700 = vector.broadcast %699 : vector<1x128xf32> to vector<13x128xf32>
    %701 = arith.addf %698, %700 : vector<13x128xf32>
    %c0_400 = arith.constant 0 : index
    %c0_401 = arith.constant 0 : index
    %702 = vector.load %arg17[%c0_400, %c0_401] : memref<13x128xf32, #tpu.memory_space<vmem>>, vector<13x128xf32>
    tpu.vector_store %arg17[%c0_400, %c0_401], %701 {strides = array<i32>} : memref<13x128xf32, #tpu.memory_space<vmem>>, vector<13x128xf32>,
    return
  }
}

</mosaic_0001>

<llo_original>
// kernel: custom-call.9
$region0: #{custom-call.9}
  %s0 = inlined_call_operand.vmem [shape: f32[15,1], index: 0, kind: output, shape index: {}]

// kernel: esrnn_forward.1
$region0: #{esrnn_forward.1}
  #allocation0 [shape = 'u32[]', space=smem, size = 0x4, offset = 0x4, fixed_abs, tag = 'smem constant byte address 0x4 - core index']
  #allocation1 [shape = 'u32[144,128]{1,0:T(1,128)}', space=vmem, size = 0x12000, scoped, tag = 'internal scratch']
  #allocation2 [shape = 'f32[13,32]{1,0:T(8,128)}', space=vmem, size = 0x2000, scoped, tag = 'scratch operand']
  #allocation3 [shape = 'f32[13,32]{1,0:T(8,128)}', space=vmem, size = 0x2000, scoped, tag = 'scratch operand']
  #allocation4 [shape = 'f32[13,32]{1,0:T(8,128)}', space=vmem, size = 0x2000, scoped, tag = 'scratch operand']
  #allocation5 [shape = 'f32[13,128]{1,0:T(8,128)}', space=vmem, size = 0x2000, scoped, tag = 'scratch operand']
  #allocation6 [shape = 'f32[8,32]{1,0:T(8,128)}', space=vmem, size = 0x1000, scoped, tag = 'scratch operand']
  %s0 = inlined_call_operand.vmem [shape: f32[13,4], index: 0, kind: input, shape index: {}]
  %s1 = inlined_call_operand.vmem [shape: f32[4,128], index: 1, kind: input, shape index: {}]
  %s2 = inlined_call_operand.vmem [shape: f32[32,128], index: 2, kind: input, shape index: {}]
  %s3 = inlined_call_operand.vmem [shape: f32[1,128], index: 3, kind: input, shape index: {}]
  %s4 = inlined_call_operand.vmem [shape: f32[32,128], index: 4, kind: input, shape index: {}]
  %s5 = inlined_call_operand.vmem [shape: f32[32,128], index: 5, kind: input, shape index: {}]
  %s6 = inlined_call_operand.vmem [shape: f32[1,128], index: 6, kind: input, shape index: {}]
  %s7 = inlined_call_operand.vmem [shape: f32[32,128], index: 7, kind: input, shape index: {}]
  %s8 = inlined_call_operand.vmem [shape: f32[32,128], index: 8, kind: input, shape index: {}]
  %s9 = inlined_call_operand.vmem [shape: f32[1,128], index: 9, kind: input, shape index: {}]
  %s10 = inlined_call_operand.vmem [shape: f32[32,128], index: 10, kind: input, shape index: {}]
  %s11 = inlined_call_operand.vmem [shape: f32[32,128], index: 11, kind: input, shape index: {}]
  %s12 = inlined_call_operand.vmem [shape: f32[1,128], index: 12, kind: input, shape index: {}]
  %s13 = inlined_call_operand.vmem [shape: f32[32,32], index: 13, kind: input, shape index: {}]
  %s14 = inlined_call_operand.vmem [shape: f32[1,32], index: 14, kind: input, shape index: {}]
  %s15 = inlined_call_operand.vmem [shape: f32[32,128], index: 15, kind: input, shape index: {}]
  %s16 = inlined_call_operand.vmem [shape: f32[1,128], index: 16, kind: input, shape index: {}]
  %s17 = inlined_call_operand.vmem [shape: f32[13,128], index: 17, kind: output, shape index: {}]
  %s18 = sld [smem:[#allocation0]]
  $region78: #{esrnn_forward.1} parent=0
    _
  %s20 = ssub.s32 1, %s18
  %s21 = scalar_select 0, %s20, %s18
  // Predicated region
  $region2: #{esrnn_forward.1} parent=0 // pred_check
    _
  $region3: #{esrnn_forward.1} parent=0 // pred_check_branch
    %23 = sbr.rel (0) target = $region5
  $region4: #{esrnn_forward.1} parent=0 // pred_region
    _
  $region5: #{esrnn_forward.1} parent=0 // pred_fallthru
    _
  // Predicated region
  $region6: #{esrnn_forward.1} parent=0 // pred_check
    _
  $region7: #{esrnn_forward.1} parent=0 // pred_check_branch
    %25 = sbr.rel (0) target = $region9
  $region8: #{esrnn_forward.1} parent=0 // pred_region
    _
  $region9: #{esrnn_forward.1} parent=0 // pred_fallthru
    _
  // Predicated region
  $region10: #{esrnn_forward.1} parent=0 // pred_check
    _
  $region11: #{esrnn_forward.1} parent=0 // pred_check_branch
    %27 = sbr.rel (0) target = $region13
  $region12: #{esrnn_forward.1} parent=0 // pred_region
    _
  $region13: #{esrnn_forward.1} parent=0 // pred_fallthru
    _
  // Predicated region
  $region14: #{esrnn_forward.1} parent=0 // pred_check
    _
  $region15: #{esrnn_forward.1} parent=0 // pred_check_branch
    %29 = sbr.rel (0) target = $region17
  $region16: #{esrnn_forward.1} parent=0 // pred_region
    _
  $region17: #{esrnn_forward.1} parent=0 // pred_fallthru
    _
  // Predicated region
  $region18: #{esrnn_forward.1} parent=0 // pred_check
    _
  $region19: #{esrnn_forward.1} parent=0 // pred_check_branch
    %31 = sbr.rel (0) target = $region21
  $region20: #{esrnn_forward.1} parent=0 // pred_region
    _
  $region21: #{esrnn_forward.1} parent=0 // pred_fallthru
    _
  // Predicated region
  $region22: #{esrnn_forward.1} parent=0 // pred_check
    _
  $region23: #{esrnn_forward.1} parent=0 // pred_check_branch
    %33 = sbr.rel (0) target = $region25
  $region24: #{esrnn_forward.1} parent=0 // pred_region
    _
  $region25: #{esrnn_forward.1} parent=0 // pred_fallthru
    _
  // Predicated region
  $region26: #{esrnn_forward.1} parent=0 // pred_check
    _
  $region27: #{esrnn_forward.1} parent=0 // pred_check_branch
    %35 = sbr.rel (0) target = $region29
  $region28: #{esrnn_forward.1} parent=0 // pred_region
    _
  $region29: #{esrnn_forward.1} parent=0 // pred_fallthru
    _
  // Predicated region
  $region30: #{esrnn_forward.1} parent=0 // pred_check
    _
  $region31: #{esrnn_forward.1} parent=0 // pred_check_branch
    %37 = sbr.rel (0) target = $region33
  $region32: #{esrnn_forward.1} parent=0 // pred_region
    _
  $region33: #{esrnn_forward.1} parent=0 // pred_fallthru
    _
  // Predicated region
  $region34: #{esrnn_forward.1} parent=0 // pred_check
    _
  $region35: #{esrnn_forward.1} parent=0 // pred_check_branch
    %39 = sbr.rel (0) target = $region37
  $region36: #{esrnn_forward.1} parent=0 // pred_region
    _
  $region37: #{esrnn_forward.1} parent=0 // pred_fallthru
    _
  // Predicated region
  $region38: #{esrnn_forward.1} parent=0 // pred_check
    _
  $region39: #{esrnn_forward.1} parent=0 // pred_check_branch
    %41 = sbr.rel (0) target = $region41
  $region40: #{esrnn_forward.1} parent=0 // pred_region
    _
  $region41: #{esrnn_forward.1} parent=0 // pred_fallthru
    _
  // Predicated region
  $region42: #{esrnn_forward.1} parent=0 // pred_check
    _
  $region43: #{esrnn_forward.1} parent=0 // pred_check_branch
    %43 = sbr.rel (0) target = $region45
  $region44: #{esrnn_forward.1} parent=0 // pred_region
    _
  $region45: #{esrnn_forward.1} parent=0 // pred_fallthru
    _
  // Predicated region
  $region46: #{esrnn_forward.1} parent=0 // pred_check
    _
  $region47: #{esrnn_forward.1} parent=0 // pred_check_branch
    %45 = sbr.rel (0) target = $region49
  $region48: #{esrnn_forward.1} parent=0 // pred_region
    _
  $region49: #{esrnn_forward.1} parent=0 // pred_fallthru
    _
  // Predicated region
  $region50: #{esrnn_forward.1} parent=0 // pred_check
    _
  $region51: #{esrnn_forward.1} parent=0 // pred_check_branch
    %47 = sbr.rel (0) target = $region53
  $region52: #{esrnn_forward.1} parent=0 // pred_region
    _
  $region53: #{esrnn_forward.1} parent=0 // pred_fallthru
    _
  // Predicated region
  $region54: #{esrnn_forward.1} parent=0 // pred_check
    _
  $region55: #{esrnn_forward.1} parent=0 // pred_check_branch
    %49 = sbr.rel (0) target = $region57
  $region56: #{esrnn_forward.1} parent=0 // pred_region
    _
  $region57: #{esrnn_forward.1} parent=0 // pred_fallthru
    _
  // Predicated region
  $region58: #{esrnn_forward.1} parent=0 // pred_check
    _
  $region59: #{esrnn_forward.1} parent=0 // pred_check_branch
    %51 = sbr.rel (0) target = $region61
  $region60: #{esrnn_forward.1} parent=0 // pred_region
    _
  $region61: #{esrnn_forward.1} parent=0 // pred_fallthru
    _
  // Predicated region
  $region62: #{esrnn_forward.1} parent=0 // pred_check
    _
  $region63: #{esrnn_forward.1} parent=0 // pred_check_branch
    %53 = sbr.rel (0) target = $region65
  $region64: #{esrnn_forward.1} parent=0 // pred_region
    _
  $region65: #{esrnn_forward.1} parent=0 // pred_fallthru
    _
  // Predicated region
  $region66: #{esrnn_forward.1} parent=0 // pred_check
    _
  $region67: #{esrnn_forward.1} parent=0 // pred_check_branch
    %55 = sbr.rel (0) target = $region69
  $region68: #{esrnn_forward.1} parent=0 // pred_region
    _
  $region69: #{esrnn_forward.1} parent=0 // pred_fallthru
    _
  %v56 = vld [vmem:[%s0] sm:$0xff]
  %v57 = vld [vmem:[%s0 + $0x8] sm:$0x1f]
  %v58 = vld [vmem:[%s1] sm:$0xf]
  %v59 = vld [vmem:[%s3] sm:$0x1]
  %v61 = vlaneseq
  %v62 = vshrl.u32 %v61, 7
  %v63 = vsub.s32 0, %v62
  %v64 = vrot.slane %v59, %v63
  %vm66 = vcmask 31744
  %v68 = vsel %vm66, %v56, 0
  %v71 = vsel %vm66, %v57, 0
  %vm73 = vcmask 1043456
  %v75 = vsel %vm73, %v58, 0
  %77 = vmatprep.subr.mxu0 0.0
  %78 = vmatpush1.msra.mxu0 %v75
  %79 = vmatprep.subr.mxu0 0.0
  %80 = vmatpush1.msra.mxu0 0.0
  %81 = vmatprep.subr.mxu0 0.0
  %82 = vmatpush1.msra.mxu0 0.0
  %83 = vmatprep.subr.mxu0 0.0
  %84 = vmatpush1.msra.mxu0 0.0
  %85 = vmatprep.subr.mxu0 0.0
  %86 = vmatpush1.msra.mxu0 0.0
  %87 = vmatprep.subr.mxu0 0.0
  %88 = vmatpush1.msra.mxu0 0.0
  %89 = vmatprep.subr.mxu0 0.0
  %90 = vmatpush1.msra.mxu0 0.0
  %91 = vmatprep.subr.mxu0 0.0
  %92 = vmatpush1.msra.mxu0 0.0
  %93 = vmatprep.subr.mxu0 0.0
  %94 = vmatpush1.msra.mxu0 0.0
  %95 = vmatprep.subr.mxu0 0.0
  %96 = vmatpush1.msra.mxu0 0.0
  %97 = vmatprep.subr.mxu0 0.0
  %98 = vmatpush1.msra.mxu0 0.0
  %99 = vmatprep.subr.mxu0 0.0
  %100 = vmatpush1.msra.mxu0 0.0
  %101 = vmatprep.subr.mxu0 0.0
  %102 = vmatpush1.msra.mxu0 0.0
  %103 = vmatprep.subr.mxu0 0.0
  %104 = vmatpush1.msra.mxu0 0.0
  %105 = vmatprep.subr.mxu0 0.0
  %106 = vmatpush1.msra.mxu0 0.0
  %107 = vmatprep.subr.mxu0 0.0
  %108 = vmatpush1.msra.mxu0 0.0
  %109 = vmatprep.subr.mxu0 0.0
  %110 = vmatpush1.msra.mxu0 0.0
  %111 = vmatprep.subr.mxu0 0.0
  %112 = vmatpush1.msra.mxu0 0.0
  %113 = vmatprep.subr.mxu0 0.0
  %114 = vmatpush1.msra.mxu0 0.0
  %115 = vmatprep.subr.mxu0 0.0
  %116 = vmatpush1.msra.mxu0 0.0
  %117 = vmatprep.subr.mxu0 0.0
  %118 = vmatpush1.msra.mxu0 0.0
  %119 = vmatprep.subr.mxu0 0.0
  %120 = vmatpush1.msra.mxu0 0.0
  %121 = vmatprep.subr.mxu0 0.0
  %122 = vmatpush1.msra.mxu0 0.0
  %123 = vmatprep.subr.mxu0 0.0
  %124 = vmatpush1.msra.mxu0 0.0
  %125 = vmatprep.subr.mxu0 0.0
  %126 = vmatpush1.msra.mxu0 0.0
  %127 = vmatprep.subr.mxu0 0.0
  %128 = vmatpush1.msra.mxu0 0.0
  %129 = vmatprep.subr.mxu0 0.0
  %130 = vmatpush1.msra.mxu0 0.0
  %131 = vmatprep.subr.mxu0 0.0
  %132 = vmatpush1.msra.mxu0 0.0
  %133 = vmatprep.subr.mxu0 0.0
  %134 = vmatpush1.msra.mxu0 0.0
  %135 = vmatprep.subr.mxu0 0.0
  %136 = vmatpush1.msra.mxu0 0.0
  %137 = vmatprep.subr.mxu0 0.0
  %138 = vmatpush1.msra.mxu0 0.0
  %139 = vmatprep.subr.mxu0 0.0
  %140 = vmatpush1.msra.mxu0 0.0
  %141 = vmatprep.mubr.f32.mxu0 0.0
  %142 = vmatmul.mubr.f32.gmra.mrb[0].mxu0 %v68
  %v143 = vpop.f32.mrb[0].mxu0
  %v144 = vadd.f32 %v64, %v143
  %v145 = vpop.f32.mrb[0].mxu0
  %146 = vmatprep.mubr.f32.mxu0 0.0
  %147 = vmatmul.mubr.f32.gmra.mrb[0].mxu0 %v71
  %v148 = vpop.f32.mrb[0].mxu0
  %v149 = vadd.f32 %v64, %v148
  %v150 = vpop.f32.mrb[0].mxu0
  %151 = vdwg.mxu0
  %152 = vst [vmem:[#allocation5] sm:$0xff] %v144
  %153 = vst [vmem:[#allocation5 + $0x8] sm:$0x1f] %v149
  %v154 = vld [vmem:[%s2] sm:$0xff]
  %v155 = vld [vmem:[%s2 + $0x8] sm:$0xff]
  %v156 = vld [vmem:[%s2 + $0x10] sm:$0xff]
  %v157 = vld [vmem:[%s2 + $0x18] sm:$0xff]
  %v158 = vld [vmem:[#allocation5] sm:$0x1]
  %v159 = vxor.u32 %v158, 2147483648
  %v160 = vmul.f32 %v159, 1.442695
  %v161 = vpow.pop %v160
  %v162 = vadd.f32 %v161, 1.0
  %v163 = vrcp.pop %v162
  %v164 = vmul.f32 1.0, %v163
  %v165 = vtanh.pop %v158
  %167 = vrot.lane.b32.xlu0 %v165, 64
  %v168 = vpop.permute.xlu0 %167
  %v170 = vmul.f32 %v164, %v168
  %vm171 = vcmask 253952
  %172 = vst.msk [vmem:[#allocation6] sm:$0x1] %vm171, %v170
  %v173 = vtanh.pop %v170
  %175 = vrot.lane.b32.xlu0 %v173, 96
  %v176 = vpop.permute.xlu0 %175
  %v178 = vmul.f32 %v164, %v176
  %180 = vrot.lane.b32.xlu0 %v178, 32
  %v181 = vpop.permute.xlu0 %180
  %183 = vst.msk [vmem:[#allocation2] sm:$0x1] %vm171, %v181
  %v184 = vld [vmem:[#allocation5 + $0x1] sm:$0x1]
  %v185 = vld [vmem:[#allocation2] sm:$0x1]
  %vm186 = vcmask 261120
  %v188 = vsel %vm186, %v185, 0
  %190 = vmatprep.subr.mxu0 0.0
  %191 = vmatpush1.msra.mxu0 %v154
  %192 = vmatprep.subr.mxu0 0.0
  %193 = vmatpush1.msra.mxu0 %v155
  %194 = vmatprep.subr.mxu0 0.0
  %195 = vmatpush1.msra.mxu0 %v156
  %196 = vmatprep.subr.mxu0 0.0
  %197 = vmatpush1.msra.mxu0 %v157
  %198 = vmatprep.subr.mxu0 0.0
  %199 = vmatpush1.msra.mxu0 0.0
  %200 = vmatprep.subr.mxu0 0.0
  %201 = vmatpush1.msra.mxu0 0.0
  %202 = vmatprep.subr.mxu0 0.0
  %203 = vmatpush1.msra.mxu0 0.0
  %204 = vmatprep.subr.mxu0 0.0
  %205 = vmatpush1.msra.mxu0 0.0
  %206 = vmatprep.subr.mxu0 0.0
  %207 = vmatpush1.msra.mxu0 0.0
  %208 = vmatprep.subr.mxu0 0.0
  %209 = vmatpush1.msra.mxu0 0.0
  %210 = vmatprep.subr.mxu0 0.0
  %211 = vmatpush1.msra.mxu0 0.0
  %212 = vmatprep.subr.mxu0 0.0
  %213 = vmatpush1.msra.mxu0 0.0
  %214 = vmatprep.subr.mxu0 0.0
  %215 = vmatpush1.msra.mxu0 0.0
  %216 = vmatprep.subr.mxu0 0.0
  %217 = vmatpush1.msra.mxu0 0.0
  %218 = vmatprep.subr.mxu0 0.0
  %219 = vmatpush1.msra.mxu0 0.0
  %220 = vmatprep.subr.mxu0 0.0
  %221 = vmatpush1.msra.mxu0 0.0
  %222 = vmatprep.subr.mxu0 0.0
  %223 = vmatpush1.msra.mxu0 0.0
  %224 = vmatprep.subr.mxu0 0.0
  %225 = vmatpush1.msra.mxu0 0.0
  %226 = vmatprep.subr.mxu0 0.0
  %227 = vmatpush1.msra.mxu0 0.0
  %228 = vmatprep.subr.mxu0 0.0
  %229 = vmatpush1.msra.mxu0 0.0
  %230 = vmatprep.subr.mxu0 0.0
  %231 = vmatpush1.msra.mxu0 0.0
  %232 = vmatprep.subr.mxu0 0.0
  %233 = vmatpush1.msra.mxu0 0.0
  %234 = vmatprep.subr.mxu0 0.0
  %235 = vmatpush1.msra.mxu0 0.0
  %236 = vmatprep.subr.mxu0 0.0
  %237 = vmatpush1.msra.mxu0 0.0
  %238 = vmatprep.subr.mxu0 0.0
  %239 = vmatpush1.msra.mxu0 0.0
  %240 = vmatprep.subr.mxu0 0.0
  %241 = vmatpush1.msra.mxu0 0.0
  %242 = vmatprep.subr.mxu0 0.0
  %243 = vmatpush1.msra.mxu0 0.0
  %244 = vmatprep.subr.mxu0 0.0
  %245 = vmatpush1.msra.mxu0 0.0
  %246 = vmatprep.subr.mxu0 0.0
  %247 = vmatpush1.msra.mxu0 0.0
  %248 = vmatprep.subr.mxu0 0.0
  %249 = vmatpush1.msra.mxu0 0.0
  %250 = vmatprep.subr.mxu0 0.0
  %251 = vmatpush1.msra.mxu0 0.0
  %252 = vmatprep.subr.mxu0 0.0
  %253 = vmatpush1.msra.mxu0 0.0
  %254 = vmatprep.mubr.f32.mxu0 0.0
  %255 = vmatmul.mubr.f32.gmra.mrb[0].mxu0 %v188
  %v256 = vpop.f32.mrb[0].mxu0
  %v257 = vadd.f32 0.0, %v256
  %v258 = vpop.f32.mrb[0].mxu0
  %259 = vdwg.mxu0
  %v260 = vadd.f32 %v184, %v257
  %v261 = vxor.u32 %v260, 2147483648
  %v262 = vmul.f32 %v261, 1.442695
  %v263 = vpow.pop %v262
  %v264 = vadd.f32 %v263, 1.0
  %v265 = vrcp.pop %v264
  %v266 = vmul.f32 1.0, %v265
  %v267 = vtanh.pop %v260
  %v268 = vld [vmem:[#allocation6] sm:$0x1]
  %270 = vrot.lane.b32.xlu0 %v268, 32
  %v271 = vpop.permute.xlu0 %270
  %v273 = vmul.f32 %v266, %v271
  %275 = vrot.lane.b32.xlu0 %v267, 64
  %v276 = vpop.permute.xlu0 %275
  %v278 = vmul.f32 %v266, %v276
  %280 = vrot.lane.b32.xlu0 %v278, 32
  %v281 = vpop.permute.xlu0 %280
  %v283 = vadd.f32 %v273, %v281
  %285 = vrot.lane.b32.xlu0 %v283, 96
  %v286 = vpop.permute.xlu0 %285
  %288 = vst.msk [vmem:[#allocation6] sm:$0x1] %vm171, %v286
  %v289 = vtanh.pop %v283
  %291 = vrot.lane.b32.xlu0 %v289, 64
  %v292 = vpop.permute.xlu0 %291
  %v294 = vmul.f32 %v266, %v292
  %296 = vrot.lane.b32.xlu0 %v294, 32
  %v297 = vpop.permute.xlu0 %296
  %299 = vst.msk [vmem:[#allocation2 + $0x1] sm:$0x1] %vm171, %v297
  %v300 = vld [vmem:[#allocation5 + $0x2] sm:$0x1]
  %v301 = vld [vmem:[#allocation2 + $0x1] sm:$0x1]
  %v303 = vsel %vm186, %v301, 0
  %305 = vmatprep.subr.mxu0 0.0
  %306 = vmatpush1.msra.mxu0 %v154
  %307 = vmatprep.subr.mxu0 0.0
  %308 = vmatpush1.msra.mxu0 %v155
  %309 = vmatprep.subr.mxu0 0.0
  %310 = vmatpush1.msra.mxu0 %v156
  %311 = vmatprep.subr.mxu0 0.0
  %312 = vmatpush1.msra.mxu0 %v157
  %313 = vmatprep.subr.mxu0 0.0
  %314 = vmatpush1.msra.mxu0 0.0
  %315 = vmatprep.subr.mxu0 0.0
  %316 = vmatpush1.msra.mxu0 0.0
  %317 = vmatprep.subr.mxu0 0.0
  %318 = vmatpush1.msra.mxu0 0.0
  %319 = vmatprep.subr.mxu0 0.0
  %320 = vmatpush1.msra.mxu0 0.0
  %321 = vmatprep.subr.mxu0 0.0
  %322 = vmatpush1.msra.mxu0 0.0
  %323 = vmatprep.subr.mxu0 0.0
  %324 = vmatpush1.msra.mxu0 0.0
  %325 = vmatprep.subr.mxu0 0.0
  %326 = vmatpush1.msra.mxu0 0.0
  %327 = vmatprep.subr.mxu0 0.0
  %328 = vmatpush1.msra.mxu0 0.0
  %329 = vmatprep.subr.mxu0 0.0
  %330 = vmatpush1.msra.mxu0 0.0
  %331 = vmatprep.subr.mxu0 0.0
  %332 = vmatpush1.msra.mxu0 0.0
  %333 = vmatprep.subr.mxu0 0.0
  %334 = vmatpush1.msra.mxu0 0.0
  %335 = vmatprep.subr.mxu0 0.0
  %336 = vmatpush1.msra.mxu0 0.0
  %337 = vmatprep.subr.mxu0 0.0
  %338 = vmatpush1.msra.mxu0 0.0
  %339 = vmatprep.subr.mxu0 0.0
  %340 = vmatpush1.msra.mxu0 0.0
  %341 = vmatprep.subr.mxu0 0.0
  %342 = vmatpush1.msra.mxu0 0.0
  %343 = vmatprep.subr.mxu0 0.0
  %344 = vmatpush1.msra.mxu0 0.0
  %345 = vmatprep.subr.mxu0 0.0
  %346 = vmatpush1.msra.mxu0 0.0
  %347 = vmatprep.subr.mxu0 0.0
  %348 = vmatpush1.msra.mxu0 0.0
  %349 = vmatprep.subr.mxu0 0.0
  %350 = vmatpush1.msra.mxu0 0.0
  %351 = vmatprep.subr.mxu0 0.0
  %352 = vmatpush1.msra.mxu0 0.0
  %353 = vmatprep.subr.mxu0 0.0
  %354 = vmatpush1.msra.mxu0 0.0
  %355 = vmatprep.subr.mxu0 0.0
  %356 = vmatpush1.msra.mxu0 0.0
  %357 = vmatprep.subr.mxu0 0.0
  %358 = vmatpush1.msra.mxu0 0.0
  %359 = vmatprep.subr.mxu0 0.0
  %360 = vmatpush1.msra.mxu0 0.0
  %361 = vmatprep.subr.mxu0 0.0
  %362 = vmatpush1.msra.mxu0 0.0
  %363 = vmatprep.subr.mxu0 0.0
  %364 = vmatpush1.msra.mxu0 0.0
  %365 = vmatprep.subr.mxu0 0.0
  %366 = vmatpush1.msra.mxu0 0.0
  %367 = vmatprep.subr.mxu0 0.0
  %368 = vmatpush1.msra.mxu0 0.0
  %369 = vmatprep.mubr.f32.mxu0 0.0
  %370 = vmatmul.mubr.f32.gmra.mrb[0].mxu0 %v303
  %v371 = vpop.f32.mrb[0].mxu0
  %v372 = vadd.f32 0.0, %v371
  %v373 = vpop.f32.mrb[0].mxu0
  %374 = vdwg.mxu0
  %v375 = vadd.f32 %v300, %v372
  %v376 = vxor.u32 %v375, 2147483648
  %v377 = vmul.f32 %v376, 1.442695
  %v378 = vpow.pop %v377
  %v379 = vadd.f32 %v378, 1.0
  %v380 = vrcp.pop %v379
  %v381 = vmul.f32 1.0, %v380
  %v382 = vtanh.pop %v375
  %v383 = vld [vmem:[#allocation6] sm:$0x1]
  %385 = vrot.lane.b32.xlu0 %v383, 32
  %v386 = vpop.permute.xlu0 %385
  %v388 = vmul.f32 %v381, %v386
  %390 = vrot.lane.b32.xlu0 %v382, 64
  %v391 = vpop.permute.xlu0 %390
  %v393 = vmul.f32 %v381, %v391
  %395 = vrot.lane.b32.xlu0 %v393, 32
  %v396 = vpop.permute.xlu0 %395
  %v398 = vadd.f32 %v388, %v396
  %400 = vrot.lane.b32.xlu0 %v398, 96
  %v401 = vpop.permute.xlu0 %400
  %403 = vst.msk [vmem:[#allocation6] sm:$0x1] %vm171, %v401
  %v404 = vtanh.pop %v398
  %406 = vrot.lane.b32.xlu0 %v404, 64
  %v407 = vpop.permute.xlu0 %406
  %v409 = vmul.f32 %v381, %v407
  %411 = vrot.lane.b32.xlu0 %v409, 32
  %v412 = vpop.permute.xlu0 %411
  %414 = vst.msk [vmem:[#allocation2 + $0x2] sm:$0x1] %vm171, %v412
  %v415 = vld [vmem:[#allocation5 + $0x3] sm:$0x1]
  %v416 = vld [vmem:[#allocation2 + $0x2] sm:$0x1]
  %v418 = vsel %vm186, %v416, 0
  %420 = vmatprep.subr.mxu0 0.0
  %421 = vmatpush1.msra.mxu0 %v154
  %422 = vmatprep.subr.mxu0 0.0
  %423 = vmatpush1.msra.mxu0 %v155
  %424 = vmatprep.subr.mxu0 0.0
  %425 = vmatpush1.msra.mxu0 %v156
  %426 = vmatprep.subr.mxu0 0.0
  %427 = vmatpush1.msra.mxu0 %v157
  %428 = vmatprep.subr.mxu0 0.0
  %429 = vmatpush1.msra.mxu0 0.0
  %430 = vmatprep.subr.mxu0 0.0
  %431 = vmatpush1.msra.mxu0 0.0
  %432 = vmatprep.subr.mxu0 0.0
  %433 = vmatpush1.msra.mxu0 0.0
  %434 = vmatprep.subr.mxu0 0.0
  %435 = vmatpush1.msra.mxu0 0.0
  %436 = vmatprep.subr.mxu0 0.0
  %437 = vmatpush1.msra.mxu0 0.0
  %438 = vmatprep.subr.mxu0 0.0
  %439 = vmatpush1.msra.mxu0 0.0
  %440 = vmatprep.subr.mxu0 0.0
  %441 = vmatpush1.msra.mxu0 0.0
  %442 = vmatprep.subr.mxu0 0.0
  %443 = vmatpush1.msra.mxu0 0.0
  %444 = vmatprep.subr.mxu0 0.0
  %445 = vmatpush1.msra.mxu0 0.0
  %446 = vmatprep.subr.mxu0 0.0
  %447 = vmatpush1.msra.mxu0 0.0
  %448 = vmatprep.subr.mxu0 0.0
  %449 = vmatpush1.msra.mxu0 0.0
  %450 = vmatprep.subr.mxu0 0.0
  %451 = vmatpush1.msra.mxu0 0.0
  %452 = vmatprep.subr.mxu0 0.0
  %453 = vmatpush1.msra.mxu0 0.0
  %454 = vmatprep.subr.mxu0 0.0
  %455 = vmatpush1.msra.mxu0 0.0
  %456 = vmatprep.subr.mxu0 0.0
  %457 = vmatpush1.msra.mxu0 0.0
  %458 = vmatprep.subr.mxu0 0.0
  %459 = vmatpush1.msra.mxu0 0.0
  %460 = vmatprep.subr.mxu0 0.0
  %461 = vmatpush1.msra.mxu0 0.0
  %462 = vmatprep.subr.mxu0 0.0
  %463 = vmatpush1.msra.mxu0 0.0
  %464 = vmatprep.subr.mxu0 0.0
  %465 = vmatpush1.msra.mxu0 0.0
  %466 = vmatprep.subr.mxu0 0.0
  %467 = vmatpush1.msra.mxu0 0.0
  %468 = vmatprep.subr.mxu0 0.0
  %469 = vmatpush1.msra.mxu0 0.0
  %470 = vmatprep.subr.mxu0 0.0
  %471 = vmatpush1.msra.mxu0 0.0
  %472 = vmatprep.subr.mxu0 0.0
  %473 = vmatpush1.msra.mxu0 0.0
  %474 = vmatprep.subr.mxu0 0.0
  %475 = vmatpush1.msra.mxu0 0.0
  %476 = vmatprep.subr.mxu0 0.0
  %477 = vmatpush1.msra.mxu0 0.0
  %478 = vmatprep.subr.mxu0 0.0
  %479 = vmatpush1.msra.mxu0 0.0
  %480 = vmatprep.subr.mxu0 0.0
  %481 = vmatpush1.msra.mxu0 0.0
  %482 = vmatprep.subr.mxu0 0.0
  %483 = vmatpush1.msra.mxu0 0.0
  %484 = vmatprep.mubr.f32.mxu0 0.0
  %485 = vmatmul.mubr.f32.gmra.mrb[0].mxu0 %v418
  %v486 = vpop.f32.mrb[0].mxu0
  %v487 = vadd.f32 0.0, %v486
  %v488 = vpop.f32.mrb[0].mxu0
  %489 = vdwg.mxu0
  %v490 = vadd.f32 %v415, %v487
  %v491 = vxor.u32 %v490, 2147483648
  %v492 = vmul.f32 %v491, 1.442695
  %v493 = vpow.pop %v492
  %v494 = vadd.f32 %v493, 1.0
  %v495 = vrcp.pop %v494
  %v496 = vmul.f32 1.0, %v495
  %v497 = vtanh.pop %v490
  %v498 = vld [vmem:[#allocation6] sm:$0x1]
  %500 = vrot.lane.b32.xlu0 %v498, 32
  %v501 = vpop.permute.xlu0 %500
  %v503 = vmul.f32 %v496, %v501
  %505 = vrot.lane.b32.xlu0 %v497, 64
  %v506 = vpop.permute.xlu0 %505
  %v508 = vmul.f32 %v496, %v506
  %510 = vrot.lane.b32.xlu0 %v508, 32
  %v511 = vpop.permute.xlu0 %510
  %v513 = vadd.f32 %v503, %v511
  %515 = vrot.lane.b32.xlu0 %v513, 96
  %v516 = vpop.permute.xlu0 %515
  %518 = vst.msk [vmem:[#allocation6] sm:$0x1] %vm171, %v516
  %v519 = vtanh.pop %v513
  %521 = vrot.lane.b32.xlu0 %v519, 64
  %v522 = vpop.permute.xlu0 %521
  %v524 = vmul.f32 %v496, %v522
  %526 = vrot.lane.b32.xlu0 %v524, 32
  %v527 = vpop.permute.xlu0 %526
  %529 = vst.msk [vmem:[#allocation2 + $0x3] sm:$0x1] %vm171, %v527
  %v530 = vld [vmem:[#allocation5 + $0x4] sm:$0x1]
  %v531 = vld [vmem:[#allocation2 + $0x3] sm:$0x1]
  %v533 = vsel %vm186, %v531, 0
  %535 = vmatprep.subr.mxu0 0.0
  %536 = vmatpush1.msra.mxu0 %v154
  %537 = vmatprep.subr.mxu0 0.0
  %538 = vmatpush1.msra.mxu0 %v155
  %539 = vmatprep.subr.mxu0 0.0
  %540 = vmatpush1.msra.mxu0 %v156
  %541 = vmatprep.subr.mxu0 0.0
  %542 = vmatpush1.msra.mxu0 %v157
  %543 = vmatprep.subr.mxu0 0.0
  %544 = vmatpush1.msra.mxu0 0.0
  %545 = vmatprep.subr.mxu0 0.0
  %546 = vmatpush1.msra.mxu0 0.0
  %547 = vmatprep.subr.mxu0 0.0
  %548 = vmatpush1.msra.mxu0 0.0
  %549 = vmatprep.subr.mxu0 0.0
  %550 = vmatpush1.msra.mxu0 0.0
  %551 = vmatprep.subr.mxu0 0.0
  %552 = vmatpush1.msra.mxu0 0.0
  %553 = vmatprep.subr.mxu0 0.0
  %554 = vmatpush1.msra.mxu0 0.0
  %555 = vmatprep.subr.mxu0 0.0
  %556 = vmatpush1.msra.mxu0 0.0
  %557 = vmatprep.subr.mxu0 0.0
  %558 = vmatpush1.msra.mxu0 0.0
  %559 = vmatprep.subr.mxu0 0.0
  %560 = vmatpush1.msra.mxu0 0.0
  %561 = vmatprep.subr.mxu0 0.0
  %562 = vmatpush1.msra.mxu0 0.0
  %563 = vmatprep.subr.mxu0 0.0
  %564 = vmatpush1.msra.mxu0 0.0
  %565 = vmatprep.subr.mxu0 0.0
  %566 = vmatpush1.msra.mxu0 0.0
  %567 = vmatprep.subr.mxu0 0.0
  %568 = vmatpush1.msra.mxu0 0.0
  %569 = vmatprep.subr.mxu0 0.0
  %570 = vmatpush1.msra.mxu0 0.0
  %571 = vmatprep.subr.mxu0 0.0
  %572 = vmatpush1.msra.mxu0 0.0
  %573 = vmatprep.subr.mxu0 0.0
  %574 = vmatpush1.msra.mxu0 0.0
  %575 = vmatprep.subr.mxu0 0.0
  %576 = vmatpush1.msra.mxu0 0.0
  %577 = vmatprep.subr.mxu0 0.0
  %578 = vmatpush1.msra.mxu0 0.0
  %579 = vmatprep.subr.mxu0 0.0
  %580 = vmatpush1.msra.mxu0 0.0
  %581 = vmatprep.subr.mxu0 0.0
  %582 = vmatpush1.msra.mxu0 0.0
  %583 = vmatprep.subr.mxu0 0.0
  %584 = vmatpush1.msra.mxu0 0.0
  %585 = vmatprep.subr.mxu0 0.0
  %586 = vmatpush1.msra.mxu0 0.0
  %587 = vmatprep.subr.mxu0 0.0
  %588 = vmatpush1.msra.mxu0 0.0
  %589 = vmatprep.subr.mxu0 0.0
  %590 = vmatpush1.msra.mxu0 0.0
  %591 = vmatprep.subr.mxu0 0.0
  %592 = vmatpush1.msra.mxu0 0.0
  %593 = vmatprep.subr.mxu0 0.0
  %594 = vmatpush1.msra.mxu0 0.0
  %595 = vmatprep.subr.mxu0 0.0
  %596 = vmatpush1.msra.mxu0 0.0
  %597 = vmatprep.subr.mxu0 0.0
  %598 = vmatpush1.msra.mxu0 0.0
  %599 = vmatprep.mubr.f32.mxu0 0.0
  %600 = vmatmul.mubr.f32.gmra.mrb[0].mxu0 %v533
  %v601 = vpop.f32.mrb[0].mxu0
  %v602 = vadd.f32 0.0, %v601
  %v603 = vpop.f32.mrb[0].mxu0
  %604 = vdwg.mxu0
  %v605 = vadd.f32 %v530, %v602
  %v606 = vxor.u32 %v605, 2147483648
  %v607 = vmul.f32 %v606, 1.442695
  %v608 = vpow.pop %v607
  %v609 = vadd.f32 %v608, 1.0
  %v610 = vrcp.pop %v609
  %v611 = vmul.f32 1.0, %v610
  %v612 = vtanh.pop %v605
  %v613 = vld [vmem:[#allocation6] sm:$0x1]
  %615 = vrot.lane.b32.xlu0 %v613, 32
  %v616 = vpop.permute.xlu0 %615
  %v618 = vmul.f32 %v611, %v616
  %620 = vrot.lane.b32.xlu0 %v612, 64
  %v621 = vpop.permute.xlu0 %620
  %v623 = vmul.f32 %v611, %v621
  %625 = vrot.lane.b32.xlu0 %v623, 32
  %v626 = vpop.permute.xlu0 %625
  %v628 = vadd.f32 %v618, %v626
  %630 = vrot.lane.b32.xlu0 %v628, 96
  %v631 = vpop.permute.xlu0 %630
  %633 = vst.msk [vmem:[#allocation6] sm:$0x1] %vm171, %v631
  %v634 = vtanh.pop %v628
  %636 = vrot.lane.b32.xlu0 %v634, 64
  %v637 = vpop.permute.xlu0 %636
  %v639 = vmul.f32 %v611, %v637
  %641 = vrot.lane.b32.xlu0 %v639, 32
  %v642 = vpop.permute.xlu0 %641
  %644 = vst.msk [vmem:[#allocation2 + $0x4] sm:$0x1] %vm171, %v642
  %v645 = vld [vmem:[#allocation5 + $0x5] sm:$0x1]
  %v646 = vld [vmem:[#allocation2 + $0x4] sm:$0x1]
  %v648 = vsel %vm186, %v646, 0
  %650 = vmatprep.subr.mxu0 0.0
  %651 = vmatpush1.msra.mxu0 %v154
  %652 = vmatprep.subr.mxu0 0.0
  %653 = vmatpush1.msra.mxu0 %v155
  %654 = vmatprep.subr.mxu0 0.0
  %655 = vmatpush1.msra.mxu0 %v156
  %656 = vmatprep.subr.mxu0 0.0
  %657 = vmatpush1.msra.mxu0 %v157
  %658 = vmatprep.subr.mxu0 0.0
  %659 = vmatpush1.msra.mxu0 0.0
  %660 = vmatprep.subr.mxu0 0.0
  %661 = vmatpush1.msra.mxu0 0.0
  %662 = vmatprep.subr.mxu0 0.0
  %663 = vmatpush1.msra.mxu0 0.0
  %664 = vmatprep.subr.mxu0 0.0
  %665 = vmatpush1.msra.mxu0 0.0
  %666 = vmatprep.subr.mxu0 0.0
  %667 = vmatpush1.msra.mxu0 0.0
  %668 = vmatprep.subr.mxu0 0.0
  %669 = vmatpush1.msra.mxu0 0.0
  %670 = vmatprep.subr.mxu0 0.0
  %671 = vmatpush1.msra.mxu0 0.0
  %672 = vmatprep.subr.mxu0 0.0
  %673 = vmatpush1.msra.mxu0 0.0
  %674 = vmatprep.subr.mxu0 0.0
  %675 = vmatpush1.msra.mxu0 0.0
  %676 = vmatprep.subr.mxu0 0.0
  %677 = vmatpush1.msra.mxu0 0.0
  %678 = vmatprep.subr.mxu0 0.0
  %679 = vmatpush1.msra.mxu0 0.0
  %680 = vmatprep.subr.mxu0 0.0
  %681 = vmatpush1.msra.mxu0 0.0
  %682 = vmatprep.subr.mxu0 0.0
  %683 = vmatpush1.msra.mxu0 0.0
  %684 = vmatprep.subr.mxu0 0.0
  %685 = vmatpush1.msra.mxu0 0.0
  %686 = vmatprep.subr.mxu0 0.0
  %687 = vmatpush1.msra.mxu0 0.0
  %688 = vmatprep.subr.mxu0 0.0
  %689 = vmatpush1.msra.mxu0 0.0
  %690 = vmatprep.subr.mxu0 0.0
  %691 = vmatpush1.msra.mxu0 0.0
  %692 = vmatprep.subr.mxu0 0.0
  %693 = vmatpush1.msra.mxu0 0.0
  %694 = vmatprep.subr.mxu0 0.0
  %695 = vmatpush1.msra.mxu0 0.0
  %696 = vmatprep.subr.mxu0 0.0
  %697 = vmatpush1.msra.mxu0 0.0
  %698 = vmatprep.subr.mxu0 0.0
  %699 = vmatpush1.msra.mxu0 0.0
  %700 = vmatprep.subr.mxu0 0.0
  %701 = vmatpush1.msra.mxu0 0.0
  %702 = vmatprep.subr.mxu0 0.0
  %703 = vmatpush1.msra.mxu0 0.0
  %704 = vmatprep.subr.mxu0 0.0
  %705 = vmatpush1.msra.mxu0 0.0
  %706 = vmatprep.subr.mxu0 0.0
  %707 = vmatpush1.msra.mxu0 0.0
  %708 = vmatprep.subr.mxu0 0.0
  %709 = vmatpush1.msra.mxu0 0.0
  %710 = vmatprep.subr.mxu0 0.0
  %711 = vmatpush1.msra.mxu0 0.0
  %712 = vmatprep.subr.mxu0 0.0
  %713 = vmatpush1.msra.mxu0 0.0
  %714 = vmatprep.mubr.f32.mxu0 0.0
  %715 = vmatmul.mubr.f32.gmra.mrb[0].mxu0 %v648
  %v716 = vpop.f32.mrb[0].mxu0
  %v717 = vadd.f32 0.0, %v716
  %v718 = vpop.f32.mrb[0].mxu0
  %719 = vdwg.mxu0
  %v720 = vadd.f32 %v645, %v717
  %v721 = vxor.u32 %v720, 2147483648
  %v722 = vmul.f32 %v721, 1.442695
  %v723 = vpow.pop %v722
  %v724 = vadd.f32 %v723, 1.0
  %v725 = vrcp.pop %v724
  %v726 = vmul.f32 1.0, %v725
  %v727 = vtanh.pop %v720
  %v728 = vld [vmem:[#allocation6] sm:$0x1]
  %730 = vrot.lane.b32.xlu0 %v728, 32
  %v731 = vpop.permute.xlu0 %730
  %v733 = vmul.f32 %v726, %v731
  %735 = vrot.lane.b32.xlu0 %v727, 64
  %v736 = vpop.permute.xlu0 %735
  %v738 = vmul.f32 %v726, %v736
  %740 = vrot.lane.b32.xlu0 %v738, 32
  %v741 = vpop.permute.xlu0 %740
  %v743 = vadd.f32 %v733, %v741
  %745 = vrot.lane.b32.xlu0 %v743, 96
  %v746 = vpop.permute.xlu0 %745
  %748 = vst.msk [vmem:[#allocation6] sm:$0x1] %vm171, %v746
  %v749 = vtanh.pop %v743
  %751 = vrot.lane.b32.xlu0 %v749, 64
  %v752 = vpop.permute.xlu0 %751
  %v754 = vmul.f32 %v726, %v752
  %756 = vrot.lane.b32.xlu0 %v754, 32
  %v757 = vpop.permute.xlu0 %756
  %759 = vst.msk [vmem:[#allocation2 + $0x5] sm:$0x1] %vm171, %v757
  %v760 = vld [vmem:[#allocation5 + $0x6] sm:$0x1]
  %v761 = vld [vmem:[#allocation2 + $0x5] sm:$0x1]
  %v763 = vsel %vm186, %v761, 0
  %765 = vmatprep.subr.mxu0 0.0
  %766 = vmatpush1.msra.mxu0 %v154
  %767 = vmatprep.subr.mxu0 0.0
  %768 = vmatpush1.msra.mxu0 %v155
  %769 = vmatprep.subr.mxu0 0.0
  %770 = vmatpush1.msra.mxu0 %v156
  %771 = vmatprep.subr.mxu0 0.0
  %772 = vmatpush1.msra.mxu0 %v157
  %773 = vmatprep.subr.mxu0 0.0
  %774 = vmatpush1.msra.mxu0 0.0
  %775 = vmatprep.subr.mxu0 0.0
  %776 = vmatpush1.msra.mxu0 0.0
  %777 = vmatprep.subr.mxu0 0.0
  %778 = vmatpush1.msra.mxu0 0.0
  %779 = vmatprep.subr.mxu0 0.0
  %780 = vmatpush1.msra.mxu0 0.0
  %781 = vmatprep.subr.mxu0 0.0
  %782 = vmatpush1.msra.mxu0 0.0
  %783 = vmatprep.subr.mxu0 0.0
  %784 = vmatpush1.msra.mxu0 0.0
  %785 = vmatprep.subr.mxu0 0.0
  %786 = vmatpush1.msra.mxu0 0.0
  %787 = vmatprep.subr.mxu0 0.0
  %788 = vmatpush1.msra.mxu0 0.0
  %789 = vmatprep.subr.mxu0 0.0
  %790 = vmatpush1.msra.mxu0 0.0
  %791 = vmatprep.subr.mxu0 0.0
  %792 = vmatpush1.msra.mxu0 0.0
  %793 = vmatprep.subr.mxu0 0.0
  %794 = vmatpush1.msra.mxu0 0.0
  %795 = vmatprep.subr.mxu0 0.0
  %796 = vmatpush1.msra.mxu0 0.0
  %797 = vmatprep.subr.mxu0 0.0
  %798 = vmatpush1.msra.mxu0 0.0
  %799 = vmatprep.subr.mxu0 0.0
  %800 = vmatpush1.msra.mxu0 0.0
  %801 = vmatprep.subr.mxu0 0.0
  %802 = vmatpush1.msra.mxu0 0.0
  %803 = vmatprep.subr.mxu0 0.0
  %804 = vmatpush1.msra.mxu0 0.0
  %805 = vmatprep.subr.mxu0 0.0
  %806 = vmatpush1.msra.mxu0 0.0
  %807 = vmatprep.subr.mxu0 0.0
  %808 = vmatpush1.msra.mxu0 0.0
  %809 = vmatprep.subr.mxu0 0.0
  %810 = vmatpush1.msra.mxu0 0.0
  %811 = vmatprep.subr.mxu0 0.0
  %812 = vmatpush1.msra.mxu0 0.0
  %813 = vmatprep.subr.mxu0 0.0
  %814 = vmatpush1.msra.mxu0 0.0
  %815 = vmatprep.subr.mxu0 0.0
  %816 = vmatpush1.msra.mxu0 0.0
  %817 = vmatprep.subr.mxu0 0.0
  %818 = vmatpush1.msra.mxu0 0.0
  %819 = vmatprep.subr.mxu0 0.0
  %820 = vmatpush1.msra.mxu0 0.0
  %821 = vmatprep.subr.mxu0 0.0
  %822 = vmatpush1.msra.mxu0 0.0
  %823 = vmatprep.subr.mxu0 0.0
  %824 = vmatpush1.msra.mxu0 0.0
  %825 = vmatprep.subr.mxu0 0.0
  %826 = vmatpush1.msra.mxu0 0.0
  %827 = vmatprep.subr.mxu0 0.0
  %828 = vmatpush1.msra.mxu0 0.0
  %829 = vmatprep.mubr.f32.mxu0 0.0
  %830 = vmatmul.mubr.f32.gmra.mrb[0].mxu0 %v763
  %v831 = vpop.f32.mrb[0].mxu0
  %v832 = vadd.f32 0.0, %v831
  %v833 = vpop.f32.mrb[0].mxu0
  %834 = vdwg.mxu0
  %v835 = vadd.f32 %v760, %v832
  %v836 = vxor.u32 %v835, 2147483648
  %v837 = vmul.f32 %v836, 1.442695
  %v838 = vpow.pop %v837
  %v839 = vadd.f32 %v838, 1.0
  %v840 = vrcp.pop %v839
  %v841 = vmul.f32 1.0, %v840
  %v842 = vtanh.pop %v835
  %v843 = vld [vmem:[#allocation6] sm:$0x1]
  %845 = vrot.lane.b32.xlu0 %v843, 32
  %v846 = vpop.permute.xlu0 %845
  %v848 = vmul.f32 %v841, %v846
  %850 = vrot.lane.b32.xlu0 %v842, 64
  %v851 = vpop.permute.xlu0 %850
  %v853 = vmul.f32 %v841, %v851
  %855 = vrot.lane.b32.xlu0 %v853, 32
  %v856 = vpop.permute.xlu0 %855
  %v858 = vadd.f32 %v848, %v856
  %860 = vrot.lane.b32.xlu0 %v858, 96
  %v861 = vpop.permute.xlu0 %860
  %863 = vst.msk [vmem:[#allocation6] sm:$0x1] %vm171, %v861
  %v864 = vtanh.pop %v858
  %866 = vrot.lane.b32.xlu0 %v864, 64
  %v867 = vpop.permute.xlu0 %866
  %v869 = vmul.f32 %v841, %v867
  %871 = vrot.lane.b32.xlu0 %v869, 32
  %v872 = vpop.permute.xlu0 %871
  %874 = vst.msk [vmem:[#allocation2 + $0x6] sm:$0x1] %vm171, %v872
  %v875 = vld [vmem:[#allocation5 + $0x7] sm:$0x1]
  %v876 = vld [vmem:[#allocation2 + $0x6] sm:$0x1]
  %v878 = vsel %vm186, %v876, 0
  %880 = vmatprep.subr.mxu0 0.0
  %881 = vmatpush1.msra.mxu0 %v154
  %882 = vmatprep.subr.mxu0 0.0
  %883 = vmatpush1.msra.mxu0 %v155
  %884 = vmatprep.subr.mxu0 0.0
  %885 = vmatpush1.msra.mxu0 %v156
  %886 = vmatprep.subr.mxu0 0.0
  %887 = vmatpush1.msra.mxu0 %v157
  %888 = vmatprep.subr.mxu0 0.0
  %889 = vmatpush1.msra.mxu0 0.0
  %890 = vmatprep.subr.mxu0 0.0
  %891 = vmatpush1.msra.mxu0 0.0
  %892 = vmatprep.subr.mxu0 0.0
  %893 = vmatpush1.msra.mxu0 0.0
  %894 = vmatprep.subr.mxu0 0.0
  %895 = vmatpush1.msra.mxu0 0.0
  %896 = vmatprep.subr.mxu0 0.0
  %897 = vmatpush1.msra.mxu0 0.0
  %898 = vmatprep.subr.mxu0 0.0
  %899 = vmatpush1.msra.mxu0 0.0
  %900 = vmatprep.subr.mxu0 0.0
  %901 = vmatpush1.msra.mxu0 0.0
  %902 = vmatprep.subr.mxu0 0.0
  %903 = vmatpush1.msra.mxu0 0.0
  %904 = vmatprep.subr.mxu0 0.0
  %905 = vmatpush1.msra.mxu0 0.0
  %906 = vmatprep.subr.mxu0 0.0
  %907 = vmatpush1.msra.mxu0 0.0
  %908 = vmatprep.subr.mxu0 0.0
  %909 = vmatpush1.msra.mxu0 0.0
  %910 = vmatprep.subr.mxu0 0.0
  %911 = vmatpush1.msra.mxu0 0.0
  %912 = vmatprep.subr.mxu0 0.0
  %913 = vmatpush1.msra.mxu0 0.0
  %914 = vmatprep.subr.mxu0 0.0
  %915 = vmatpush1.msra.mxu0 0.0
  %916 = vmatprep.subr.mxu0 0.0
  %917 = vmatpush1.msra.mxu0 0.0
  %918 = vmatprep.subr.mxu0 0.0
  %919 = vmatpush1.msra.mxu0 0.0
  %920 = vmatprep.subr.mxu0 0.0
  %921 = vmatpush1.msra.mxu0 0.0
  %922 = vmatprep.subr.mxu0 0.0
  %923 = vmatpush1.msra.mxu0 0.0
  %924 = vmatprep.subr.mxu0 0.0
  %925 = vmatpush1.msra.mxu0 0.0
  %926 = vmatprep.subr.mxu0 0.0
  %927 = vmatpush1.msra.mxu0 0.0
  %928 = vmatprep.subr.mxu0 0.0
  %929 = vmatpush1.msra.mxu0 0.0
  %930 = vmatprep.subr.mxu0 0.0
  %931 = vmatpush1.msra.mxu0 0.0
  %932 = vmatprep.subr.mxu0 0.0
  %933 = vmatpush1.msra.mxu0 0.0
  %934 = vmatprep.subr.mxu0 0.0
  %935 = vmatpush1.msra.mxu0 0.0
  %936 = vmatprep.subr.mxu0 0.0
  %937 = vmatpush1.msra.mxu0 0.0
  %938 = vmatprep.subr.mxu0 0.0
  %939 = vmatpush1.msra.mxu0 0.0
  %940 = vmatprep.subr.mxu0 0.0
  %941 = vmatpush1.msra.mxu0 0.0
  %942 = vmatprep.subr.mxu0 0.0
  %943 = vmatpush1.msra.mxu0 0.0
  %944 = vmatprep.mubr.f32.mxu0 0.0
  %945 = vmatmul.mubr.f32.gmra.mrb[0].mxu0 %v878
  %v946 = vpop.f32.mrb[0].mxu0
  %v947 = vadd.f32 0.0, %v946
  %v948 = vpop.f32.mrb[0].mxu0
  %949 = vdwg.mxu0
  %v950 = vadd.f32 %v875, %v947
  %v951 = vxor.u32 %v950, 2147483648
  %v952 = vmul.f32 %v951, 1.442695
  %v953 = vpow.pop %v952
  %v954 = vadd.f32 %v953, 1.0
  %v955 = vrcp.pop %v954
  %v956 = vmul.f32 1.0, %v955
  %v957 = vtanh.pop %v950
  %v958 = vld [vmem:[#allocation6] sm:$0x1]
  %960 = vrot.lane.b32.xlu0 %v958, 32
  %v961 = vpop.permute.xlu0 %960
  %v963 = vmul.f32 %v956, %v961
  %965 = vrot.lane.b32.xlu0 %v957, 64
  %v966 = vpop.permute.xlu0 %965
  %v968 = vmul.f32 %v956, %v966
  %970 = vrot.lane.b32.xlu0 %v968, 32
  %v971 = vpop.permute.xlu0 %970
  %v973 = vadd.f32 %v963, %v971
  %975 = vrot.lane.b32.xlu0 %v973, 96
  %v976 = vpop.permute.xlu0 %975
  %978 = vst.msk [vmem:[#allocation6] sm:$0x1] %vm171, %v976
  %v979 = vtanh.pop %v973
  %981 = vrot.lane.b32.xlu0 %v979, 64
  %v982 = vpop.permute.xlu0 %981
  %v984 = vmul.f32 %v956, %v982
  %986 = vrot.lane.b32.xlu0 %v984, 32
  %v987 = vpop.permute.xlu0 %986
  %989 = vst.msk [vmem:[#allocation2 + $0x7] sm:$0x1] %vm171, %v987
  %v990 = vld [vmem:[#allocation5 + $0x8] sm:$0x1]
  %v991 = vld [vmem:[#allocation2 + $0x7] sm:$0x1]
  %v993 = vsel %vm186, %v991, 0
  %995 = vmatprep.subr.mxu0 0.0
  %996 = vmatpush1.msra.mxu0 %v154
  %997 = vmatprep.subr.mxu0 0.0
  %998 = vmatpush1.msra.mxu0 %v155
  %999 = vmatprep.subr.mxu0 0.0
  %1000 = vmatpush1.msra.mxu0 %v156
  %1001 = vmatprep.subr.mxu0 0.0
  %1002 = vmatpush1.msra.mxu0 %v157
  %1003 = vmatprep.subr.mxu0 0.0
  %1004 = vmatpush1.msra.mxu0 0.0
  %1005 = vmatprep.subr.mxu0 0.0
  %1006 = vmatpush1.msra.mxu0 0.0
  %1007 = vmatprep.subr.mxu0 0.0
  %1008 = vmatpush1.msra.mxu0 0.0
  %1009 = vmatprep.subr.mxu0 0.0
  %1010 = vmatpush1.msra.mxu0 0.0
  %1011 = vmatprep.subr.mxu0 0.0
  %1012 = vmatpush1.msra.mxu0 0.0
  %1013 = vmatprep.subr.mxu0 0.0
  %1014 = vmatpush1.msra.mxu0 0.0
  %1015 = vmatprep.subr.mxu0 0.0
  %1016 = vmatpush1.msra.mxu0 0.0
  %1017 = vmatprep.subr.mxu0 0.0
  %1018 = vmatpush1.msra.mxu0 0.0
  %1019 = vmatprep.subr.mxu0 0.0
  %1020 = vmatpush1.msra.mxu0 0.0
  %1021 = vmatprep.subr.mxu0 0.0
  %1022 = vmatpush1.msra.mxu0 0.0
  %1023 = vmatprep.subr.mxu0 0.0
  %1024 = vmatpush1.msra.mxu0 0.0
  %1025 = vmatprep.subr.mxu0 0.0
  %1026 = vmatpush1.msra.mxu0 0.0
  %1027 = vmatprep.subr.mxu0 0.0
  %1028 = vmatpush1.msra.mxu0 0.0
  %1029 = vmatprep.subr.mxu0 0.0
  %1030 = vmatpush1.msra.mxu0 0.0
  %1031 = vmatprep.subr.mxu0 0.0
  %1032 = vmatpush1.msra.mxu0 0.0
  %1033 = vmatprep.subr.mxu0 0.0
  %1034 = vmatpush1.msra.mxu0 0.0
  %1035 = vmatprep.subr.mxu0 0.0
  %1036 = vmatpush1.msra.mxu0 0.0
  %1037 = vmatprep.subr.mxu0 0.0
  %1038 = vmatpush1.msra.mxu0 0.0
  %1039 = vmatprep.subr.mxu0 0.0
  %1040 = vmatpush1.msra.mxu0 0.0
  %1041 = vmatprep.subr.mxu0 0.0
  %1042 = vmatpush1.msra.mxu0 0.0
  %1043 = vmatprep.subr.mxu0 0.0
  %1044 = vmatpush1.msra.mxu0 0.0
  %1045 = vmatprep.subr.mxu0 0.0
  %1046 = vmatpush1.msra.mxu0 0.0
  %1047 = vmatprep.subr.mxu0 0.0
  %1048 = vmatpush1.msra.mxu0 0.0
  %1049 = vmatprep.subr.mxu0 0.0
  %1050 = vmatpush1.msra.mxu0 0.0
  %1051 = vmatprep.subr.mxu0 0.0
  %1052 = vmatpush1.msra.mxu0 0.0
  %1053 = vmatprep.subr.mxu0 0.0
  %1054 = vmatpush1.msra.mxu0 0.0
  %1055 = vmatprep.subr.mxu0 0.0
  %1056 = vmatpush1.msra.mxu0 0.0
  %1057 = vmatprep.subr.mxu0 0.0
  %1058 = vmatpush1.msra.mxu0 0.0
  %1059 = vmatprep.mubr.f32.mxu0 0.0
  %1060 = vmatmul.mubr.f32.gmra.mrb[0].mxu0 %v993
  %v1061 = vpop.f32.mrb[0].mxu0
  %v1062 = vadd.f32 0.0, %v1061
  %v1063 = vpop.f32.mrb[0].mxu0
  %1064 = vdwg.mxu0
  %v1065 = vadd.f32 %v990, %v1062
  %v1066 = vxor.u32 %v1065, 2147483648
  %v1067 = vmul.f32 %v1066, 1.442695
  %v1068 = vpow.pop %v1067
  %v1069 = vadd.f32 %v1068, 1.0
  %v1070 = vrcp.pop %v1069
  %v1071 = vmul.f32 1.0, %v1070
  %v1072 = vtanh.pop %v1065
  %v1073 = vld [vmem:[#allocation6] sm:$0x1]
  %1075 = vrot.lane.b32.xlu0 %v1073, 32
  %v1076 = vpop.permute.xlu0 %1075
  %v1078 = vmul.f32 %v1071, %v1076
  %1080 = vrot.lane.b32.xlu0 %v1072, 64
  %v1081 = vpop.permute.xlu0 %1080
  %v1083 = vmul.f32 %v1071, %v1081
  %1085 = vrot.lane.b32.xlu0 %v1083, 32
  %v1086 = vpop.permute.xlu0 %1085
  %v1088 = vadd.f32 %v1078, %v1086
  %1090 = vrot.lane.b32.xlu0 %v1088, 96
  %v1091 = vpop.permute.xlu0 %1090
  %1093 = vst.msk [vmem:[#allocation6] sm:$0x1] %vm171, %v1091
  %v1094 = vtanh.pop %v1088
  %1096 = vrot.lane.b32.xlu0 %v1094, 64
  %v1097 = vpop.permute.xlu0 %1096
  %v1099 = vmul.f32 %v1071, %v1097
  %1101 = vrot.lane.b32.xlu0 %v1099, 32
  %v1102 = vpop.permute.xlu0 %1101
  %1104 = vst.msk [vmem:[#allocation2 + $0x8] sm:$0x1] %vm171, %v1102
  %v1105 = vld [vmem:[#allocation5 + $0x9] sm:$0x1]
  %v1106 = vld [vmem:[#allocation2 + $0x8] sm:$0x1]
  %v1108 = vsel %vm186, %v1106, 0
  %1110 = vmatprep.subr.mxu0 0.0
  %1111 = vmatpush1.msra.mxu0 %v154
  %1112 = vmatprep.subr.mxu0 0.0
  %1113 = vmatpush1.msra.mxu0 %v155
  %1114 = vmatprep.subr.mxu0 0.0
  %1115 = vmatpush1.msra.mxu0 %v156
  %1116 = vmatprep.subr.mxu0 0.0
  %1117 = vmatpush1.msra.mxu0 %v157
  %1118 = vmatprep.subr.mxu0 0.0
  %1119 = vmatpush1.msra.mxu0 0.0
  %1120 = vmatprep.subr.mxu0 0.0
  %1121 = vmatpush1.msra.mxu0 0.0
  %1122 = vmatprep.subr.mxu0 0.0
  %1123 = vmatpush1.msra.mxu0 0.0
  %1124 = vmatprep.subr.mxu0 0.0
  %1125 = vmatpush1.msra.mxu0 0.0
  %1126 = vmatprep.subr.mxu0 0.0
  %1127 = vmatpush1.msra.mxu0 0.0
  %1128 = vmatprep.subr.mxu0 0.0
  %1129 = vmatpush1.msra.mxu0 0.0
  %1130 = vmatprep.subr.mxu0 0.0
  %1131 = vmatpush1.msra.mxu0 0.0
  %1132 = vmatprep.subr.mxu0 0.0
  %1133 = vmatpush1.msra.mxu0 0.0
  %1134 = vmatprep.subr.mxu0 0.0
  %1135 = vmatpush1.msra.mxu0 0.0
  %1136 = vmatprep.subr.mxu0 0.0
  %1137 = vmatpush1.msra.mxu0 0.0
  %1138 = vmatprep.subr.mxu0 0.0
  %1139 = vmatpush1.msra.mxu0 0.0
  %1140 = vmatprep.subr.mxu0 0.0
  %1141 = vmatpush1.msra.mxu0 0.0
  %1142 = vmatprep.subr.mxu0 0.0
  %1143 = vmatpush1.msra.mxu0 0.0
  %1144 = vmatprep.subr.mxu0 0.0
  %1145 = vmatpush1.msra.mxu0 0.0
  %1146 = vmatprep.subr.mxu0 0.0
  %1147 = vmatpush1.msra.mxu0 0.0
  %1148 = vmatprep.subr.mxu0 0.0
  %1149 = vmatpush1.msra.mxu0 0.0
  %1150 = vmatprep.subr.mxu0 0.0
  %1151 = vmatpush1.msra.mxu0 0.0
  %1152 = vmatprep.subr.mxu0 0.0
  %1153 = vmatpush1.msra.mxu0 0.0
  %1154 = vmatprep.subr.mxu0 0.0
  %1155 = vmatpush1.msra.mxu0 0.0
  %1156 = vmatprep.subr.mxu0 0.0
  %1157 = vmatpush1.msra.mxu0 0.0
  %1158 = vmatprep.subr.mxu0 0.0
  %1159 = vmatpush1.msra.mxu0 0.0
  %1160 = vmatprep.subr.mxu0 0.0
  %1161 = vmatpush1.msra.mxu0 0.0
  %1162 = vmatprep.subr.mxu0 0.0
  %1163 = vmatpush1.msra.mxu0 0.0
  %1164 = vmatprep.subr.mxu0 0.0
  %1165 = vmatpush1.msra.mxu0 0.0
  %1166 = vmatprep.subr.mxu0 0.0
  %1167 = vmatpush1.msra.mxu0 0.0
  %1168 = vmatprep.subr.mxu0 0.0
  %1169 = vmatpush1.msra.mxu0 0.0
  %1170 = vmatprep.subr.mxu0 0.0
  %1171 = vmatpush1.msra.mxu0 0.0
  %1172 = vmatprep.subr.mxu0 0.0
  %1173 = vmatpush1.msra.mxu0 0.0
  %1174 = vmatprep.mubr.f32.mxu0 0.0
  %1175 = vmatmul.mubr.f32.gmra.mrb[0].mxu0 %v1108
  %v1176 = vpop.f32.mrb[0].mxu0
  %v1177 = vadd.f32 0.0, %v1176
  %v1178 = vpop.f32.mrb[0].mxu0
  %1179 = vdwg.mxu0
  %v1180 = vadd.f32 %v1105, %v1177
  %v1181 = vxor.u32 %v1180, 2147483648
  %v1182 = vmul.f32 %v1181, 1.442695
  %v1183 = vpow.pop %v1182
  %v1184 = vadd.f32 %v1183, 1.0
  %v1185 = vrcp.pop %v1184
  %v1186 = vmul.f32 1.0, %v1185
  %v1187 = vtanh.pop %v1180
  %v1188 = vld [vmem:[#allocation6] sm:$0x1]
  %1190 = vrot.lane.b32.xlu0 %v1188, 32
  %v1191 = vpop.permute.xlu0 %1190
  %v1193 = vmul.f32 %v1186, %v1191
  %1195 = vrot.lane.b32.xlu0 %v1187, 64
  %v1196 = vpop.permute.xlu0 %1195
  %v1198 = vmul.f32 %v1186, %v1196
  %1200 = vrot.lane.b32.xlu0 %v1198, 32
  %v1201 = vpop.permute.xlu0 %1200
  %v1203 = vadd.f32 %v1193, %v1201
  %1205 = vrot.lane.b32.xlu0 %v1203, 96
  %v1206 = vpop.permute.xlu0 %1205
  %1208 = vst.msk [vmem:[#allocation6] sm:$0x1] %vm171, %v1206
  %v1209 = vtanh.pop %v1203
  %1211 = vrot.lane.b32.xlu0 %v1209, 64
  %v1212 = vpop.permute.xlu0 %1211
  %v1214 = vmul.f32 %v1186, %v1212
  %1216 = vrot.lane.b32.xlu0 %v1214, 32
  %v1217 = vpop.permute.xlu0 %1216
  %1219 = vst.msk [vmem:[#allocation2 + $0x9] sm:$0x1] %vm171, %v1217
  %v1220 = vld [vmem:[#allocation5 + $0xa] sm:$0x1]
  %v1221 = vld [vmem:[#allocation2 + $0x9] sm:$0x1]
  %v1223 = vsel %vm186, %v1221, 0
  %1225 = vmatprep.subr.mxu0 0.0
  %1226 = vmatpush1.msra.mxu0 %v154
  %1227 = vmatprep.subr.mxu0 0.0
  %1228 = vmatpush1.msra.mxu0 %v155
  %1229 = vmatprep.subr.mxu0 0.0
  %1230 = vmatpush1.msra.mxu0 %v156
  %1231 = vmatprep.subr.mxu0 0.0
  %1232 = vmatpush1.msra.mxu0 %v157
  %1233 = vmatprep.subr.mxu0 0.0
  %1234 = vmatpush1.msra.mxu0 0.0
  %1235 = vmatprep.subr.mxu0 0.0
  %1236 = vmatpush1.msra.mxu0 0.0
  %1237 = vmatprep.subr.mxu0 0.0
  %1238 = vmatpush1.msra.mxu0 0.0
  %1239 = vmatprep.subr.mxu0 0.0
  %1240 = vmatpush1.msra.mxu0 0.0
  %1241 = vmatprep.subr.mxu0 0.0
  %1242 = vmatpush1.msra.mxu0 0.0
  %1243 = vmatprep.subr.mxu0 0.0
  %1244 = vmatpush1.msra.mxu0 0.0
  %1245 = vmatprep.subr.mxu0 0.0
  %1246 = vmatpush1.msra.mxu0 0.0
  %1247 = vmatprep.subr.mxu0 0.0
  %1248 = vmatpush1.msra.mxu0 0.0
  %1249 = vmatprep.subr.mxu0 0.0
  %1250 = vmatpush1.msra.mxu0 0.0
  %1251 = vmatprep.subr.mxu0 0.0
  %1252 = vmatpush1.msra.mxu0 0.0
  %1253 = vmatprep.subr.mxu0 0.0
  %1254 = vmatpush1.msra.mxu0 0.0
  %1255 = vmatprep.subr.mxu0 0.0
  %1256 = vmatpush1.msra.mxu0 0.0
  %1257 = vmatprep.subr.mxu0 0.0
  %1258 = vmatpush1.msra.mxu0 0.0
  %1259 = vmatprep.subr.mxu0 0.0
  %1260 = vmatpush1.msra.mxu0 0.0
  %1261 = vmatprep.subr.mxu0 0.0
  %1262 = vmatpush1.msra.mxu0 0.0
  %1263 = vmatprep.subr.mxu0 0.0
  %1264 = vmatpush1.msra.mxu0 0.0
  %1265 = vmatprep.subr.mxu0 0.0
  %1266 = vmatpush1.msra.mxu0 0.0
  %1267 = vmatprep.subr.mxu0 0.0
  %1268 = vmatpush1.msra.mxu0 0.0
  %1269 = vmatprep.subr.mxu0 0.0
  %1270 = vmatpush1.msra.mxu0 0.0
  %1271 = vmatprep.subr.mxu0 0.0
  %1272 = vmatpush1.msra.mxu0 0.0
  %1273 = vmatprep.subr.mxu0 0.0
  %1274 = vmatpush1.msra.mxu0 0.0
  %1275 = vmatprep.subr.mxu0 0.0
  %1276 = vmatpush1.msra.mxu0 0.0
  %1277 = vmatprep.subr.mxu0 0.0
  %1278 = vmatpush1.msra.mxu0 0.0
  %1279 = vmatprep.subr.mxu0 0.0
  %1280 = vmatpush1.msra.mxu0 0.0
  %1281 = vmatprep.subr.mxu0 0.0
  %1282 = vmatpush1.msra.mxu0 0.0
  %1283 = vmatprep.subr.mxu0 0.0
  %1284 = vmatpush1.msra.mxu0 0.0
  %1285 = vmatprep.subr.mxu0 0.0
  %1286 = vmatpush1.msra.mxu0 0.0
  %1287 = vmatprep.subr.mxu0 0.0
  %1288 = vmatpush1.msra.mxu0 0.0
  %1289 = vmatprep.mubr.f32.mxu0 0.0
  %1290 = vmatmul.mubr.f32.gmra.mrb[0].mxu0 %v1223
  %v1291 = vpop.f32.mrb[0].mxu0
  %v1292 = vadd.f32 0.0, %v1291
  %v1293 = vpop.f32.mrb[0].mxu0
  %1294 = vdwg.mxu0
  %v1295 = vadd.f32 %v1220, %v1292
  %v1296 = vxor.u32 %v1295, 2147483648
  %v1297 = vmul.f32 %v1296, 1.442695
  %v1298 = vpow.pop %v1297
  %v1299 = vadd.f32 %v1298, 1.0
  %v1300 = vrcp.pop %v1299
  %v1301 = vmul.f32 1.0, %v1300
  %v1302 = vtanh.pop %v1295
  %v1303 = vld [vmem:[#allocation6] sm:$0x1]
  %1305 = vrot.lane.b32.xlu0 %v1303, 32
  %v1306 = vpop.permute.xlu0 %1305
  %v1308 = vmul.f32 %v1301, %v1306
  %1310 = vrot.lane.b32.xlu0 %v1302, 64
  %v1311 = vpop.permute.xlu0 %1310
  %v1313 = vmul.f32 %v1301, %v1311
  %1315 = vrot.lane.b32.xlu0 %v1313, 32
  %v1316 = vpop.permute.xlu0 %1315
  %v1318 = vadd.f32 %v1308, %v1316
  %1320 = vrot.lane.b32.xlu0 %v1318, 96
  %v1321 = vpop.permute.xlu0 %1320
  %1323 = vst.msk [vmem:[#allocation6] sm:$0x1] %vm171, %v1321
  %v1324 = vtanh.pop %v1318
  %1326 = vrot.lane.b32.xlu0 %v1324, 64
  %v1327 = vpop.permute.xlu0 %1326
  %v1329 = vmul.f32 %v1301, %v1327
  %1331 = vrot.lane.b32.xlu0 %v1329, 32
  %v1332 = vpop.permute.xlu0 %1331
  %1334 = vst.msk [vmem:[#allocation2 + $0xa] sm:$0x1] %vm171, %v1332
  %v1335 = vld [vmem:[#allocation5 + $0xb] sm:$0x1]
  %v1336 = vld [vmem:[#allocation2 + $0xa] sm:$0x1]
  %v1338 = vsel %vm186, %v1336, 0
  %1340 = vmatprep.subr.mxu0 0.0
  %1341 = vmatpush1.msra.mxu0 %v154
  %1342 = vmatprep.subr.mxu0 0.0
  %1343 = vmatpush1.msra.mxu0 %v155
  %1344 = vmatprep.subr.mxu0 0.0
  %1345 = vmatpush1.msra.mxu0 %v156
  %1346 = vmatprep.subr.mxu0 0.0
  %1347 = vmatpush1.msra.mxu0 %v157
  %1348 = vmatprep.subr.mxu0 0.0
  %1349 = vmatpush1.msra.mxu0 0.0
  %1350 = vmatprep.subr.mxu0 0.0
  %1351 = vmatpush1.msra.mxu0 0.0
  %1352 = vmatprep.subr.mxu0 0.0
  %1353 = vmatpush1.msra.mxu0 0.0
  %1354 = vmatprep.subr.mxu0 0.0
  %1355 = vmatpush1.msra.mxu0 0.0
  %1356 = vmatprep.subr.mxu0 0.0
  %1357 = vmatpush1.msra.mxu0 0.0
  %1358 = vmatprep.subr.mxu0 0.0
  %1359 = vmatpush1.msra.mxu0 0.0
  %1360 = vmatprep.subr.mxu0 0.0
  %1361 = vmatpush1.msra.mxu0 0.0
  %1362 = vmatprep.subr.mxu0 0.0
  %1363 = vmatpush1.msra.mxu0 0.0
  %1364 = vmatprep.subr.mxu0 0.0
  %1365 = vmatpush1.msra.mxu0 0.0
  %1366 = vmatprep.subr.mxu0 0.0
  %1367 = vmatpush1.msra.mxu0 0.0
  %1368 = vmatprep.subr.mxu0 0.0
  %1369 = vmatpush1.msra.mxu0 0.0
  %1370 = vmatprep.subr.mxu0 0.0
  %1371 = vmatpush1.msra.mxu0 0.0
  %1372 = vmatprep.subr.mxu0 0.0
  %1373 = vmatpush1.msra.mxu0 0.0
  %1374 = vmatprep.subr.mxu0 0.0
  %1375 = vmatpush1.msra.mxu0 0.0
  %1376 = vmatprep.subr.mxu0 0.0
  %1377 = vmatpush1.msra.mxu0 0.0
  %1378 = vmatprep.subr.mxu0 0.0
  %1379 = vmatpush1.msra.mxu0 0.0
  %1380 = vmatprep.subr.mxu0 0.0
  %1381 = vmatpush1.msra.mxu0 0.0
  %1382 = vmatprep.subr.mxu0 0.0
  %1383 = vmatpush1.msra.mxu0 0.0
  %1384 = vmatprep.subr.mxu0 0.0
  %1385 = vmatpush1.msra.mxu0 0.0
  %1386 = vmatprep.subr.mxu0 0.0
  %1387 = vmatpush1.msra.mxu0 0.0
  %1388 = vmatprep.subr.mxu0 0.0
  %1389 = vmatpush1.msra.mxu0 0.0
  %1390 = vmatprep.subr.mxu0 0.0
  %1391 = vmatpush1.msra.mxu0 0.0
  %1392 = vmatprep.subr.mxu0 0.0
  %1393 = vmatpush1.msra.mxu0 0.0
  %1394 = vmatprep.subr.mxu0 0.0
  %1395 = vmatpush1.msra.mxu0 0.0
  %1396 = vmatprep.subr.mxu0 0.0
  %1397 = vmatpush1.msra.mxu0 0.0
  %1398 = vmatprep.subr.mxu0 0.0
  %1399 = vmatpush1.msra.mxu0 0.0
  %1400 = vmatprep.subr.mxu0 0.0
  %1401 = vmatpush1.msra.mxu0 0.0
  %1402 = vmatprep.subr.mxu0 0.0
  %1403 = vmatpush1.msra.mxu0 0.0
  %1404 = vmatprep.mubr.f32.mxu0 0.0
  %1405 = vmatmul.mubr.f32.gmra.mrb[0].mxu0 %v1338
  %v1406 = vpop.f32.mrb[0].mxu0
  %v1407 = vadd.f32 0.0, %v1406
  %v1408 = vpop.f32.mrb[0].mxu0
  %1409 = vdwg.mxu0
  %v1410 = vadd.f32 %v1335, %v1407
  %v1411 = vxor.u32 %v1410, 2147483648
  %v1412 = vmul.f32 %v1411, 1.442695
  %v1413 = vpow.pop %v1412
  %v1414 = vadd.f32 %v1413, 1.0
  %v1415 = vrcp.pop %v1414
  %v1416 = vmul.f32 1.0, %v1415
  %v1417 = vtanh.pop %v1410
  %v1418 = vld [vmem:[#allocation6] sm:$0x1]
  %1420 = vrot.lane.b32.xlu0 %v1418, 32
  %v1421 = vpop.permute.xlu0 %1420
  %v1423 = vmul.f32 %v1416, %v1421
  %1425 = vrot.lane.b32.xlu0 %v1417, 64
  %v1426 = vpop.permute.xlu0 %1425
  %v1428 = vmul.f32 %v1416, %v1426
  %1430 = vrot.lane.b32.xlu0 %v1428, 32
  %v1431 = vpop.permute.xlu0 %1430
  %v1433 = vadd.f32 %v1423, %v1431
  %1435 = vrot.lane.b32.xlu0 %v1433, 96
  %v1436 = vpop.permute.xlu0 %1435
  %1438 = vst.msk [vmem:[#allocation6] sm:$0x1] %vm171, %v1436
  %v1439 = vtanh.pop %v1433
  %1441 = vrot.lane.b32.xlu0 %v1439, 64
  %v1442 = vpop.permute.xlu0 %1441
  %v1444 = vmul.f32 %v1416, %v1442
  %1446 = vrot.lane.b32.xlu0 %v1444, 32
  %v1447 = vpop.permute.xlu0 %1446
  %1449 = vst.msk [vmem:[#allocation2 + $0xb] sm:$0x1] %vm171, %v1447
  %v1450 = vld [vmem:[#allocation5 + $0xc] sm:$0x1]
  %v1451 = vld [vmem:[#allocation2 + $0xb] sm:$0x1]
  %v1453 = vsel %vm186, %v1451, 0
  %1455 = vmatprep.subr.mxu0 0.0
  %1456 = vmatpush1.msra.mxu0 %v154
  %1457 = vmatprep.subr.mxu0 0.0
  %1458 = vmatpush1.msra.mxu0 %v155
  %1459 = vmatprep.subr.mxu0 0.0
  %1460 = vmatpush1.msra.mxu0 %v156
  %1461 = vmatprep.subr.mxu0 0.0
  %1462 = vmatpush1.msra.mxu0 %v157
  %1463 = vmatprep.subr.mxu0 0.0
  %1464 = vmatpush1.msra.mxu0 0.0
  %1465 = vmatprep.subr.mxu0 0.0
  %1466 = vmatpush1.msra.mxu0 0.0
  %1467 = vmatprep.subr.mxu0 0.0
  %1468 = vmatpush1.msra.mxu0 0.0
  %1469 = vmatprep.subr.mxu0 0.0
  %1470 = vmatpush1.msra.mxu0 0.0
  %1471 = vmatprep.subr.mxu0 0.0
  %1472 = vmatpush1.msra.mxu0 0.0
  %1473 = vmatprep.subr.mxu0 0.0
  %1474 = vmatpush1.msra.mxu0 0.0
  %1475 = vmatprep.subr.mxu0 0.0
  %1476 = vmatpush1.msra.mxu0 0.0
  %1477 = vmatprep.subr.mxu0 0.0
  %1478 = vmatpush1.msra.mxu0 0.0
  %1479 = vmatprep.subr.mxu0 0.0
  %1480 = vmatpush1.msra.mxu0 0.0
  %1481 = vmatprep.subr.mxu0 0.0
  %1482 = vmatpush1.msra.mxu0 0.0
  %1483 = vmatprep.subr.mxu0 0.0
  %1484 = vmatpush1.msra.mxu0 0.0
  %1485 = vmatprep.subr.mxu0 0.0
  %1486 = vmatpush1.msra.mxu0 0.0
  %1487 = vmatprep.subr.mxu0 0.0
  %1488 = vmatpush1.msra.mxu0 0.0
  %1489 = vmatprep.subr.mxu0 0.0
  %1490 = vmatpush1.msra.mxu0 0.0
  %1491 = vmatprep.subr.mxu0 0.0
  %1492 = vmatpush1.msra.mxu0 0.0
  %1493 = vmatprep.subr.mxu0 0.0
  %1494 = vmatpush1.msra.mxu0 0.0
  %1495 = vmatprep.subr.mxu0 0.0
  %1496 = vmatpush1.msra.mxu0 0.0
  %1497 = vmatprep.subr.mxu0 0.0
  %1498 = vmatpush1.msra.mxu0 0.0
  %1499 = vmatprep.subr.mxu0 0.0
  %1500 = vmatpush1.msra.mxu0 0.0
  %1501 = vmatprep.subr.mxu0 0.0
  %1502 = vmatpush1.msra.mxu0 0.0
  %1503 = vmatprep.subr.mxu0 0.0
  %1504 = vmatpush1.msra.mxu0 0.0
  %1505 = vmatprep.subr.mxu0 0.0
  %1506 = vmatpush1.msra.mxu0 0.0
  %1507 = vmatprep.subr.mxu0 0.0
  %1508 = vmatpush1.msra.mxu0 0.0
  %1509 = vmatprep.subr.mxu0 0.0
  %1510 = vmatpush1.msra.mxu0 0.0
  %1511 = vmatprep.subr.mxu0 0.0
  %1512 = vmatpush1.msra.mxu0 0.0
  %1513 = vmatprep.subr.mxu0 0.0
  %1514 = vmatpush1.msra.mxu0 0.0
  %1515 = vmatprep.subr.mxu0 0.0
  %1516 = vmatpush1.msra.mxu0 0.0
  %1517 = vmatprep.subr.mxu0 0.0
  %1518 = vmatpush1.msra.mxu0 0.0
  %1519 = vmatprep.mubr.f32.mxu0 0.0
  %1520 = vmatmul.mubr.f32.gmra.mrb[0].mxu0 %v1453
  %v1521 = vpop.f32.mrb[0].mxu0
  %v1522 = vadd.f32 0.0, %v1521
  %v1523 = vpop.f32.mrb[0].mxu0
  %1524 = vdwg.mxu0
  %v1525 = vadd.f32 %v1450, %v1522
  %v1526 = vxor.u32 %v1525, 2147483648
  %v1527 = vmul.f32 %v1526, 1.442695
  %v1528 = vpow.pop %v1527
  %v1529 = vadd.f32 %v1528, 1.0
  %v1530 = vrcp.pop %v1529
  %v1531 = vmul.f32 1.0, %v1530
  %v1532 = vtanh.pop %v1525
  %v1533 = vld [vmem:[#allocation6] sm:$0x1]
  %1535 = vrot.lane.b32.xlu0 %v1533, 32
  %v1536 = vpop.permute.xlu0 %1535
  %v1538 = vmul.f32 %v1531, %v1536
  %1540 = vrot.lane.b32.xlu0 %v1532, 64
  %v1541 = vpop.permute.xlu0 %1540
  %v1543 = vmul.f32 %v1531, %v1541
  %1545 = vrot.lane.b32.xlu0 %v1543, 32
  %v1546 = vpop.permute.xlu0 %1545
  %v1548 = vadd.f32 %v1538, %v1546
  %1550 = vrot.lane.b32.xlu0 %v1548, 96
  %v1551 = vpop.permute.xlu0 %1550
  %1553 = vst.msk [vmem:[#allocation6] sm:$0x1] %vm171, %v1551
  %v1554 = vtanh.pop %v1548
  %1556 = vrot.lane.b32.xlu0 %v1554, 64
  %v1557 = vpop.permute.xlu0 %1556
  %v1559 = vmul.f32 %v1531, %v1557
  %1561 = vrot.lane.b32.xlu0 %v1559, 32
  %v1562 = vpop.permute.xlu0 %1561
  %1564 = vst.msk [vmem:[#allocation2 + $0xc] sm:$0x1] %vm171, %v1562
  %v1565 = vld [vmem:[#allocation2] sm:$0xff]
  %v1566 = vld [vmem:[#allocation2 + $0x8] sm:$0x1f]
  %v1567 = vld [vmem:[%s4] sm:$0xff]
  %v1568 = vld [vmem:[%s4 + $0x8] sm:$0xff]
  %v1569 = vld [vmem:[%s4 + $0x10] sm:$0xff]
  %v1570 = vld [vmem:[%s4 + $0x18] sm:$0xff]
  %v1571 = vld [vmem:[%s6] sm:$0x1]
  %v1573 = vlaneseq
  %v1574 = vshrl.u32 %v1573, 7
  %v1575 = vsub.s32 0, %v1574
  %v1576 = vrot.slane %v1571, %v1575
  %v1579 = vsel %vm186, %v1565, 0
  %v1582 = vsel %vm186, %v1566, 0
  %1584 = vmatprep.subr.mxu0 0.0
  %1585 = vmatpush1.msra.mxu0 %v1567
  %1586 = vmatprep.subr.mxu0 0.0
  %1587 = vmatpush1.msra.mxu0 %v1568
  %1588 = vmatprep.subr.mxu0 0.0
  %1589 = vmatpush1.msra.mxu0 %v1569
  %1590 = vmatprep.subr.mxu0 0.0
  %1591 = vmatpush1.msra.mxu0 %v1570
  %1592 = vmatprep.subr.mxu0 0.0
  %1593 = vmatpush1.msra.mxu0 0.0
  %1594 = vmatprep.subr.mxu0 0.0
  %1595 = vmatpush1.msra.mxu0 0.0
  %1596 = vmatprep.subr.mxu0 0.0
  %1597 = vmatpush1.msra.mxu0 0.0
  %1598 = vmatprep.subr.mxu0 0.0
  %1599 = vmatpush1.msra.mxu0 0.0
  %1600 = vmatprep.subr.mxu0 0.0
  %1601 = vmatpush1.msra.mxu0 0.0
  %1602 = vmatprep.subr.mxu0 0.0
  %1603 = vmatpush1.msra.mxu0 0.0
  %1604 = vmatprep.subr.mxu0 0.0
  %1605 = vmatpush1.msra.mxu0 0.0
  %1606 = vmatprep.subr.mxu0 0.0
  %1607 = vmatpush1.msra.mxu0 0.0
  %1608 = vmatprep.subr.mxu0 0.0
  %1609 = vmatpush1.msra.mxu0 0.0
  %1610 = vmatprep.subr.mxu0 0.0
  %1611 = vmatpush1.msra.mxu0 0.0
  %1612 = vmatprep.subr.mxu0 0.0
  %1613 = vmatpush1.msra.mxu0 0.0
  %1614 = vmatprep.subr.mxu0 0.0
  %1615 = vmatpush1.msra.mxu0 0.0
  %1616 = vmatprep.subr.mxu0 0.0
  %1617 = vmatpush1.msra.mxu0 0.0
  %1618 = vmatprep.subr.mxu0 0.0
  %1619 = vmatpush1.msra.mxu0 0.0
  %1620 = vmatprep.subr.mxu0 0.0
  %1621 = vmatpush1.msra.mxu0 0.0
  %1622 = vmatprep.subr.mxu0 0.0
  %1623 = vmatpush1.msra.mxu0 0.0
  %1624 = vmatprep.subr.mxu0 0.0
  %1625 = vmatpush1.msra.mxu0 0.0
  %1626 = vmatprep.subr.mxu0 0.0
  %1627 = vmatpush1.msra.mxu0 0.0
  %1628 = vmatprep.subr.mxu0 0.0
  %1629 = vmatpush1.msra.mxu0 0.0
  %1630 = vmatprep.subr.mxu0 0.0
  %1631 = vmatpush1.msra.mxu0 0.0
  %1632 = vmatprep.subr.mxu0 0.0
  %1633 = vmatpush1.msra.mxu0 0.0
  %1634 = vmatprep.subr.mxu0 0.0
  %1635 = vmatpush1.msra.mxu0 0.0
  %1636 = vmatprep.subr.mxu0 0.0
  %1637 = vmatpush1.msra.mxu0 0.0
  %1638 = vmatprep.subr.mxu0 0.0
  %1639 = vmatpush1.msra.mxu0 0.0
  %1640 = vmatprep.subr.mxu0 0.0
  %1641 = vmatpush1.msra.mxu0 0.0
  %1642 = vmatprep.subr.mxu0 0.0
  %1643 = vmatpush1.msra.mxu0 0.0
  %1644 = vmatprep.subr.mxu0 0.0
  %1645 = vmatpush1.msra.mxu0 0.0
  %1646 = vmatprep.subr.mxu0 0.0
  %1647 = vmatpush1.msra.mxu0 0.0
  %1648 = vmatprep.mubr.f32.mxu0 0.0
  %1649 = vmatmul.mubr.f32.gmra.mrb[0].mxu0 %v1579
  %v1650 = vpop.f32.mrb[0].mxu0
  %v1651 = vadd.f32 %v1576, %v1650
  %v1652 = vpop.f32.mrb[0].mxu0
  %1653 = vmatprep.mubr.f32.mxu0 0.0
  %1654 = vmatmul.mubr.f32.gmra.mrb[0].mxu0 %v1582
  %v1655 = vpop.f32.mrb[0].mxu0
  %v1656 = vadd.f32 %v1576, %v1655
  %v1657 = vpop.f32.mrb[0].mxu0
  %1658 = vdwg.mxu0
  %1659 = vst [vmem:[#allocation5] sm:$0xff] %v1651
  %1660 = vst [vmem:[#allocation5 + $0x8] sm:$0x1f] %v1656
  %v1661 = vld [vmem:[%s5] sm:$0xff]
  %v1662 = vld [vmem:[%s5 + $0x8] sm:$0xff]
  %v1663 = vld [vmem:[%s5 + $0x10] sm:$0xff]
  %v1664 = vld [vmem:[%s5 + $0x18] sm:$0xff]
  %v1665 = vld [vmem:[#allocation5] sm:$0x3]
  %v1666 = vxor.u32 %v1665, 2147483648
  %v1667 = vmul.f32 %v1666, 1.442695
  %v1668 = vpow.pop %v1667
  %v1669 = vadd.f32 %v1668, 1.0
  %v1670 = vrcp.pop %v1669
  %v1671 = vmul.f32 1.0, %v1670
  %v1672 = vtanh.pop %v1665
  %1674 = vrot.lane.b32.xlu0 %v1672, 64
  %v1675 = vpop.permute.xlu0 %1674
  %v1677 = vmul.f32 %v1671, %v1675
  %vm1678 = vcmask 254976
  %1679 = vst.msk [vmem:[#allocation6] sm:$0x3] %vm1678, %v1677
  %v1680 = vtanh.pop %v1677
  %1682 = vrot.lane.b32.xlu0 %v1680, 96
  %v1683 = vpop.permute.xlu0 %1682
  %v1685 = vmul.f32 %v1671, %v1683
  %1687 = vrot.lane.b32.xlu0 %v1685, 32
  %v1688 = vpop.permute.xlu0 %1687
  %1690 = vst.msk [vmem:[#allocation3] sm:$0x3] %vm1678, %v1688
  %v1691 = vld [vmem:[#allocation5 + $0x2] sm:$0x3]
  %v1692 = vld [vmem:[#allocation3] sm:$0x3]
  %v1694 = vsel %vm186, %v1692, 0
  %1696 = vmatprep.subr.mxu0 0.0
  %1697 = vmatpush1.msra.mxu0 %v1661
  %1698 = vmatprep.subr.mxu0 0.0
  %1699 = vmatpush1.msra.mxu0 %v1662
  %1700 = vmatprep.subr.mxu0 0.0
  %1701 = vmatpush1.msra.mxu0 %v1663
  %1702 = vmatprep.subr.mxu0 0.0
  %1703 = vmatpush1.msra.mxu0 %v1664
  %1704 = vmatprep.subr.mxu0 0.0
  %1705 = vmatpush1.msra.mxu0 0.0
  %1706 = vmatprep.subr.mxu0 0.0
  %1707 = vmatpush1.msra.mxu0 0.0
  %1708 = vmatprep.subr.mxu0 0.0
  %1709 = vmatpush1.msra.mxu0 0.0
  %1710 = vmatprep.subr.mxu0 0.0
  %1711 = vmatpush1.msra.mxu0 0.0
  %1712 = vmatprep.subr.mxu0 0.0
  %1713 = vmatpush1.msra.mxu0 0.0
  %1714 = vmatprep.subr.mxu0 0.0
  %1715 = vmatpush1.msra.mxu0 0.0
  %1716 = vmatprep.subr.mxu0 0.0
  %1717 = vmatpush1.msra.mxu0 0.0
  %1718 = vmatprep.subr.mxu0 0.0
  %1719 = vmatpush1.msra.mxu0 0.0
  %1720 = vmatprep.subr.mxu0 0.0
  %1721 = vmatpush1.msra.mxu0 0.0
  %1722 = vmatprep.subr.mxu0 0.0
  %1723 = vmatpush1.msra.mxu0 0.0
  %1724 = vmatprep.subr.mxu0 0.0
  %1725 = vmatpush1.msra.mxu0 0.0
  %1726 = vmatprep.subr.mxu0 0.0
  %1727 = vmatpush1.msra.mxu0 0.0
  %1728 = vmatprep.subr.mxu0 0.0
  %1729 = vmatpush1.msra.mxu0 0.0
  %1730 = vmatprep.subr.mxu0 0.0
  %1731 = vmatpush1.msra.mxu0 0.0
  %1732 = vmatprep.subr.mxu0 0.0
  %1733 = vmatpush1.msra.mxu0 0.0
  %1734 = vmatprep.subr.mxu0 0.0
  %1735 = vmatpush1.msra.mxu0 0.0
  %1736 = vmatprep.subr.mxu0 0.0
  %1737 = vmatpush1.msra.mxu0 0.0
  %1738 = vmatprep.subr.mxu0 0.0
  %1739 = vmatpush1.msra.mxu0 0.0
  %1740 = vmatprep.subr.mxu0 0.0
  %1741 = vmatpush1.msra.mxu0 0.0
  %1742 = vmatprep.subr.mxu0 0.0
  %1743 = vmatpush1.msra.mxu0 0.0
  %1744 = vmatprep.subr.mxu0 0.0
  %1745 = vmatpush1.msra.mxu0 0.0
  %1746 = vmatprep.subr.mxu0 0.0
  %1747 = vmatpush1.msra.mxu0 0.0
  %1748 = vmatprep.subr.mxu0 0.0
  %1749 = vmatpush1.msra.mxu0 0.0
  %1750 = vmatprep.subr.mxu0 0.0
  %1751 = vmatpush1.msra.mxu0 0.0
  %1752 = vmatprep.subr.mxu0 0.0
  %1753 = vmatpush1.msra.mxu0 0.0
  %1754 = vmatprep.subr.mxu0 0.0
  %1755 = vmatpush1.msra.mxu0 0.0
  %1756 = vmatprep.subr.mxu0 0.0
  %1757 = vmatpush1.msra.mxu0 0.0
  %1758 = vmatprep.subr.mxu0 0.0
  %1759 = vmatpush1.msra.mxu0 0.0
  %1760 = vmatprep.mubr.f32.mxu0 0.0
  %1761 = vmatmul.mubr.f32.gmra.mrb[0].mxu0 %v1694
  %v1762 = vpop.f32.mrb[0].mxu0
  %v1763 = vadd.f32 0.0, %v1762
  %v1764 = vpop.f32.mrb[0].mxu0
  %1765 = vdwg.mxu0
  %v1766 = vadd.f32 %v1691, %v1763
  %v1767 = vxor.u32 %v1766, 2147483648
  %v1768 = vmul.f32 %v1767, 1.442695
  %v1769 = vpow.pop %v1768
  %v1770 = vadd.f32 %v1769, 1.0
  %v1771 = vrcp.pop %v1770
  %v1772 = vmul.f32 1.0, %v1771
  %v1773 = vtanh.pop %v1766
  %v1774 = vld [vmem:[#allocation6] sm:$0x3]
  %1776 = vrot.lane.b32.xlu0 %v1774, 32
  %v1777 = vpop.permute.xlu0 %1776
  %v1779 = vmul.f32 %v1772, %v1777
  %1781 = vrot.lane.b32.xlu0 %v1773, 64
  %v1782 = vpop.permute.xlu0 %1781
  %v1784 = vmul.f32 %v1772, %v1782
  %1786 = vrot.lane.b32.xlu0 %v1784, 32
  %v1787 = vpop.permute.xlu0 %1786
  %v1789 = vadd.f32 %v1779, %v1787
  %1791 = vrot.lane.b32.xlu0 %v1789, 96
  %v1792 = vpop.permute.xlu0 %1791
  %1794 = vst.msk [vmem:[#allocation6] sm:$0x3] %vm1678, %v1792
  %v1795 = vtanh.pop %v1789
  %1797 = vrot.lane.b32.xlu0 %v1795, 64
  %v1798 = vpop.permute.xlu0 %1797
  %v1800 = vmul.f32 %v1772, %v1798
  %1802 = vrot.lane.b32.xlu0 %v1800, 32
  %v1803 = vpop.permute.xlu0 %1802
  %1805 = vst.msk [vmem:[#allocation3 + $0x2] sm:$0x3] %vm1678, %v1803
  %v1806 = vld [vmem:[#allocation5 + $0x4] sm:$0x3]
  %v1807 = vld [vmem:[#allocation3 + $0x2] sm:$0x3]
  %v1809 = vsel %vm186, %v1807, 0
  %1811 = vmatprep.subr.mxu0 0.0
  %1812 = vmatpush1.msra.mxu0 %v1661
  %1813 = vmatprep.subr.mxu0 0.0
  %1814 = vmatpush1.msra.mxu0 %v1662
  %1815 = vmatprep.subr.mxu0 0.0
  %1816 = vmatpush1.msra.mxu0 %v1663
  %1817 = vmatprep.subr.mxu0 0.0
  %1818 = vmatpush1.msra.mxu0 %v1664
  %1819 = vmatprep.subr.mxu0 0.0
  %1820 = vmatpush1.msra.mxu0 0.0
  %1821 = vmatprep.subr.mxu0 0.0
  %1822 = vmatpush1.msra.mxu0 0.0
  %1823 = vmatprep.subr.mxu0 0.0
  %1824 = vmatpush1.msra.mxu0 0.0
  %1825 = vmatprep.subr.mxu0 0.0
  %1826 = vmatpush1.msra.mxu0 0.0
  %1827 = vmatprep.subr.mxu0 0.0
  %1828 = vmatpush1.msra.mxu0 0.0
  %1829 = vmatprep.subr.mxu0 0.0
  %1830 = vmatpush1.msra.mxu0 0.0
  %1831 = vmatprep.subr.mxu0 0.0
  %1832 = vmatpush1.msra.mxu0 0.0
  %1833 = vmatprep.subr.mxu0 0.0
  %1834 = vmatpush1.msra.mxu0 0.0
  %1835 = vmatprep.subr.mxu0 0.0
  %1836 = vmatpush1.msra.mxu0 0.0
  %1837 = vmatprep.subr.mxu0 0.0
  %1838 = vmatpush1.msra.mxu0 0.0
  %1839 = vmatprep.subr.mxu0 0.0
  %1840 = vmatpush1.msra.mxu0 0.0
  %1841 = vmatprep.subr.mxu0 0.0
  %1842 = vmatpush1.msra.mxu0 0.0
  %1843 = vmatprep.subr.mxu0 0.0
  %1844 = vmatpush1.msra.mxu0 0.0
  %1845 = vmatprep.subr.mxu0 0.0
  %1846 = vmatpush1.msra.mxu0 0.0
  %1847 = vmatprep.subr.mxu0 0.0
  %1848 = vmatpush1.msra.mxu0 0.0
  %1849 = vmatprep.subr.mxu0 0.0
  %1850 = vmatpush1.msra.mxu0 0.0
  %1851 = vmatprep.subr.mxu0 0.0
  %1852 = vmatpush1.msra.mxu0 0.0
  %1853 = vmatprep.subr.mxu0 0.0
  %1854 = vmatpush1.msra.mxu0 0.0
  %1855 = vmatprep.subr.mxu0 0.0
  %1856 = vmatpush1.msra.mxu0 0.0
  %1857 = vmatprep.subr.mxu0 0.0
  %1858 = vmatpush1.msra.mxu0 0.0
  %1859 = vmatprep.subr.mxu0 0.0
  %1860 = vmatpush1.msra.mxu0 0.0
  %1861 = vmatprep.subr.mxu0 0.0
  %1862 = vmatpush1.msra.mxu0 0.0
  %1863 = vmatprep.subr.mxu0 0.0
  %1864 = vmatpush1.msra.mxu0 0.0
  %1865 = vmatprep.subr.mxu0 0.0
  %1866 = vmatpush1.msra.mxu0 0.0
  %1867 = vmatprep.subr.mxu0 0.0
  %1868 = vmatpush1.msra.mxu0 0.0
  %1869 = vmatprep.subr.mxu0 0.0
  %1870 = vmatpush1.msra.mxu0 0.0
  %1871 = vmatprep.subr.mxu0 0.0
  %1872 = vmatpush1.msra.mxu0 0.0
  %1873 = vmatprep.subr.mxu0 0.0
  %1874 = vmatpush1.msra.mxu0 0.0
  %1875 = vmatprep.mubr.f32.mxu0 0.0
  %1876 = vmatmul.mubr.f32.gmra.mrb[0].mxu0 %v1809
  %v1877 = vpop.f32.mrb[0].mxu0
  %v1878 = vadd.f32 0.0, %v1877
  %v1879 = vpop.f32.mrb[0].mxu0
  %1880 = vdwg.mxu0
  %v1881 = vadd.f32 %v1806, %v1878
  %v1882 = vxor.u32 %v1881, 2147483648
  %v1883 = vmul.f32 %v1882, 1.442695
  %v1884 = vpow.pop %v1883
  %v1885 = vadd.f32 %v1884, 1.0
  %v1886 = vrcp.pop %v1885
  %v1887 = vmul.f32 1.0, %v1886
  %v1888 = vtanh.pop %v1881
  %v1889 = vld [vmem:[#allocation6] sm:$0x3]
  %1891 = vrot.lane.b32.xlu0 %v1889, 32
  %v1892 = vpop.permute.xlu0 %1891
  %v1894 = vmul.f32 %v1887, %v1892
  %1896 = vrot.lane.b32.xlu0 %v1888, 64
  %v1897 = vpop.permute.xlu0 %1896
  %v1899 = vmul.f32 %v1887, %v1897
  %1901 = vrot.lane.b32.xlu0 %v1899, 32
  %v1902 = vpop.permute.xlu0 %1901
  %v1904 = vadd.f32 %v1894, %v1902
  %1906 = vrot.lane.b32.xlu0 %v1904, 96
  %v1907 = vpop.permute.xlu0 %1906
  %1909 = vst.msk [vmem:[#allocation6] sm:$0x3] %vm1678, %v1907
  %v1910 = vtanh.pop %v1904
  %1912 = vrot.lane.b32.xlu0 %v1910, 64
  %v1913 = vpop.permute.xlu0 %1912
  %v1915 = vmul.f32 %v1887, %v1913
  %1917 = vrot.lane.b32.xlu0 %v1915, 32
  %v1918 = vpop.permute.xlu0 %1917
  %1920 = vst.msk [vmem:[#allocation3 + $0x4] sm:$0x3] %vm1678, %v1918
  %v1921 = vld [vmem:[#allocation5 + $0x6] sm:$0x3]
  %v1922 = vld [vmem:[#allocation3 + $0x4] sm:$0x3]
  %v1924 = vsel %vm186, %v1922, 0
  %1926 = vmatprep.subr.mxu0 0.0
  %1927 = vmatpush1.msra.mxu0 %v1661
  %1928 = vmatprep.subr.mxu0 0.0
  %1929 = vmatpush1.msra.mxu0 %v1662
  %1930 = vmatprep.subr.mxu0 0.0
  %1931 = vmatpush1.msra.mxu0 %v1663
  %1932 = vmatprep.subr.mxu0 0.0
  %1933 = vmatpush1.msra.mxu0 %v1664
  %1934 = vmatprep.subr.mxu0 0.0
  %1935 = vmatpush1.msra.mxu0 0.0
  %1936 = vmatprep.subr.mxu0 0.0
  %1937 = vmatpush1.msra.mxu0 0.0
  %1938 = vmatprep.subr.mxu0 0.0
  %1939 = vmatpush1.msra.mxu0 0.0
  %1940 = vmatprep.subr.mxu0 0.0
  %1941 = vmatpush1.msra.mxu0 0.0
  %1942 = vmatprep.subr.mxu0 0.0
  %1943 = vmatpush1.msra.mxu0 0.0
  %1944 = vmatprep.subr.mxu0 0.0
  %1945 = vmatpush1.msra.mxu0 0.0
  %1946 = vmatprep.subr.mxu0 0.0
  %1947 = vmatpush1.msra.mxu0 0.0
  %1948 = vmatprep.subr.mxu0 0.0
  %1949 = vmatpush1.msra.mxu0 0.0
  %1950 = vmatprep.subr.mxu0 0.0
  %1951 = vmatpush1.msra.mxu0 0.0
  %1952 = vmatprep.subr.mxu0 0.0
  %1953 = vmatpush1.msra.mxu0 0.0
  %1954 = vmatprep.subr.mxu0 0.0
  %1955 = vmatpush1.msra.mxu0 0.0
  %1956 = vmatprep.subr.mxu0 0.0
  %1957 = vmatpush1.msra.mxu0 0.0
  %1958 = vmatprep.subr.mxu0 0.0
  %1959 = vmatpush1.msra.mxu0 0.0
  %1960 = vmatprep.subr.mxu0 0.0
  %1961 = vmatpush1.msra.mxu0 0.0
  %1962 = vmatprep.subr.mxu0 0.0
  %1963 = vmatpush1.msra.mxu0 0.0
  %1964 = vmatprep.subr.mxu0 0.0
  %1965 = vmatpush1.msra.mxu0 0.0
  %1966 = vmatprep.subr.mxu0 0.0
  %1967 = vmatpush1.msra.mxu0 0.0
  %1968 = vmatprep.subr.mxu0 0.0
  %1969 = vmatpush1.msra.mxu0 0.0
  %1970 = vmatprep.subr.mxu0 0.0
  %1971 = vmatpush1.msra.mxu0 0.0
  %1972 = vmatprep.subr.mxu0 0.0
  %1973 = vmatpush1.msra.mxu0 0.0
  %1974 = vmatprep.subr.mxu0 0.0
  %1975 = vmatpush1.msra.mxu0 0.0
  %1976 = vmatprep.subr.mxu0 0.0
  %1977 = vmatpush1.msra.mxu0 0.0
  %1978 = vmatprep.subr.mxu0 0.0
  %1979 = vmatpush1.msra.mxu0 0.0
  %1980 = vmatprep.subr.mxu0 0.0
  %1981 = vmatpush1.msra.mxu0 0.0
  %1982 = vmatprep.subr.mxu0 0.0
  %1983 = vmatpush1.msra.mxu0 0.0
  %1984 = vmatprep.subr.mxu0 0.0
  %1985 = vmatpush1.msra.mxu0 0.0
  %1986 = vmatprep.subr.mxu0 0.0
  %1987 = vmatpush1.msra.mxu0 0.0
  %1988 = vmatprep.subr.mxu0 0.0
  %1989 = vmatpush1.msra.mxu0 0.0
  %1990 = vmatprep.mubr.f32.mxu0 0.0
  %1991 = vmatmul.mubr.f32.gmra.mrb[0].mxu0 %v1924
  %v1992 = vpop.f32.mrb[0].mxu0
  %v1993 = vadd.f32 0.0, %v1992
  %v1994 = vpop.f32.mrb[0].mxu0
  %1995 = vdwg.mxu0
  %v1996 = vadd.f32 %v1921, %v1993
  %v1997 = vxor.u32 %v1996, 2147483648
  %v1998 = vmul.f32 %v1997, 1.442695
  %v1999 = vpow.pop %v1998
  %v2000 = vadd.f32 %v1999, 1.0
  %v2001 = vrcp.pop %v2000
  %v2002 = vmul.f32 1.0, %v2001
  %v2003 = vtanh.pop %v1996
  %v2004 = vld [vmem:[#allocation6] sm:$0x3]
  %2006 = vrot.lane.b32.xlu0 %v2004, 32
  %v2007 = vpop.permute.xlu0 %2006
  %v2009 = vmul.f32 %v2002, %v2007
  %2011 = vrot.lane.b32.xlu0 %v2003, 64
  %v2012 = vpop.permute.xlu0 %2011
  %v2014 = vmul.f32 %v2002, %v2012
  %2016 = vrot.lane.b32.xlu0 %v2014, 32
  %v2017 = vpop.permute.xlu0 %2016
  %v2019 = vadd.f32 %v2009, %v2017
  %2021 = vrot.lane.b32.xlu0 %v2019, 96
  %v2022 = vpop.permute.xlu0 %2021
  %2024 = vst.msk [vmem:[#allocation6] sm:$0x3] %vm1678, %v2022
  %v2025 = vtanh.pop %v2019
  %2027 = vrot.lane.b32.xlu0 %v2025, 64
  %v2028 = vpop.permute.xlu0 %2027
  %v2030 = vmul.f32 %v2002, %v2028
  %2032 = vrot.lane.b32.xlu0 %v2030, 32
  %v2033 = vpop.permute.xlu0 %2032
  %2035 = vst.msk [vmem:[#allocation3 + $0x6] sm:$0x3] %vm1678, %v2033
  %v2036 = vld [vmem:[#allocation5 + $0x8] sm:$0x3]
  %v2037 = vld [vmem:[#allocation3 + $0x6] sm:$0x3]
  %v2039 = vsel %vm186, %v2037, 0
  %2041 = vmatprep.subr.mxu0 0.0
  %2042 = vmatpush1.msra.mxu0 %v1661
  %2043 = vmatprep.subr.mxu0 0.0
  %2044 = vmatpush1.msra.mxu0 %v1662
  %2045 = vmatprep.subr.mxu0 0.0
  %2046 = vmatpush1.msra.mxu0 %v1663
  %2047 = vmatprep.subr.mxu0 0.0
  %2048 = vmatpush1.msra.mxu0 %v1664
  %2049 = vmatprep.subr.mxu0 0.0
  %2050 = vmatpush1.msra.mxu0 0.0
  %2051 = vmatprep.subr.mxu0 0.0
  %2052 = vmatpush1.msra.mxu0 0.0
  %2053 = vmatprep.subr.mxu0 0.0
  %2054 = vmatpush1.msra.mxu0 0.0
  %2055 = vmatprep.subr.mxu0 0.0
  %2056 = vmatpush1.msra.mxu0 0.0
  %2057 = vmatprep.subr.mxu0 0.0
  %2058 = vmatpush1.msra.mxu0 0.0
  %2059 = vmatprep.subr.mxu0 0.0
  %2060 = vmatpush1.msra.mxu0 0.0
  %2061 = vmatprep.subr.mxu0 0.0
  %2062 = vmatpush1.msra.mxu0 0.0
  %2063 = vmatprep.subr.mxu0 0.0
  %2064 = vmatpush1.msra.mxu0 0.0
  %2065 = vmatprep.subr.mxu0 0.0
  %2066 = vmatpush1.msra.mxu0 0.0
  %2067 = vmatprep.subr.mxu0 0.0
  %2068 = vmatpush1.msra.mxu0 0.0
  %2069 = vmatprep.subr.mxu0 0.0
  %2070 = vmatpush1.msra.mxu0 0.0
  %2071 = vmatprep.subr.mxu0 0.0
  %2072 = vmatpush1.msra.mxu0 0.0
  %2073 = vmatprep.subr.mxu0 0.0
  %2074 = vmatpush1.msra.mxu0 0.0
  %2075 = vmatprep.subr.mxu0 0.0
  %2076 = vmatpush1.msra.mxu0 0.0
  %2077 = vmatprep.subr.mxu0 0.0
  %2078 = vmatpush1.msra.mxu0 0.0
  %2079 = vmatprep.subr.mxu0 0.0
  %2080 = vmatpush1.msra.mxu0 0.0
  %2081 = vmatprep.subr.mxu0 0.0
  %2082 = vmatpush1.msra.mxu0 0.0
  %2083 = vmatprep.subr.mxu0 0.0
  %2084 = vmatpush1.msra.mxu0 0.0
  %2085 = vmatprep.subr.mxu0 0.0
  %2086 = vmatpush1.msra.mxu0 0.0
  %2087 = vmatprep.subr.mxu0 0.0
  %2088 = vmatpush1.msra.mxu0 0.0
  %2089 = vmatprep.subr.mxu0 0.0
  %2090 = vmatpush1.msra.mxu0 0.0
  %2091 = vmatprep.subr.mxu0 0.0
  %2092 = vmatpush1.msra.mxu0 0.0
  %2093 = vmatprep.subr.mxu0 0.0
  %2094 = vmatpush1.msra.mxu0 0.0
  %2095 = vmatprep.subr.mxu0 0.0
  %2096 = vmatpush1.msra.mxu0 0.0
  %2097 = vmatprep.subr.mxu0 0.0
  %2098 = vmatpush1.msra.mxu0 0.0
  %2099 = vmatprep.subr.mxu0 0.0
  %2100 = vmatpush1.msra.mxu0 0.0
  %2101 = vmatprep.subr.mxu0 0.0
  %2102 = vmatpush1.msra.mxu0 0.0
  %2103 = vmatprep.subr.mxu0 0.0
  %2104 = vmatpush1.msra.mxu0 0.0
  %2105 = vmatprep.mubr.f32.mxu0 0.0
  %2106 = vmatmul.mubr.f32.gmra.mrb[0].mxu0 %v2039
  %v2107 = vpop.f32.mrb[0].mxu0
  %v2108 = vadd.f32 0.0, %v2107
  %v2109 = vpop.f32.mrb[0].mxu0
  %2110 = vdwg.mxu0
  %v2111 = vadd.f32 %v2036, %v2108
  %v2112 = vxor.u32 %v2111, 2147483648
  %v2113 = vmul.f32 %v2112, 1.442695
  %v2114 = vpow.pop %v2113
  %v2115 = vadd.f32 %v2114, 1.0
  %v2116 = vrcp.pop %v2115
  %v2117 = vmul.f32 1.0, %v2116
  %v2118 = vtanh.pop %v2111
  %v2119 = vld [vmem:[#allocation6] sm:$0x3]
  %2121 = vrot.lane.b32.xlu0 %v2119, 32
  %v2122 = vpop.permute.xlu0 %2121
  %v2124 = vmul.f32 %v2117, %v2122
  %2126 = vrot.lane.b32.xlu0 %v2118, 64
  %v2127 = vpop.permute.xlu0 %2126
  %v2129 = vmul.f32 %v2117, %v2127
  %2131 = vrot.lane.b32.xlu0 %v2129, 32
  %v2132 = vpop.permute.xlu0 %2131
  %v2134 = vadd.f32 %v2124, %v2132
  %2136 = vrot.lane.b32.xlu0 %v2134, 96
  %v2137 = vpop.permute.xlu0 %2136
  %2139 = vst.msk [vmem:[#allocation6] sm:$0x3] %vm1678, %v2137
  %v2140 = vtanh.pop %v2134
  %2142 = vrot.lane.b32.xlu0 %v2140, 64
  %v2143 = vpop.permute.xlu0 %2142
  %v2145 = vmul.f32 %v2117, %v2143
  %2147 = vrot.lane.b32.xlu0 %v2145, 32
  %v2148 = vpop.permute.xlu0 %2147
  %2150 = vst.msk [vmem:[#allocation3 + $0x8] sm:$0x3] %vm1678, %v2148
  %v2151 = vld [vmem:[#allocation5 + $0xa] sm:$0x3]
  %v2152 = vld [vmem:[#allocation3 + $0x8] sm:$0x3]
  %v2154 = vsel %vm186, %v2152, 0
  %2156 = vmatprep.subr.mxu0 0.0
  %2157 = vmatpush1.msra.mxu0 %v1661
  %2158 = vmatprep.subr.mxu0 0.0
  %2159 = vmatpush1.msra.mxu0 %v1662
  %2160 = vmatprep.subr.mxu0 0.0
  %2161 = vmatpush1.msra.mxu0 %v1663
  %2162 = vmatprep.subr.mxu0 0.0
  %2163 = vmatpush1.msra.mxu0 %v1664
  %2164 = vmatprep.subr.mxu0 0.0
  %2165 = vmatpush1.msra.mxu0 0.0
  %2166 = vmatprep.subr.mxu0 0.0
  %2167 = vmatpush1.msra.mxu0 0.0
  %2168 = vmatprep.subr.mxu0 0.0
  %2169 = vmatpush1.msra.mxu0 0.0
  %2170 = vmatprep.subr.mxu0 0.0
  %2171 = vmatpush1.msra.mxu0 0.0
  %2172 = vmatprep.subr.mxu0 0.0
  %2173 = vmatpush1.msra.mxu0 0.0
  %2174 = vmatprep.subr.mxu0 0.0
  %2175 = vmatpush1.msra.mxu0 0.0
  %2176 = vmatprep.subr.mxu0 0.0
  %2177 = vmatpush1.msra.mxu0 0.0
  %2178 = vmatprep.subr.mxu0 0.0
  %2179 = vmatpush1.msra.mxu0 0.0
  %2180 = vmatprep.subr.mxu0 0.0
  %2181 = vmatpush1.msra.mxu0 0.0
  %2182 = vmatprep.subr.mxu0 0.0
  %2183 = vmatpush1.msra.mxu0 0.0
  %2184 = vmatprep.subr.mxu0 0.0
  %2185 = vmatpush1.msra.mxu0 0.0
  %2186 = vmatprep.subr.mxu0 0.0
  %2187 = vmatpush1.msra.mxu0 0.0
  %2188 = vmatprep.subr.mxu0 0.0
  %2189 = vmatpush1.msra.mxu0 0.0
  %2190 = vmatprep.subr.mxu0 0.0
  %2191 = vmatpush1.msra.mxu0 0.0
  %2192 = vmatprep.subr.mxu0 0.0
  %2193 = vmatpush1.msra.mxu0 0.0
  %2194 = vmatprep.subr.mxu0 0.0
  %2195 = vmatpush1.msra.mxu0 0.0
  %2196 = vmatprep.subr.mxu0 0.0
  %2197 = vmatpush1.msra.mxu0 0.0
  %2198 = vmatprep.subr.mxu0 0.0
  %2199 = vmatpush1.msra.mxu0 0.0
  %2200 = vmatprep.subr.mxu0 0.0
  %2201 = vmatpush1.msra.mxu0 0.0
  %2202 = vmatprep.subr.mxu0 0.0
  %2203 = vmatpush1.msra.mxu0 0.0
  %2204 = vmatprep.subr.mxu0 0.0
  %2205 = vmatpush1.msra.mxu0 0.0
  %2206 = vmatprep.subr.mxu0 0.0
  %2207 = vmatpush1.msra.mxu0 0.0
  %2208 = vmatprep.subr.mxu0 0.0
  %2209 = vmatpush1.msra.mxu0 0.0
  %2210 = vmatprep.subr.mxu0 0.0
  %2211 = vmatpush1.msra.mxu0 0.0
  %2212 = vmatprep.subr.mxu0 0.0
  %2213 = vmatpush1.msra.mxu0 0.0
  %2214 = vmatprep.subr.mxu0 0.0
  %2215 = vmatpush1.msra.mxu0 0.0
  %2216 = vmatprep.subr.mxu0 0.0
  %2217 = vmatpush1.msra.mxu0 0.0
  %2218 = vmatprep.subr.mxu0 0.0
  %2219 = vmatpush1.msra.mxu0 0.0
  %2220 = vmatprep.mubr.f32.mxu0 0.0
  %2221 = vmatmul.mubr.f32.gmra.mrb[0].mxu0 %v2154
  %v2222 = vpop.f32.mrb[0].mxu0
  %v2223 = vadd.f32 0.0, %v2222
  %v2224 = vpop.f32.mrb[0].mxu0
  %2225 = vdwg.mxu0
  %v2226 = vadd.f32 %v2151, %v2223
  %v2227 = vxor.u32 %v2226, 2147483648
  %v2228 = vmul.f32 %v2227, 1.442695
  %v2229 = vpow.pop %v2228
  %v2230 = vadd.f32 %v2229, 1.0
  %v2231 = vrcp.pop %v2230
  %v2232 = vmul.f32 1.0, %v2231
  %v2233 = vtanh.pop %v2226
  %v2234 = vld [vmem:[#allocation6] sm:$0x3]
  %2236 = vrot.lane.b32.xlu0 %v2234, 32
  %v2237 = vpop.permute.xlu0 %2236
  %v2239 = vmul.f32 %v2232, %v2237
  %2241 = vrot.lane.b32.xlu0 %v2233, 64
  %v2242 = vpop.permute.xlu0 %2241
  %v2244 = vmul.f32 %v2232, %v2242
  %2246 = vrot.lane.b32.xlu0 %v2244, 32
  %v2247 = vpop.permute.xlu0 %2246
  %v2249 = vadd.f32 %v2239, %v2247
  %2251 = vrot.lane.b32.xlu0 %v2249, 96
  %v2252 = vpop.permute.xlu0 %2251
  %2254 = vst.msk [vmem:[#allocation6] sm:$0x3] %vm1678, %v2252
  %v2255 = vtanh.pop %v2249
  %2257 = vrot.lane.b32.xlu0 %v2255, 64
  %v2258 = vpop.permute.xlu0 %2257
  %v2260 = vmul.f32 %v2232, %v2258
  %2262 = vrot.lane.b32.xlu0 %v2260, 32
  %v2263 = vpop.permute.xlu0 %2262
  %2265 = vst.msk [vmem:[#allocation3 + $0xa] sm:$0x3] %vm1678, %v2263
  %v2266 = vld [vmem:[#allocation5 + $0xc] sm:$0x1]
  %v2267 = vld [vmem:[#allocation3 + $0xa] sm:$0x1]
  %v2269 = vsel %vm186, %v2267, 0
  %2271 = vmatprep.subr.mxu0 0.0
  %2272 = vmatpush1.msra.mxu0 %v1661
  %2273 = vmatprep.subr.mxu0 0.0
  %2274 = vmatpush1.msra.mxu0 %v1662
  %2275 = vmatprep.subr.mxu0 0.0
  %2276 = vmatpush1.msra.mxu0 %v1663
  %2277 = vmatprep.subr.mxu0 0.0
  %2278 = vmatpush1.msra.mxu0 %v1664
  %2279 = vmatprep.subr.mxu0 0.0
  %2280 = vmatpush1.msra.mxu0 0.0
  %2281 = vmatprep.subr.mxu0 0.0
  %2282 = vmatpush1.msra.mxu0 0.0
  %2283 = vmatprep.subr.mxu0 0.0
  %2284 = vmatpush1.msra.mxu0 0.0
  %2285 = vmatprep.subr.mxu0 0.0
  %2286 = vmatpush1.msra.mxu0 0.0
  %2287 = vmatprep.subr.mxu0 0.0
  %2288 = vmatpush1.msra.mxu0 0.0
  %2289 = vmatprep.subr.mxu0 0.0
  %2290 = vmatpush1.msra.mxu0 0.0
  %2291 = vmatprep.subr.mxu0 0.0
  %2292 = vmatpush1.msra.mxu0 0.0
  %2293 = vmatprep.subr.mxu0 0.0
  %2294 = vmatpush1.msra.mxu0 0.0
  %2295 = vmatprep.subr.mxu0 0.0
  %2296 = vmatpush1.msra.mxu0 0.0
  %2297 = vmatprep.subr.mxu0 0.0
  %2298 = vmatpush1.msra.mxu0 0.0
  %2299 = vmatprep.subr.mxu0 0.0
  %2300 = vmatpush1.msra.mxu0 0.0
  %2301 = vmatprep.subr.mxu0 0.0
  %2302 = vmatpush1.msra.mxu0 0.0
  %2303 = vmatprep.subr.mxu0 0.0
  %2304 = vmatpush1.msra.mxu0 0.0
  %2305 = vmatprep.subr.mxu0 0.0
  %2306 = vmatpush1.msra.mxu0 0.0
  %2307 = vmatprep.subr.mxu0 0.0
  %2308 = vmatpush1.msra.mxu0 0.0
  %2309 = vmatprep.subr.mxu0 0.0
  %2310 = vmatpush1.msra.mxu0 0.0
  %2311 = vmatprep.subr.mxu0 0.0
  %2312 = vmatpush1.msra.mxu0 0.0
  %2313 = vmatprep.subr.mxu0 0.0
  %2314 = vmatpush1.msra.mxu0 0.0
  %2315 = vmatprep.subr.mxu0 0.0
  %2316 = vmatpush1.msra.mxu0 0.0
  %2317 = vmatprep.subr.mxu0 0.0
  %2318 = vmatpush1.msra.mxu0 0.0
  %2319 = vmatprep.subr.mxu0 0.0
  %2320 = vmatpush1.msra.mxu0 0.0
  %2321 = vmatprep.subr.mxu0 0.0
  %2322 = vmatpush1.msra.mxu0 0.0
  %2323 = vmatprep.subr.mxu0 0.0
  %2324 = vmatpush1.msra.mxu0 0.0
  %2325 = vmatprep.subr.mxu0 0.0
  %2326 = vmatpush1.msra.mxu0 0.0
  %2327 = vmatprep.subr.mxu0 0.0
  %2328 = vmatpush1.msra.mxu0 0.0
  %2329 = vmatprep.subr.mxu0 0.0
  %2330 = vmatpush1.msra.mxu0 0.0
  %2331 = vmatprep.subr.mxu0 0.0
  %2332 = vmatpush1.msra.mxu0 0.0
  %2333 = vmatprep.subr.mxu0 0.0
  %2334 = vmatpush1.msra.mxu0 0.0
  %2335 = vmatprep.mubr.f32.mxu0 0.0
  %2336 = vmatmul.mubr.f32.gmra.mrb[0].mxu0 %v2269
  %v2337 = vpop.f32.mrb[0].mxu0
  %v2338 = vadd.f32 0.0, %v2337
  %v2339 = vpop.f32.mrb[0].mxu0
  %2340 = vdwg.mxu0
  %v2341 = vadd.f32 %v2266, %v2338
  %v2342 = vxor.u32 %v2341, 2147483648
  %v2343 = vmul.f32 %v2342, 1.442695
  %v2344 = vpow.pop %v2343
  %v2345 = vadd.f32 %v2344, 1.0
  %v2346 = vrcp.pop %v2345
  %v2347 = vmul.f32 1.0, %v2346
  %v2348 = vtanh.pop %v2341
  %v2349 = vld [vmem:[#allocation6] sm:$0x1]
  %2351 = vrot.lane.b32.xlu0 %v2349, 32
  %v2352 = vpop.permute.xlu0 %2351
  %v2354 = vmul.f32 %v2347, %v2352
  %2356 = vrot.lane.b32.xlu0 %v2348, 64
  %v2357 = vpop.permute.xlu0 %2356
  %v2359 = vmul.f32 %v2347, %v2357
  %2361 = vrot.lane.b32.xlu0 %v2359, 32
  %v2362 = vpop.permute.xlu0 %2361
  %v2364 = vadd.f32 %v2354, %v2362
  %2366 = vrot.lane.b32.xlu0 %v2364, 96
  %v2367 = vpop.permute.xlu0 %2366
  %2369 = vst.msk [vmem:[#allocation6] sm:$0x1] %vm171, %v2367
  %v2370 = vtanh.pop %v2364
  %2372 = vrot.lane.b32.xlu0 %v2370, 64
  %v2373 = vpop.permute.xlu0 %2372
  %v2375 = vmul.f32 %v2347, %v2373
  %2377 = vrot.lane.b32.xlu0 %v2375, 32
  %v2378 = vpop.permute.xlu0 %2377
  %2380 = vst.msk [vmem:[#allocation3 + $0xc] sm:$0x1] %vm171, %v2378
  %v2381 = vld [vmem:[#allocation3] sm:$0xff]
  %v2382 = vld [vmem:[#allocation3 + $0x8] sm:$0x1f]
  %v2383 = vld [vmem:[%s7] sm:$0xff]
  %v2384 = vld [vmem:[%s7 + $0x8] sm:$0xff]
  %v2385 = vld [vmem:[%s7 + $0x10] sm:$0xff]
  %v2386 = vld [vmem:[%s7 + $0x18] sm:$0xff]
  %v2387 = vld [vmem:[%s9] sm:$0x1]
  %v2389 = vlaneseq
  %v2390 = vshrl.u32 %v2389, 7
  %v2391 = vsub.s32 0, %v2390
  %v2392 = vrot.slane %v2387, %v2391
  %v2395 = vsel %vm186, %v2381, 0
  %v2398 = vsel %vm186, %v2382, 0
  %2400 = vmatprep.subr.mxu0 0.0
  %2401 = vmatpush1.msra.mxu0 %v2383
  %2402 = vmatprep.subr.mxu0 0.0
  %2403 = vmatpush1.msra.mxu0 %v2384
  %2404 = vmatprep.subr.mxu0 0.0
  %2405 = vmatpush1.msra.mxu0 %v2385
  %2406 = vmatprep.subr.mxu0 0.0
  %2407 = vmatpush1.msra.mxu0 %v2386
  %2408 = vmatprep.subr.mxu0 0.0
  %2409 = vmatpush1.msra.mxu0 0.0
  %2410 = vmatprep.subr.mxu0 0.0
  %2411 = vmatpush1.msra.mxu0 0.0
  %2412 = vmatprep.subr.mxu0 0.0
  %2413 = vmatpush1.msra.mxu0 0.0
  %2414 = vmatprep.subr.mxu0 0.0
  %2415 = vmatpush1.msra.mxu0 0.0
  %2416 = vmatprep.subr.mxu0 0.0
  %2417 = vmatpush1.msra.mxu0 0.0
  %2418 = vmatprep.subr.mxu0 0.0
  %2419 = vmatpush1.msra.mxu0 0.0
  %2420 = vmatprep.subr.mxu0 0.0
  %2421 = vmatpush1.msra.mxu0 0.0
  %2422 = vmatprep.subr.mxu0 0.0
  %2423 = vmatpush1.msra.mxu0 0.0
  %2424 = vmatprep.subr.mxu0 0.0
  %2425 = vmatpush1.msra.mxu0 0.0
  %2426 = vmatprep.subr.mxu0 0.0
  %2427 = vmatpush1.msra.mxu0 0.0
  %2428 = vmatprep.subr.mxu0 0.0
  %2429 = vmatpush1.msra.mxu0 0.0
  %2430 = vmatprep.subr.mxu0 0.0
  %2431 = vmatpush1.msra.mxu0 0.0
  %2432 = vmatprep.subr.mxu0 0.0
  %2433 = vmatpush1.msra.mxu0 0.0
  %2434 = vmatprep.subr.mxu0 0.0
  %2435 = vmatpush1.msra.mxu0 0.0
  %2436 = vmatprep.subr.mxu0 0.0
  %2437 = vmatpush1.msra.mxu0 0.0
  %2438 = vmatprep.subr.mxu0 0.0
  %2439 = vmatpush1.msra.mxu0 0.0
  %2440 = vmatprep.subr.mxu0 0.0
  %2441 = vmatpush1.msra.mxu0 0.0
  %2442 = vmatprep.subr.mxu0 0.0
  %2443 = vmatpush1.msra.mxu0 0.0
  %2444 = vmatprep.subr.mxu0 0.0
  %2445 = vmatpush1.msra.mxu0 0.0
  %2446 = vmatprep.subr.mxu0 0.0
  %2447 = vmatpush1.msra.mxu0 0.0
  %2448 = vmatprep.subr.mxu0 0.0
  %2449 = vmatpush1.msra.mxu0 0.0
  %2450 = vmatprep.subr.mxu0 0.0
  %2451 = vmatpush1.msra.mxu0 0.0
  %2452 = vmatprep.subr.mxu0 0.0
  %2453 = vmatpush1.msra.mxu0 0.0
  %2454 = vmatprep.subr.mxu0 0.0
  %2455 = vmatpush1.msra.mxu0 0.0
  %2456 = vmatprep.subr.mxu0 0.0
  %2457 = vmatpush1.msra.mxu0 0.0
  %2458 = vmatprep.subr.mxu0 0.0
  %2459 = vmatpush1.msra.mxu0 0.0
  %2460 = vmatprep.subr.mxu0 0.0
  %2461 = vmatpush1.msra.mxu0 0.0
  %2462 = vmatprep.subr.mxu0 0.0
  %2463 = vmatpush1.msra.mxu0 0.0
  %2464 = vmatprep.mubr.f32.mxu0 0.0
  %2465 = vmatmul.mubr.f32.gmra.mrb[0].mxu0 %v2395
  %v2466 = vpop.f32.mrb[0].mxu0
  %v2467 = vadd.f32 %v2392, %v2466
  %v2468 = vpop.f32.mrb[0].mxu0
  %2469 = vmatprep.mubr.f32.mxu0 0.0
  %2470 = vmatmul.mubr.f32.gmra.mrb[0].mxu0 %v2398
  %v2471 = vpop.f32.mrb[0].mxu0
  %v2472 = vadd.f32 %v2392, %v2471
  %v2473 = vpop.f32.mrb[0].mxu0
  %2474 = vdwg.mxu0
  %2475 = vst [vmem:[#allocation5] sm:$0xff] %v2467
  %2476 = vst [vmem:[#allocation5 + $0x8] sm:$0x1f] %v2472
  %v2477 = vld [vmem:[%s8] sm:$0xff]
  %v2478 = vld [vmem:[%s8 + $0x8] sm:$0xff]
  %v2479 = vld [vmem:[%s8 + $0x10] sm:$0xff]
  %v2480 = vld [vmem:[%s8 + $0x18] sm:$0xff]
  %v2481 = vld [vmem:[#allocation5] sm:$0x3]
  %v2482 = vxor.u32 %v2481, 2147483648
  %v2483 = vmul.f32 %v2482, 1.442695
  %v2484 = vpow.pop %v2483
  %v2485 = vadd.f32 %v2484, 1.0
  %v2486 = vrcp.pop %v2485
  %v2487 = vmul.f32 1.0, %v2486
  %v2488 = vtanh.pop %v2481
  %2490 = vrot.lane.b32.xlu0 %v2488, 64
  %v2491 = vpop.permute.xlu0 %2490
  %v2493 = vmul.f32 %v2487, %v2491
  %2494 = vst.msk [vmem:[#allocation6] sm:$0x3] %vm1678, %v2493
  %v2495 = vtanh.pop %v2493
  %2497 = vrot.lane.b32.xlu0 %v2495, 96
  %v2498 = vpop.permute.xlu0 %2497
  %v2500 = vmul.f32 %v2487, %v2498
  %2502 = vrot.lane.b32.xlu0 %v2500, 32
  %v2503 = vpop.permute.xlu0 %2502
  %2505 = vst.msk [vmem:[#allocation2] sm:$0x3] %vm1678, %v2503
  %v2506 = vld [vmem:[#allocation5 + $0x2] sm:$0x3]
  %v2507 = vld [vmem:[#allocation2] sm:$0x3]
  %v2509 = vsel %vm186, %v2507, 0
  %2511 = vmatprep.subr.mxu0 0.0
  %2512 = vmatpush1.msra.mxu0 %v2477
  %2513 = vmatprep.subr.mxu0 0.0
  %2514 = vmatpush1.msra.mxu0 %v2478
  %2515 = vmatprep.subr.mxu0 0.0
  %2516 = vmatpush1.msra.mxu0 %v2479
  %2517 = vmatprep.subr.mxu0 0.0
  %2518 = vmatpush1.msra.mxu0 %v2480
  %2519 = vmatprep.subr.mxu0 0.0
  %2520 = vmatpush1.msra.mxu0 0.0
  %2521 = vmatprep.subr.mxu0 0.0
  %2522 = vmatpush1.msra.mxu0 0.0
  %2523 = vmatprep.subr.mxu0 0.0
  %2524 = vmatpush1.msra.mxu0 0.0
  %2525 = vmatprep.subr.mxu0 0.0
  %2526 = vmatpush1.msra.mxu0 0.0
  %2527 = vmatprep.subr.mxu0 0.0
  %2528 = vmatpush1.msra.mxu0 0.0
  %2529 = vmatprep.subr.mxu0 0.0
  %2530 = vmatpush1.msra.mxu0 0.0
  %2531 = vmatprep.subr.mxu0 0.0
  %2532 = vmatpush1.msra.mxu0 0.0
  %2533 = vmatprep.subr.mxu0 0.0
  %2534 = vmatpush1.msra.mxu0 0.0
  %2535 = vmatprep.subr.mxu0 0.0
  %2536 = vmatpush1.msra.mxu0 0.0
  %2537 = vmatprep.subr.mxu0 0.0
  %2538 = vmatpush1.msra.mxu0 0.0
  %2539 = vmatprep.subr.mxu0 0.0
  %2540 = vmatpush1.msra.mxu0 0.0
  %2541 = vmatprep.subr.mxu0 0.0
  %2542 = vmatpush1.msra.mxu0 0.0
  %2543 = vmatprep.subr.mxu0 0.0
  %2544 = vmatpush1.msra.mxu0 0.0
  %2545 = vmatprep.subr.mxu0 0.0
  %2546 = vmatpush1.msra.mxu0 0.0
  %2547 = vmatprep.subr.mxu0 0.0
  %2548 = vmatpush1.msra.mxu0 0.0
  %2549 = vmatprep.subr.mxu0 0.0
  %2550 = vmatpush1.msra.mxu0 0.0
  %2551 = vmatprep.subr.mxu0 0.0
  %2552 = vmatpush1.msra.mxu0 0.0
  %2553 = vmatprep.subr.mxu0 0.0
  %2554 = vmatpush1.msra.mxu0 0.0
  %2555 = vmatprep.subr.mxu0 0.0
  %2556 = vmatpush1.msra.mxu0 0.0
  %2557 = vmatprep.subr.mxu0 0.0
  %2558 = vmatpush1.msra.mxu0 0.0
  %2559 = vmatprep.subr.mxu0 0.0
  %2560 = vmatpush1.msra.mxu0 0.0
  %2561 = vmatprep.subr.mxu0 0.0
  %2562 = vmatpush1.msra.mxu0 0.0
  %2563 = vmatprep.subr.mxu0 0.0
  %2564 = vmatpush1.msra.mxu0 0.0
  %2565 = vmatprep.subr.mxu0 0.0
  %2566 = vmatpush1.msra.mxu0 0.0
  %2567 = vmatprep.subr.mxu0 0.0
  %2568 = vmatpush1.msra.mxu0 0.0
  %2569 = vmatprep.subr.mxu0 0.0
  %2570 = vmatpush1.msra.mxu0 0.0
  %2571 = vmatprep.subr.mxu0 0.0
  %2572 = vmatpush1.msra.mxu0 0.0
  %2573 = vmatprep.subr.mxu0 0.0
  %2574 = vmatpush1.msra.mxu0 0.0
  %2575 = vmatprep.mubr.f32.mxu0 0.0
  %2576 = vmatmul.mubr.f32.gmra.mrb[0].mxu0 %v2509
  %v2577 = vpop.f32.mrb[0].mxu0
  %v2578 = vadd.f32 0.0, %v2577
  %v2579 = vpop.f32.mrb[0].mxu0
  %2580 = vdwg.mxu0
  %v2581 = vadd.f32 %v2506, %v2578
  %v2582 = vxor.u32 %v2581, 2147483648
  %v2583 = vmul.f32 %v2582, 1.442695
  %v2584 = vpow.pop %v2583
  %v2585 = vadd.f32 %v2584, 1.0
  %v2586 = vrcp.pop %v2585
  %v2587 = vmul.f32 1.0, %v2586
  %v2588 = vtanh.pop %v2581
  %v2589 = vld [vmem:[#allocation6] sm:$0x3]
  %2591 = vrot.lane.b32.xlu0 %v2589, 32
  %v2592 = vpop.permute.xlu0 %2591
  %v2594 = vmul.f32 %v2587, %v2592
  %2596 = vrot.lane.b32.xlu0 %v2588, 64
  %v2597 = vpop.permute.xlu0 %2596
  %v2599 = vmul.f32 %v2587, %v2597
  %2601 = vrot.lane.b32.xlu0 %v2599, 32
  %v2602 = vpop.permute.xlu0 %2601
  %v2604 = vadd.f32 %v2594, %v2602
  %2606 = vrot.lane.b32.xlu0 %v2604, 96
  %v2607 = vpop.permute.xlu0 %2606
  %2609 = vst.msk [vmem:[#allocation6] sm:$0x3] %vm1678, %v2607
  %v2610 = vtanh.pop %v2604
  %2612 = vrot.lane.b32.xlu0 %v2610, 64
  %v2613 = vpop.permute.xlu0 %2612
  %v2615 = vmul.f32 %v2587, %v2613
  %2617 = vrot.lane.b32.xlu0 %v2615, 32
  %v2618 = vpop.permute.xlu0 %2617
  %2620 = vst.msk [vmem:[#allocation2 + $0x2] sm:$0x3] %vm1678, %v2618
  %v2621 = vld [vmem:[#allocation5 + $0x4] sm:$0x3]
  %v2622 = vld [vmem:[#allocation2 + $0x2] sm:$0x3]
  %v2624 = vsel %vm186, %v2622, 0
  %2626 = vmatprep.subr.mxu0 0.0
  %2627 = vmatpush1.msra.mxu0 %v2477
  %2628 = vmatprep.subr.mxu0 0.0
  %2629 = vmatpush1.msra.mxu0 %v2478
  %2630 = vmatprep.subr.mxu0 0.0
  %2631 = vmatpush1.msra.mxu0 %v2479
  %2632 = vmatprep.subr.mxu0 0.0
  %2633 = vmatpush1.msra.mxu0 %v2480
  %2634 = vmatprep.subr.mxu0 0.0
  %2635 = vmatpush1.msra.mxu0 0.0
  %2636 = vmatprep.subr.mxu0 0.0
  %2637 = vmatpush1.msra.mxu0 0.0
  %2638 = vmatprep.subr.mxu0 0.0
  %2639 = vmatpush1.msra.mxu0 0.0
  %2640 = vmatprep.subr.mxu0 0.0
  %2641 = vmatpush1.msra.mxu0 0.0
  %2642 = vmatprep.subr.mxu0 0.0
  %2643 = vmatpush1.msra.mxu0 0.0
  %2644 = vmatprep.subr.mxu0 0.0
  %2645 = vmatpush1.msra.mxu0 0.0
  %2646 = vmatprep.subr.mxu0 0.0
  %2647 = vmatpush1.msra.mxu0 0.0
  %2648 = vmatprep.subr.mxu0 0.0
  %2649 = vmatpush1.msra.mxu0 0.0
  %2650 = vmatprep.subr.mxu0 0.0
  %2651 = vmatpush1.msra.mxu0 0.0
  %2652 = vmatprep.subr.mxu0 0.0
  %2653 = vmatpush1.msra.mxu0 0.0
  %2654 = vmatprep.subr.mxu0 0.0
  %2655 = vmatpush1.msra.mxu0 0.0
  %2656 = vmatprep.subr.mxu0 0.0
  %2657 = vmatpush1.msra.mxu0 0.0
  %2658 = vmatprep.subr.mxu0 0.0
  %2659 = vmatpush1.msra.mxu0 0.0
  %2660 = vmatprep.subr.mxu0 0.0
  %2661 = vmatpush1.msra.mxu0 0.0
  %2662 = vmatprep.subr.mxu0 0.0
  %2663 = vmatpush1.msra.mxu0 0.0
  %2664 = vmatprep.subr.mxu0 0.0
  %2665 = vmatpush1.msra.mxu0 0.0
  %2666 = vmatprep.subr.mxu0 0.0
  %2667 = vmatpush1.msra.mxu0 0.0
  %2668 = vmatprep.subr.mxu0 0.0
  %2669 = vmatpush1.msra.mxu0 0.0
  %2670 = vmatprep.subr.mxu0 0.0
  %2671 = vmatpush1.msra.mxu0 0.0
  %2672 = vmatprep.subr.mxu0 0.0
  %2673 = vmatpush1.msra.mxu0 0.0
  %2674 = vmatprep.subr.mxu0 0.0
  %2675 = vmatpush1.msra.mxu0 0.0
  %2676 = vmatprep.subr.mxu0 0.0
  %2677 = vmatpush1.msra.mxu0 0.0
  %2678 = vmatprep.subr.mxu0 0.0
  %2679 = vmatpush1.msra.mxu0 0.0
  %2680 = vmatprep.subr.mxu0 0.0
  %2681 = vmatpush1.msra.mxu0 0.0
  %2682 = vmatprep.subr.mxu0 0.0
  %2683 = vmatpush1.msra.mxu0 0.0
  %2684 = vmatprep.subr.mxu0 0.0
  %2685 = vmatpush1.msra.mxu0 0.0
  %2686 = vmatprep.subr.mxu0 0.0
  %2687 = vmatpush1.msra.mxu0 0.0
  %2688 = vmatprep.subr.mxu0 0.0
  %2689 = vmatpush1.msra.mxu0 0.0
  %2690 = vmatprep.mubr.f32.mxu0 0.0
  %2691 = vmatmul.mubr.f32.gmra.mrb[0].mxu0 %v2624
  %v2692 = vpop.f32.mrb[0].mxu0
  %v2693 = vadd.f32 0.0, %v2692
  %v2694 = vpop.f32.mrb[0].mxu0
  %2695 = vdwg.mxu0
  %v2696 = vadd.f32 %v2621, %v2693
  %v2697 = vxor.u32 %v2696, 2147483648
  %v2698 = vmul.f32 %v2697, 1.442695
  %v2699 = vpow.pop %v2698
  %v2700 = vadd.f32 %v2699, 1.0
  %v2701 = vrcp.pop %v2700
  %v2702 = vmul.f32 1.0, %v2701
  %v2703 = vtanh.pop %v2696
  %v2704 = vld [vmem:[#allocation6] sm:$0x3]
  %2706 = vrot.lane.b32.xlu0 %v2704, 32
  %v2707 = vpop.permute.xlu0 %2706
  %v2709 = vmul.f32 %v2702, %v2707
  %2711 = vrot.lane.b32.xlu0 %v2703, 64
  %v2712 = vpop.permute.xlu0 %2711
  %v2714 = vmul.f32 %v2702, %v2712
  %2716 = vrot.lane.b32.xlu0 %v2714, 32
  %v2717 = vpop.permute.xlu0 %2716
  %v2719 = vadd.f32 %v2709, %v2717
  %2721 = vrot.lane.b32.xlu0 %v2719, 96
  %v2722 = vpop.permute.xlu0 %2721
  %2724 = vst.msk [vmem:[#allocation6] sm:$0x3] %vm1678, %v2722
  %v2725 = vtanh.pop %v2719
  %2727 = vrot.lane.b32.xlu0 %v2725, 64
  %v2728 = vpop.permute.xlu0 %2727
  %v2730 = vmul.f32 %v2702, %v2728
  %2732 = vrot.lane.b32.xlu0 %v2730, 32
  %v2733 = vpop.permute.xlu0 %2732
  %2735 = vst.msk [vmem:[#allocation2 + $0x4] sm:$0x3] %vm1678, %v2733
  %v2736 = vld [vmem:[#allocation5 + $0x6] sm:$0x3]
  %v2737 = vld [vmem:[#allocation2 + $0x4] sm:$0x3]
  %v2739 = vsel %vm186, %v2737, 0
  %2741 = vmatprep.subr.mxu0 0.0
  %2742 = vmatpush1.msra.mxu0 %v2477
  %2743 = vmatprep.subr.mxu0 0.0
  %2744 = vmatpush1.msra.mxu0 %v2478
  %2745 = vmatprep.subr.mxu0 0.0
  %2746 = vmatpush1.msra.mxu0 %v2479
  %2747 = vmatprep.subr.mxu0 0.0
  %2748 = vmatpush1.msra.mxu0 %v2480
  %2749 = vmatprep.subr.mxu0 0.0
  %2750 = vmatpush1.msra.mxu0 0.0
  %2751 = vmatprep.subr.mxu0 0.0
  %2752 = vmatpush1.msra.mxu0 0.0
  %2753 = vmatprep.subr.mxu0 0.0
  %2754 = vmatpush1.msra.mxu0 0.0
  %2755 = vmatprep.subr.mxu0 0.0
  %2756 = vmatpush1.msra.mxu0 0.0
  %2757 = vmatprep.subr.mxu0 0.0
  %2758 = vmatpush1.msra.mxu0 0.0
  %2759 = vmatprep.subr.mxu0 0.0
  %2760 = vmatpush1.msra.mxu0 0.0
  %2761 = vmatprep.subr.mxu0 0.0
  %2762 = vmatpush1.msra.mxu0 0.0
  %2763 = vmatprep.subr.mxu0 0.0
  %2764 = vmatpush1.msra.mxu0 0.0
  %2765 = vmatprep.subr.mxu0 0.0
  %2766 = vmatpush1.msra.mxu0 0.0
  %2767 = vmatprep.subr.mxu0 0.0
  %2768 = vmatpush1.msra.mxu0 0.0
  %2769 = vmatprep.subr.mxu0 0.0
  %2770 = vmatpush1.msra.mxu0 0.0
  %2771 = vmatprep.subr.mxu0 0.0
  %2772 = vmatpush1.msra.mxu0 0.0
  %2773 = vmatprep.subr.mxu0 0.0
  %2774 = vmatpush1.msra.mxu0 0.0
  %2775 = vmatprep.subr.mxu0 0.0
  %2776 = vmatpush1.msra.mxu0 0.0
  %2777 = vmatprep.subr.mxu0 0.0
  %2778 = vmatpush1.msra.mxu0 0.0
  %2779 = vmatprep.subr.mxu0 0.0
  %2780 = vmatpush1.msra.mxu0 0.0
  %2781 = vmatprep.subr.mxu0 0.0
  %2782 = vmatpush1.msra.mxu0 0.0
  %2783 = vmatprep.subr.mxu0 0.0
  %2784 = vmatpush1.msra.mxu0 0.0
  %2785 = vmatprep.subr.mxu0 0.0
  %2786 = vmatpush1.msra.mxu0 0.0
  %2787 = vmatprep.subr.mxu0 0.0
  %2788 = vmatpush1.msra.mxu0 0.0
  %2789 = vmatprep.subr.mxu0 0.0
  %2790 = vmatpush1.msra.mxu0 0.0
  %2791 = vmatprep.subr.mxu0 0.0
  %2792 = vmatpush1.msra.mxu0 0.0
  %2793 = vmatprep.subr.mxu0 0.0
  %2794 = vmatpush1.msra.mxu0 0.0
  %2795 = vmatprep.subr.mxu0 0.0
  %2796 = vmatpush1.msra.mxu0 0.0
  %2797 = vmatprep.subr.mxu0 0.0
  %2798 = vmatpush1.msra.mxu0 0.0
  %2799 = vmatprep.subr.mxu0 0.0
  %2800 = vmatpush1.msra.mxu0 0.0
  %2801 = vmatprep.subr.mxu0 0.0
  %2802 = vmatpush1.msra.mxu0 0.0
  %2803 = vmatprep.subr.mxu0 0.0
  %2804 = vmatpush1.msra.mxu0 0.0
  %2805 = vmatprep.mubr.f32.mxu0 0.0
  %2806 = vmatmul.mubr.f32.gmra.mrb[0].mxu0 %v2739
  %v2807 = vpop.f32.mrb[0].mxu0
  %v2808 = vadd.f32 0.0, %v2807
  %v2809 = vpop.f32.mrb[0].mxu0
  %2810 = vdwg.mxu0
  %v2811 = vadd.f32 %v2736, %v2808
  %v2812 = vxor.u32 %v2811, 2147483648
  %v2813 = vmul.f32 %v2812, 1.442695
  %v2814 = vpow.pop %v2813
  %v2815 = vadd.f32 %v2814, 1.0
  %v2816 = vrcp.pop %v2815
  %v2817 = vmul.f32 1.0, %v2816
  %v2818 = vtanh.pop %v2811
  %v2819 = vld [vmem:[#allocation6] sm:$0x3]
  %2821 = vrot.lane.b32.xlu0 %v2819, 32
  %v2822 = vpop.permute.xlu0 %2821
  %v2824 = vmul.f32 %v2817, %v2822
  %2826 = vrot.lane.b32.xlu0 %v2818, 64
  %v2827 = vpop.permute.xlu0 %2826
  %v2829 = vmul.f32 %v2817, %v2827
  %2831 = vrot.lane.b32.xlu0 %v2829, 32
  %v2832 = vpop.permute.xlu0 %2831
  %v2834 = vadd.f32 %v2824, %v2832
  %2836 = vrot.lane.b32.xlu0 %v2834, 96
  %v2837 = vpop.permute.xlu0 %2836
  %2839 = vst.msk [vmem:[#allocation6] sm:$0x3] %vm1678, %v2837
  %v2840 = vtanh.pop %v2834
  %2842 = vrot.lane.b32.xlu0 %v2840, 64
  %v2843 = vpop.permute.xlu0 %2842
  %v2845 = vmul.f32 %v2817, %v2843
  %2847 = vrot.lane.b32.xlu0 %v2845, 32
  %v2848 = vpop.permute.xlu0 %2847
  %2850 = vst.msk [vmem:[#allocation2 + $0x6] sm:$0x3] %vm1678, %v2848
  %v2851 = vld [vmem:[#allocation5 + $0x8] sm:$0x3]
  %v2852 = vld [vmem:[#allocation2 + $0x6] sm:$0x3]
  %v2854 = vsel %vm186, %v2852, 0
  %2856 = vmatprep.subr.mxu0 0.0
  %2857 = vmatpush1.msra.mxu0 %v2477
  %2858 = vmatprep.subr.mxu0 0.0
  %2859 = vmatpush1.msra.mxu0 %v2478
  %2860 = vmatprep.subr.mxu0 0.0
  %2861 = vmatpush1.msra.mxu0 %v2479
  %2862 = vmatprep.subr.mxu0 0.0
  %2863 = vmatpush1.msra.mxu0 %v2480
  %2864 = vmatprep.subr.mxu0 0.0
  %2865 = vmatpush1.msra.mxu0 0.0
  %2866 = vmatprep.subr.mxu0 0.0
  %2867 = vmatpush1.msra.mxu0 0.0
  %2868 = vmatprep.subr.mxu0 0.0
  %2869 = vmatpush1.msra.mxu0 0.0
  %2870 = vmatprep.subr.mxu0 0.0
  %2871 = vmatpush1.msra.mxu0 0.0
  %2872 = vmatprep.subr.mxu0 0.0
  %2873 = vmatpush1.msra.mxu0 0.0
  %2874 = vmatprep.subr.mxu0 0.0
  %2875 = vmatpush1.msra.mxu0 0.0
  %2876 = vmatprep.subr.mxu0 0.0
  %2877 = vmatpush1.msra.mxu0 0.0
  %2878 = vmatprep.subr.mxu0 0.0
  %2879 = vmatpush1.msra.mxu0 0.0
  %2880 = vmatprep.subr.mxu0 0.0
  %2881 = vmatpush1.msra.mxu0 0.0
  %2882 = vmatprep.subr.mxu0 0.0
  %2883 = vmatpush1.msra.mxu0 0.0
  %2884 = vmatprep.subr.mxu0 0.0
  %2885 = vmatpush1.msra.mxu0 0.0
  %2886 = vmatprep.subr.mxu0 0.0
  %2887 = vmatpush1.msra.mxu0 0.0
  %2888 = vmatprep.subr.mxu0 0.0
  %2889 = vmatpush1.msra.mxu0 0.0
  %2890 = vmatprep.subr.mxu0 0.0
  %2891 = vmatpush1.msra.mxu0 0.0
  %2892 = vmatprep.subr.mxu0 0.0
  %2893 = vmatpush1.msra.mxu0 0.0
  %2894 = vmatprep.subr.mxu0 0.0
  %2895 = vmatpush1.msra.mxu0 0.0
  %2896 = vmatprep.subr.mxu0 0.0
  %2897 = vmatpush1.msra.mxu0 0.0
  %2898 = vmatprep.subr.mxu0 0.0
  %2899 = vmatpush1.msra.mxu0 0.0
  %2900 = vmatprep.subr.mxu0 0.0
  %2901 = vmatpush1.msra.mxu0 0.0
  %2902 = vmatprep.subr.mxu0 0.0
  %2903 = vmatpush1.msra.mxu0 0.0
  %2904 = vmatprep.subr.mxu0 0.0
  %2905 = vmatpush1.msra.mxu0 0.0
  %2906 = vmatprep.subr.mxu0 0.0
  %2907 = vmatpush1.msra.mxu0 0.0
  %2908 = vmatprep.subr.mxu0 0.0
  %2909 = vmatpush1.msra.mxu0 0.0
  %2910 = vmatprep.subr.mxu0 0.0
  %2911 = vmatpush1.msra.mxu0 0.0
  %2912 = vmatprep.subr.mxu0 0.0
  %2913 = vmatpush1.msra.mxu0 0.0
  %2914 = vmatprep.subr.mxu0 0.0
  %2915 = vmatpush1.msra.mxu0 0.0
  %2916 = vmatprep.subr.mxu0 0.0
  %2917 = vmatpush1.msra.mxu0 0.0
  %2918 = vmatprep.subr.mxu0 0.0
  %2919 = vmatpush1.msra.mxu0 0.0
  %2920 = vmatprep.mubr.f32.mxu0 0.0
  %2921 = vmatmul.mubr.f32.gmra.mrb[0].mxu0 %v2854
  %v2922 = vpop.f32.mrb[0].mxu0
  %v2923 = vadd.f32 0.0, %v2922
  %v2924 = vpop.f32.mrb[0].mxu0
  %2925 = vdwg.mxu0
  %v2926 = vadd.f32 %v2851, %v2923
  %v2927 = vxor.u32 %v2926, 2147483648
  %v2928 = vmul.f32 %v2927, 1.442695
  %v2929 = vpow.pop %v2928
  %v2930 = vadd.f32 %v2929, 1.0
  %v2931 = vrcp.pop %v2930
  %v2932 = vmul.f32 1.0, %v2931
  %v2933 = vtanh.pop %v2926
  %v2934 = vld [vmem:[#allocation6] sm:$0x3]
  %2936 = vrot.lane.b32.xlu0 %v2934, 32
  %v2937 = vpop.permute.xlu0 %2936
  %v2939 = vmul.f32 %v2932, %v2937
  %2941 = vrot.lane.b32.xlu0 %v2933, 64
  %v2942 = vpop.permute.xlu0 %2941
  %v2944 = vmul.f32 %v2932, %v2942
  %2946 = vrot.lane.b32.xlu0 %v2944, 32
  %v2947 = vpop.permute.xlu0 %2946
  %v2949 = vadd.f32 %v2939, %v2947
  %2951 = vrot.lane.b32.xlu0 %v2949, 96
  %v2952 = vpop.permute.xlu0 %2951
  %2954 = vst.msk [vmem:[#allocation6] sm:$0x3] %vm1678, %v2952
  %v2955 = vtanh.pop %v2949
  %2957 = vrot.lane.b32.xlu0 %v2955, 64
  %v2958 = vpop.permute.xlu0 %2957
  %v2960 = vmul.f32 %v2932, %v2958
  %2962 = vrot.lane.b32.xlu0 %v2960, 32
  %v2963 = vpop.permute.xlu0 %2962
  %2965 = vst.msk [vmem:[#allocation2 + $0x8] sm:$0x3] %vm1678, %v2963
  %v2966 = vld [vmem:[#allocation5 + $0xa] sm:$0x3]
  %v2967 = vld [vmem:[#allocation2 + $0x8] sm:$0x3]
  %v2969 = vsel %vm186, %v2967, 0
  %2971 = vmatprep.subr.mxu0 0.0
  %2972 = vmatpush1.msra.mxu0 %v2477
  %2973 = vmatprep.subr.mxu0 0.0
  %2974 = vmatpush1.msra.mxu0 %v2478
  %2975 = vmatprep.subr.mxu0 0.0
  %2976 = vmatpush1.msra.mxu0 %v2479
  %2977 = vmatprep.subr.mxu0 0.0
  %2978 = vmatpush1.msra.mxu0 %v2480
  %2979 = vmatprep.subr.mxu0 0.0
  %2980 = vmatpush1.msra.mxu0 0.0
  %2981 = vmatprep.subr.mxu0 0.0
  %2982 = vmatpush1.msra.mxu0 0.0
  %2983 = vmatprep.subr.mxu0 0.0
  %2984 = vmatpush1.msra.mxu0 0.0
  %2985 = vmatprep.subr.mxu0 0.0
  %2986 = vmatpush1.msra.mxu0 0.0
  %2987 = vmatprep.subr.mxu0 0.0
  %2988 = vmatpush1.msra.mxu0 0.0
  %2989 = vmatprep.subr.mxu0 0.0
  %2990 = vmatpush1.msra.mxu0 0.0
  %2991 = vmatprep.subr.mxu0 0.0
  %2992 = vmatpush1.msra.mxu0 0.0
  %2993 = vmatprep.subr.mxu0 0.0
  %2994 = vmatpush1.msra.mxu0 0.0
  %2995 = vmatprep.subr.mxu0 0.0
  %2996 = vmatpush1.msra.mxu0 0.0
  %2997 = vmatprep.subr.mxu0 0.0
  %2998 = vmatpush1.msra.mxu0 0.0
  %2999 = vmatprep.subr.mxu0 0.0
  %3000 = vmatpush1.msra.mxu0 0.0
  %3001 = vmatprep.subr.mxu0 0.0
  %3002 = vmatpush1.msra.mxu0 0.0
  %3003 = vmatprep.subr.mxu0 0.0
  %3004 = vmatpush1.msra.mxu0 0.0
  %3005 = vmatprep.subr.mxu0 0.0
  %3006 = vmatpush1.msra.mxu0 0.0
  %3007 = vmatprep.subr.mxu0 0.0
  %3008 = vmatpush1.msra.mxu0 0.0
  %3009 = vmatprep.subr.mxu0 0.0
  %3010 = vmatpush1.msra.mxu0 0.0
  %3011 = vmatprep.subr.mxu0 0.0
  %3012 = vmatpush1.msra.mxu0 0.0
  %3013 = vmatprep.subr.mxu0 0.0
  %3014 = vmatpush1.msra.mxu0 0.0
  %3015 = vmatprep.subr.mxu0 0.0
  %3016 = vmatpush1.msra.mxu0 0.0
  %3017 = vmatprep.subr.mxu0 0.0
  %3018 = vmatpush1.msra.mxu0 0.0
  %3019 = vmatprep.subr.mxu0 0.0
  %3020 = vmatpush1.msra.mxu0 0.0
  %3021 = vmatprep.subr.mxu0 0.0
  %3022 = vmatpush1.msra.mxu0 0.0
  %3023 = vmatprep.subr.mxu0 0.0
  %3024 = vmatpush1.msra.mxu0 0.0
  %3025 = vmatprep.subr.mxu0 0.0
  %3026 = vmatpush1.msra.mxu0 0.0
  %3027 = vmatprep.subr.mxu0 0.0
  %3028 = vmatpush1.msra.mxu0 0.0
  %3029 = vmatprep.subr.mxu0 0.0
  %3030 = vmatpush1.msra.mxu0 0.0
  %3031 = vmatprep.subr.mxu0 0.0
  %3032 = vmatpush1.msra.mxu0 0.0
  %3033 = vmatprep.subr.mxu0 0.0
  %3034 = vmatpush1.msra.mxu0 0.0
  %3035 = vmatprep.mubr.f32.mxu0 0.0
  %3036 = vmatmul.mubr.f32.gmra.mrb[0].mxu0 %v2969
  %v3037 = vpop.f32.mrb[0].mxu0
  %v3038 = vadd.f32 0.0, %v3037
  %v3039 = vpop.f32.mrb[0].mxu0
  %3040 = vdwg.mxu0
  %v3041 = vadd.f32 %v2966, %v3038
  %v3042 = vxor.u32 %v3041, 2147483648
  %v3043 = vmul.f32 %v3042, 1.442695
  %v3044 = vpow.pop %v3043
  %v3045 = vadd.f32 %v3044, 1.0
  %v3046 = vrcp.pop %v3045
  %v3047 = vmul.f32 1.0, %v3046
  %v3048 = vtanh.pop %v3041
  %v3049 = vld [vmem:[#allocation6] sm:$0x3]
  %3051 = vrot.lane.b32.xlu0 %v3049, 32
  %v3052 = vpop.permute.xlu0 %3051
  %v3054 = vmul.f32 %v3047, %v3052
  %3056 = vrot.lane.b32.xlu0 %v3048, 64
  %v3057 = vpop.permute.xlu0 %3056
  %v3059 = vmul.f32 %v3047, %v3057
  %3061 = vrot.lane.b32.xlu0 %v3059, 32
  %v3062 = vpop.permute.xlu0 %3061
  %v3064 = vadd.f32 %v3054, %v3062
  %3066 = vrot.lane.b32.xlu0 %v3064, 96
  %v3067 = vpop.permute.xlu0 %3066
  %3069 = vst.msk [vmem:[#allocation6] sm:$0x3] %vm1678, %v3067
  %v3070 = vtanh.pop %v3064
  %3072 = vrot.lane.b32.xlu0 %v3070, 64
  %v3073 = vpop.permute.xlu0 %3072
  %v3075 = vmul.f32 %v3047, %v3073
  %3077 = vrot.lane.b32.xlu0 %v3075, 32
  %v3078 = vpop.permute.xlu0 %3077
  %3080 = vst.msk [vmem:[#allocation2 + $0xa] sm:$0x3] %vm1678, %v3078
  %v3081 = vld [vmem:[#allocation5 + $0xc] sm:$0x1]
  %v3082 = vld [vmem:[#allocation2 + $0xa] sm:$0x1]
  %v3084 = vsel %vm186, %v3082, 0
  %3086 = vmatprep.subr.mxu0 0.0
  %3087 = vmatpush1.msra.mxu0 %v2477
  %3088 = vmatprep.subr.mxu0 0.0
  %3089 = vmatpush1.msra.mxu0 %v2478
  %3090 = vmatprep.subr.mxu0 0.0
  %3091 = vmatpush1.msra.mxu0 %v2479
  %3092 = vmatprep.subr.mxu0 0.0
  %3093 = vmatpush1.msra.mxu0 %v2480
  %3094 = vmatprep.subr.mxu0 0.0
  %3095 = vmatpush1.msra.mxu0 0.0
  %3096 = vmatprep.subr.mxu0 0.0
  %3097 = vmatpush1.msra.mxu0 0.0
  %3098 = vmatprep.subr.mxu0 0.0
  %3099 = vmatpush1.msra.mxu0 0.0
  %3100 = vmatprep.subr.mxu0 0.0
  %3101 = vmatpush1.msra.mxu0 0.0
  %3102 = vmatprep.subr.mxu0 0.0
  %3103 = vmatpush1.msra.mxu0 0.0
  %3104 = vmatprep.subr.mxu0 0.0
  %3105 = vmatpush1.msra.mxu0 0.0
  %3106 = vmatprep.subr.mxu0 0.0
  %3107 = vmatpush1.msra.mxu0 0.0
  %3108 = vmatprep.subr.mxu0 0.0
  %3109 = vmatpush1.msra.mxu0 0.0
  %3110 = vmatprep.subr.mxu0 0.0
  %3111 = vmatpush1.msra.mxu0 0.0
  %3112 = vmatprep.subr.mxu0 0.0
  %3113 = vmatpush1.msra.mxu0 0.0
  %3114 = vmatprep.subr.mxu0 0.0
  %3115 = vmatpush1.msra.mxu0 0.0
  %3116 = vmatprep.subr.mxu0 0.0
  %3117 = vmatpush1.msra.mxu0 0.0
  %3118 = vmatprep.subr.mxu0 0.0
  %3119 = vmatpush1.msra.mxu0 0.0
  %3120 = vmatprep.subr.mxu0 0.0
  %3121 = vmatpush1.msra.mxu0 0.0
  %3122 = vmatprep.subr.mxu0 0.0
  %3123 = vmatpush1.msra.mxu0 0.0
  %3124 = vmatprep.subr.mxu0 0.0
  %3125 = vmatpush1.msra.mxu0 0.0
  %3126 = vmatprep.subr.mxu0 0.0
  %3127 = vmatpush1.msra.mxu0 0.0
  %3128 = vmatprep.subr.mxu0 0.0
  %3129 = vmatpush1.msra.mxu0 0.0
  %3130 = vmatprep.subr.mxu0 0.0
  %3131 = vmatpush1.msra.mxu0 0.0
  %3132 = vmatprep.subr.mxu0 0.0
  %3133 = vmatpush1.msra.mxu0 0.0
  %3134 = vmatprep.subr.mxu0 0.0
  %3135 = vmatpush1.msra.mxu0 0.0
  %3136 = vmatprep.subr.mxu0 0.0
  %3137 = vmatpush1.msra.mxu0 0.0
  %3138 = vmatprep.subr.mxu0 0.0
  %3139 = vmatpush1.msra.mxu0 0.0
  %3140 = vmatprep.subr.mxu0 0.0
  %3141 = vmatpush1.msra.mxu0 0.0
  %3142 = vmatprep.subr.mxu0 0.0
  %3143 = vmatpush1.msra.mxu0 0.0
  %3144 = vmatprep.subr.mxu0 0.0
  %3145 = vmatpush1.msra.mxu0 0.0
  %3146 = vmatprep.subr.mxu0 0.0
  %3147 = vmatpush1.msra.mxu0 0.0
  %3148 = vmatprep.subr.mxu0 0.0
  %3149 = vmatpush1.msra.mxu0 0.0
  %3150 = vmatprep.mubr.f32.mxu0 0.0
  %3151 = vmatmul.mubr.f32.gmra.mrb[0].mxu0 %v3084
  %v3152 = vpop.f32.mrb[0].mxu0
  %v3153 = vadd.f32 0.0, %v3152
  %v3154 = vpop.f32.mrb[0].mxu0
  %3155 = vdwg.mxu0
  %v3156 = vadd.f32 %v3081, %v3153
  %v3157 = vxor.u32 %v3156, 2147483648
  %v3158 = vmul.f32 %v3157, 1.442695
  %v3159 = vpow.pop %v3158
  %v3160 = vadd.f32 %v3159, 1.0
  %v3161 = vrcp.pop %v3160
  %v3162 = vmul.f32 1.0, %v3161
  %v3163 = vtanh.pop %v3156
  %v3164 = vld [vmem:[#allocation6] sm:$0x1]
  %3166 = vrot.lane.b32.xlu0 %v3164, 32
  %v3167 = vpop.permute.xlu0 %3166
  %v3169 = vmul.f32 %v3162, %v3167
  %3171 = vrot.lane.b32.xlu0 %v3163, 64
  %v3172 = vpop.permute.xlu0 %3171
  %v3174 = vmul.f32 %v3162, %v3172
  %3176 = vrot.lane.b32.xlu0 %v3174, 32
  %v3177 = vpop.permute.xlu0 %3176
  %v3179 = vadd.f32 %v3169, %v3177
  %3181 = vrot.lane.b32.xlu0 %v3179, 96
  %v3182 = vpop.permute.xlu0 %3181
  %3184 = vst.msk [vmem:[#allocation6] sm:$0x1] %vm171, %v3182
  %v3185 = vtanh.pop %v3179
  %3187 = vrot.lane.b32.xlu0 %v3185, 64
  %v3188 = vpop.permute.xlu0 %3187
  %v3190 = vmul.f32 %v3162, %v3188
  %3192 = vrot.lane.b32.xlu0 %v3190, 32
  %v3193 = vpop.permute.xlu0 %3192
  %3195 = vst.msk [vmem:[#allocation2 + $0xc] sm:$0x1] %vm171, %v3193
  %v3196 = vld [vmem:[#allocation2] sm:$0xff]
  %v3197 = vld [vmem:[#allocation2 + $0x8] sm:$0x1f]
  %v3198 = vld [vmem:[%s10] sm:$0xff]
  %v3199 = vld [vmem:[%s10 + $0x8] sm:$0xff]
  %v3200 = vld [vmem:[%s10 + $0x10] sm:$0xff]
  %v3201 = vld [vmem:[%s10 + $0x18] sm:$0xff]
  %v3202 = vld [vmem:[%s12] sm:$0x1]
  %v3204 = vlaneseq
  %v3205 = vshrl.u32 %v3204, 7
  %v3206 = vsub.s32 0, %v3205
  %v3207 = vrot.slane %v3202, %v3206
  %v3210 = vsel %vm186, %v3196, 0
  %v3213 = vsel %vm186, %v3197, 0
  %3215 = vmatprep.subr.mxu0 0.0
  %3216 = vmatpush1.msra.mxu0 %v3198
  %3217 = vmatprep.subr.mxu0 0.0
  %3218 = vmatpush1.msra.mxu0 %v3199
  %3219 = vmatprep.subr.mxu0 0.0
  %3220 = vmatpush1.msra.mxu0 %v3200
  %3221 = vmatprep.subr.mxu0 0.0
  %3222 = vmatpush1.msra.mxu0 %v3201
  %3223 = vmatprep.subr.mxu0 0.0
  %3224 = vmatpush1.msra.mxu0 0.0
  %3225 = vmatprep.subr.mxu0 0.0
  %3226 = vmatpush1.msra.mxu0 0.0
  %3227 = vmatprep.subr.mxu0 0.0
  %3228 = vmatpush1.msra.mxu0 0.0
  %3229 = vmatprep.subr.mxu0 0.0
  %3230 = vmatpush1.msra.mxu0 0.0
  %3231 = vmatprep.subr.mxu0 0.0
  %3232 = vmatpush1.msra.mxu0 0.0
  %3233 = vmatprep.subr.mxu0 0.0
  %3234 = vmatpush1.msra.mxu0 0.0
  %3235 = vmatprep.subr.mxu0 0.0
  %3236 = vmatpush1.msra.mxu0 0.0
  %3237 = vmatprep.subr.mxu0 0.0
  %3238 = vmatpush1.msra.mxu0 0.0
  %3239 = vmatprep.subr.mxu0 0.0
  %3240 = vmatpush1.msra.mxu0 0.0
  %3241 = vmatprep.subr.mxu0 0.0
  %3242 = vmatpush1.msra.mxu0 0.0
  %3243 = vmatprep.subr.mxu0 0.0
  %3244 = vmatpush1.msra.mxu0 0.0
  %3245 = vmatprep.subr.mxu0 0.0
  %3246 = vmatpush1.msra.mxu0 0.0
  %3247 = vmatprep.subr.mxu0 0.0
  %3248 = vmatpush1.msra.mxu0 0.0
  %3249 = vmatprep.subr.mxu0 0.0
  %3250 = vmatpush1.msra.mxu0 0.0
  %3251 = vmatprep.subr.mxu0 0.0
  %3252 = vmatpush1.msra.mxu0 0.0
  %3253 = vmatprep.subr.mxu0 0.0
  %3254 = vmatpush1.msra.mxu0 0.0
  %3255 = vmatprep.subr.mxu0 0.0
  %3256 = vmatpush1.msra.mxu0 0.0
  %3257 = vmatprep.subr.mxu0 0.0
  %3258 = vmatpush1.msra.mxu0 0.0
  %3259 = vmatprep.subr.mxu0 0.0
  %3260 = vmatpush1.msra.mxu0 0.0
  %3261 = vmatprep.subr.mxu0 0.0
  %3262 = vmatpush1.msra.mxu0 0.0
  %3263 = vmatprep.subr.mxu0 0.0
  %3264 = vmatpush1.msra.mxu0 0.0
  %3265 = vmatprep.subr.mxu0 0.0
  %3266 = vmatpush1.msra.mxu0 0.0
  %3267 = vmatprep.subr.mxu0 0.0
  %3268 = vmatpush1.msra.mxu0 0.0
  %3269 = vmatprep.subr.mxu0 0.0
  %3270 = vmatpush1.msra.mxu0 0.0
  %3271 = vmatprep.subr.mxu0 0.0
  %3272 = vmatpush1.msra.mxu0 0.0
  %3273 = vmatprep.subr.mxu0 0.0
  %3274 = vmatpush1.msra.mxu0 0.0
  %3275 = vmatprep.subr.mxu0 0.0
  %3276 = vmatpush1.msra.mxu0 0.0
  %3277 = vmatprep.subr.mxu0 0.0
  %3278 = vmatpush1.msra.mxu0 0.0
  %3279 = vmatprep.mubr.f32.mxu0 0.0
  %3280 = vmatmul.mubr.f32.gmra.mrb[0].mxu0 %v3210
  %v3281 = vpop.f32.mrb[0].mxu0
  %v3282 = vadd.f32 %v3207, %v3281
  %v3283 = vpop.f32.mrb[0].mxu0
  %3284 = vmatprep.mubr.f32.mxu0 0.0
  %3285 = vmatmul.mubr.f32.gmra.mrb[0].mxu0 %v3213
  %v3286 = vpop.f32.mrb[0].mxu0
  %v3287 = vadd.f32 %v3207, %v3286
  %v3288 = vpop.f32.mrb[0].mxu0
  %3289 = vdwg.mxu0
  %3290 = vst [vmem:[#allocation5] sm:$0xff] %v3282
  %3291 = vst [vmem:[#allocation5 + $0x8] sm:$0x1f] %v3287
  %v3292 = vld [vmem:[%s11] sm:$0xff]
  %v3293 = vld [vmem:[%s11 + $0x8] sm:$0xff]
  %v3294 = vld [vmem:[%s11 + $0x10] sm:$0xff]
  %v3295 = vld [vmem:[%s11 + $0x18] sm:$0xff]
  %v3296 = vld [vmem:[#allocation5] sm:$0xf]
  %v3297 = vxor.u32 %v3296, 2147483648
  %v3298 = vmul.f32 %v3297, 1.442695
  %v3299 = vpow.pop %v3298
  %v3300 = vadd.f32 %v3299, 1.0
  %v3301 = vrcp.pop %v3300
  %v3302 = vmul.f32 1.0, %v3301
  %v3303 = vtanh.pop %v3296
  %3305 = vrot.lane.b32.xlu0 %v3303, 64
  %v3306 = vpop.permute.xlu0 %3305
  %v3308 = vmul.f32 %v3302, %v3306
  %vm3309 = vcmask 257024
  %3310 = vst.msk [vmem:[#allocation6] sm:$0xf] %vm3309, %v3308
  %v3311 = vtanh.pop %v3308
  %3313 = vrot.lane.b32.xlu0 %v3311, 96
  %v3314 = vpop.permute.xlu0 %3313
  %v3316 = vmul.f32 %v3302, %v3314
  %3318 = vrot.lane.b32.xlu0 %v3316, 32
  %v3319 = vpop.permute.xlu0 %3318
  %3321 = vst.msk [vmem:[#allocation4] sm:$0xf] %vm3309, %v3319
  %v3322 = vld [vmem:[#allocation5 + $0x4] sm:$0xf]
  %v3323 = vld [vmem:[#allocation4] sm:$0xf]
  %v3325 = vsel %vm186, %v3323, 0
  %3327 = vmatprep.subr.mxu0 0.0
  %3328 = vmatpush1.msra.mxu0 %v3292
  %3329 = vmatprep.subr.mxu0 0.0
  %3330 = vmatpush1.msra.mxu0 %v3293
  %3331 = vmatprep.subr.mxu0 0.0
  %3332 = vmatpush1.msra.mxu0 %v3294
  %3333 = vmatprep.subr.mxu0 0.0
  %3334 = vmatpush1.msra.mxu0 %v3295
  %3335 = vmatprep.subr.mxu0 0.0
  %3336 = vmatpush1.msra.mxu0 0.0
  %3337 = vmatprep.subr.mxu0 0.0
  %3338 = vmatpush1.msra.mxu0 0.0
  %3339 = vmatprep.subr.mxu0 0.0
  %3340 = vmatpush1.msra.mxu0 0.0
  %3341 = vmatprep.subr.mxu0 0.0
  %3342 = vmatpush1.msra.mxu0 0.0
  %3343 = vmatprep.subr.mxu0 0.0
  %3344 = vmatpush1.msra.mxu0 0.0
  %3345 = vmatprep.subr.mxu0 0.0
  %3346 = vmatpush1.msra.mxu0 0.0
  %3347 = vmatprep.subr.mxu0 0.0
  %3348 = vmatpush1.msra.mxu0 0.0
  %3349 = vmatprep.subr.mxu0 0.0
  %3350 = vmatpush1.msra.mxu0 0.0
  %3351 = vmatprep.subr.mxu0 0.0
  %3352 = vmatpush1.msra.mxu0 0.0
  %3353 = vmatprep.subr.mxu0 0.0
  %3354 = vmatpush1.msra.mxu0 0.0
  %3355 = vmatprep.subr.mxu0 0.0
  %3356 = vmatpush1.msra.mxu0 0.0
  %3357 = vmatprep.subr.mxu0 0.0
  %3358 = vmatpush1.msra.mxu0 0.0
  %3359 = vmatprep.subr.mxu0 0.0
  %3360 = vmatpush1.msra.mxu0 0.0
  %3361 = vmatprep.subr.mxu0 0.0
  %3362 = vmatpush1.msra.mxu0 0.0
  %3363 = vmatprep.subr.mxu0 0.0
  %3364 = vmatpush1.msra.mxu0 0.0
  %3365 = vmatprep.subr.mxu0 0.0
  %3366 = vmatpush1.msra.mxu0 0.0
  %3367 = vmatprep.subr.mxu0 0.0
  %3368 = vmatpush1.msra.mxu0 0.0
  %3369 = vmatprep.subr.mxu0 0.0
  %3370 = vmatpush1.msra.mxu0 0.0
  %3371 = vmatprep.subr.mxu0 0.0
  %3372 = vmatpush1.msra.mxu0 0.0
  %3373 = vmatprep.subr.mxu0 0.0
  %3374 = vmatpush1.msra.mxu0 0.0
  %3375 = vmatprep.subr.mxu0 0.0
  %3376 = vmatpush1.msra.mxu0 0.0
  %3377 = vmatprep.subr.mxu0 0.0
  %3378 = vmatpush1.msra.mxu0 0.0
  %3379 = vmatprep.subr.mxu0 0.0
  %3380 = vmatpush1.msra.mxu0 0.0
  %3381 = vmatprep.subr.mxu0 0.0
  %3382 = vmatpush1.msra.mxu0 0.0
  %3383 = vmatprep.subr.mxu0 0.0
  %3384 = vmatpush1.msra.mxu0 0.0
  %3385 = vmatprep.subr.mxu0 0.0
  %3386 = vmatpush1.msra.mxu0 0.0
  %3387 = vmatprep.subr.mxu0 0.0
  %3388 = vmatpush1.msra.mxu0 0.0
  %3389 = vmatprep.subr.mxu0 0.0
  %3390 = vmatpush1.msra.mxu0 0.0
  %3391 = vmatprep.mubr.f32.mxu0 0.0
  %3392 = vmatmul.mubr.f32.gmra.mrb[0].mxu0 %v3325
  %v3393 = vpop.f32.mrb[0].mxu0
  %v3394 = vadd.f32 0.0, %v3393
  %v3395 = vpop.f32.mrb[0].mxu0
  %3396 = vdwg.mxu0
  %v3397 = vadd.f32 %v3322, %v3394
  %v3398 = vxor.u32 %v3397, 2147483648
  %v3399 = vmul.f32 %v3398, 1.442695
  %v3400 = vpow.pop %v3399
  %v3401 = vadd.f32 %v3400, 1.0
  %v3402 = vrcp.pop %v3401
  %v3403 = vmul.f32 1.0, %v3402
  %v3404 = vtanh.pop %v3397
  %v3405 = vld [vmem:[#allocation6] sm:$0xf]
  %3407 = vrot.lane.b32.xlu0 %v3405, 32
  %v3408 = vpop.permute.xlu0 %3407
  %v3410 = vmul.f32 %v3403, %v3408
  %3412 = vrot.lane.b32.xlu0 %v3404, 64
  %v3413 = vpop.permute.xlu0 %3412
  %v3415 = vmul.f32 %v3403, %v3413
  %3417 = vrot.lane.b32.xlu0 %v3415, 32
  %v3418 = vpop.permute.xlu0 %3417
  %v3420 = vadd.f32 %v3410, %v3418
  %3422 = vrot.lane.b32.xlu0 %v3420, 96
  %v3423 = vpop.permute.xlu0 %3422
  %3425 = vst.msk [vmem:[#allocation6] sm:$0xf] %vm3309, %v3423
  %v3426 = vtanh.pop %v3420
  %3428 = vrot.lane.b32.xlu0 %v3426, 64
  %v3429 = vpop.permute.xlu0 %3428
  %v3431 = vmul.f32 %v3403, %v3429
  %3433 = vrot.lane.b32.xlu0 %v3431, 32
  %v3434 = vpop.permute.xlu0 %3433
  %3436 = vst.msk [vmem:[#allocation4 + $0x4] sm:$0xf] %vm3309, %v3434
  %v3437 = vld [vmem:[#allocation5 + $0x8] sm:$0xf]
  %v3438 = vld [vmem:[#allocation4 + $0x4] sm:$0xf]
  %v3440 = vsel %vm186, %v3438, 0
  %3442 = vmatprep.subr.mxu0 0.0
  %3443 = vmatpush1.msra.mxu0 %v3292
  %3444 = vmatprep.subr.mxu0 0.0
  %3445 = vmatpush1.msra.mxu0 %v3293
  %3446 = vmatprep.subr.mxu0 0.0
  %3447 = vmatpush1.msra.mxu0 %v3294
  %3448 = vmatprep.subr.mxu0 0.0
  %3449 = vmatpush1.msra.mxu0 %v3295
  %3450 = vmatprep.subr.mxu0 0.0
  %3451 = vmatpush1.msra.mxu0 0.0
  %3452 = vmatprep.subr.mxu0 0.0
  %3453 = vmatpush1.msra.mxu0 0.0
  %3454 = vmatprep.subr.mxu0 0.0
  %3455 = vmatpush1.msra.mxu0 0.0
  %3456 = vmatprep.subr.mxu0 0.0
  %3457 = vmatpush1.msra.mxu0 0.0
  %3458 = vmatprep.subr.mxu0 0.0
  %3459 = vmatpush1.msra.mxu0 0.0
  %3460 = vmatprep.subr.mxu0 0.0
  %3461 = vmatpush1.msra.mxu0 0.0
  %3462 = vmatprep.subr.mxu0 0.0
  %3463 = vmatpush1.msra.mxu0 0.0
  %3464 = vmatprep.subr.mxu0 0.0
  %3465 = vmatpush1.msra.mxu0 0.0
  %3466 = vmatprep.subr.mxu0 0.0
  %3467 = vmatpush1.msra.mxu0 0.0
  %3468 = vmatprep.subr.mxu0 0.0
  %3469 = vmatpush1.msra.mxu0 0.0
  %3470 = vmatprep.subr.mxu0 0.0
  %3471 = vmatpush1.msra.mxu0 0.0
  %3472 = vmatprep.subr.mxu0 0.0
  %3473 = vmatpush1.msra.mxu0 0.0
  %3474 = vmatprep.subr.mxu0 0.0
  %3475 = vmatpush1.msra.mxu0 0.0
  %3476 = vmatprep.subr.mxu0 0.0
  %3477 = vmatpush1.msra.mxu0 0.0
  %3478 = vmatprep.subr.mxu0 0.0
  %3479 = vmatpush1.msra.mxu0 0.0
  %3480 = vmatprep.subr.mxu0 0.0
  %3481 = vmatpush1.msra.mxu0 0.0
  %3482 = vmatprep.subr.mxu0 0.0
  %3483 = vmatpush1.msra.mxu0 0.0
  %3484 = vmatprep.subr.mxu0 0.0
  %3485 = vmatpush1.msra.mxu0 0.0
  %3486 = vmatprep.subr.mxu0 0.0
  %3487 = vmatpush1.msra.mxu0 0.0
  %3488 = vmatprep.subr.mxu0 0.0
  %3489 = vmatpush1.msra.mxu0 0.0
  %3490 = vmatprep.subr.mxu0 0.0
  %3491 = vmatpush1.msra.mxu0 0.0
  %3492 = vmatprep.subr.mxu0 0.0
  %3493 = vmatpush1.msra.mxu0 0.0
  %3494 = vmatprep.subr.mxu0 0.0
  %3495 = vmatpush1.msra.mxu0 0.0
  %3496 = vmatprep.subr.mxu0 0.0
  %3497 = vmatpush1.msra.mxu0 0.0
  %3498 = vmatprep.subr.mxu0 0.0
  %3499 = vmatpush1.msra.mxu0 0.0
  %3500 = vmatprep.subr.mxu0 0.0
  %3501 = vmatpush1.msra.mxu0 0.0
  %3502 = vmatprep.subr.mxu0 0.0
  %3503 = vmatpush1.msra.mxu0 0.0
  %3504 = vmatprep.subr.mxu0 0.0
  %3505 = vmatpush1.msra.mxu0 0.0
  %3506 = vmatprep.mubr.f32.mxu0 0.0
  %3507 = vmatmul.mubr.f32.gmra.mrb[0].mxu0 %v3440
  %v3508 = vpop.f32.mrb[0].mxu0
  %v3509 = vadd.f32 0.0, %v3508
  %v3510 = vpop.f32.mrb[0].mxu0
  %3511 = vdwg.mxu0
  %v3512 = vadd.f32 %v3437, %v3509
  %v3513 = vxor.u32 %v3512, 2147483648
  %v3514 = vmul.f32 %v3513, 1.442695
  %v3515 = vpow.pop %v3514
  %v3516 = vadd.f32 %v3515, 1.0
  %v3517 = vrcp.pop %v3516
  %v3518 = vmul.f32 1.0, %v3517
  %v3519 = vtanh.pop %v3512
  %v3520 = vld [vmem:[#allocation6] sm:$0xf]
  %3522 = vrot.lane.b32.xlu0 %v3520, 32
  %v3523 = vpop.permute.xlu0 %3522
  %v3525 = vmul.f32 %v3518, %v3523
  %3527 = vrot.lane.b32.xlu0 %v3519, 64
  %v3528 = vpop.permute.xlu0 %3527
  %v3530 = vmul.f32 %v3518, %v3528
  %3532 = vrot.lane.b32.xlu0 %v3530, 32
  %v3533 = vpop.permute.xlu0 %3532
  %v3535 = vadd.f32 %v3525, %v3533
  %3537 = vrot.lane.b32.xlu0 %v3535, 96
  %v3538 = vpop.permute.xlu0 %3537
  %3540 = vst.msk [vmem:[#allocation6] sm:$0xf] %vm3309, %v3538
  %v3541 = vtanh.pop %v3535
  %3543 = vrot.lane.b32.xlu0 %v3541, 64
  %v3544 = vpop.permute.xlu0 %3543
  %v3546 = vmul.f32 %v3518, %v3544
  %3548 = vrot.lane.b32.xlu0 %v3546, 32
  %v3549 = vpop.permute.xlu0 %3548
  %3551 = vst.msk [vmem:[#allocation4 + $0x8] sm:$0xf] %vm3309, %v3549
  %v3552 = vld [vmem:[#allocation5 + $0xc] sm:$0x1]
  %v3553 = vld [vmem:[#allocation4 + $0x8] sm:$0x1]
  %v3555 = vsel %vm186, %v3553, 0
  %3557 = vmatprep.subr.mxu0 0.0
  %3558 = vmatpush1.msra.mxu0 %v3292
  %3559 = vmatprep.subr.mxu0 0.0
  %3560 = vmatpush1.msra.mxu0 %v3293
  %3561 = vmatprep.subr.mxu0 0.0
  %3562 = vmatpush1.msra.mxu0 %v3294
  %3563 = vmatprep.subr.mxu0 0.0
  %3564 = vmatpush1.msra.mxu0 %v3295
  %3565 = vmatprep.subr.mxu0 0.0
  %3566 = vmatpush1.msra.mxu0 0.0
  %3567 = vmatprep.subr.mxu0 0.0
  %3568 = vmatpush1.msra.mxu0 0.0
  %3569 = vmatprep.subr.mxu0 0.0
  %3570 = vmatpush1.msra.mxu0 0.0
  %3571 = vmatprep.subr.mxu0 0.0
  %3572 = vmatpush1.msra.mxu0 0.0
  %3573 = vmatprep.subr.mxu0 0.0
  %3574 = vmatpush1.msra.mxu0 0.0
  %3575 = vmatprep.subr.mxu0 0.0
  %3576 = vmatpush1.msra.mxu0 0.0
  %3577 = vmatprep.subr.mxu0 0.0
  %3578 = vmatpush1.msra.mxu0 0.0
  %3579 = vmatprep.subr.mxu0 0.0
  %3580 = vmatpush1.msra.mxu0 0.0
  %3581 = vmatprep.subr.mxu0 0.0
  %3582 = vmatpush1.msra.mxu0 0.0
  %3583 = vmatprep.subr.mxu0 0.0
  %3584 = vmatpush1.msra.mxu0 0.0
  %3585 = vmatprep.subr.mxu0 0.0
  %3586 = vmatpush1.msra.mxu0 0.0
  %3587 = vmatprep.subr.mxu0 0.0
  %3588 = vmatpush1.msra.mxu0 0.0
  %3589 = vmatprep.subr.mxu0 0.0
  %3590 = vmatpush1.msra.mxu0 0.0
  %3591 = vmatprep.subr.mxu0 0.0
  %3592 = vmatpush1.msra.mxu0 0.0
  %3593 = vmatprep.subr.mxu0 0.0
  %3594 = vmatpush1.msra.mxu0 0.0
  %3595 = vmatprep.subr.mxu0 0.0
  %3596 = vmatpush1.msra.mxu0 0.0
  %3597 = vmatprep.subr.mxu0 0.0
  %3598 = vmatpush1.msra.mxu0 0.0
  %3599 = vmatprep.subr.mxu0 0.0
  %3600 = vmatpush1.msra.mxu0 0.0
  %3601 = vmatprep.subr.mxu0 0.0
  %3602 = vmatpush1.msra.mxu0 0.0
  %3603 = vmatprep.subr.mxu0 0.0
  %3604 = vmatpush1.msra.mxu0 0.0
  %3605 = vmatprep.subr.mxu0 0.0
  %3606 = vmatpush1.msra.mxu0 0.0
  %3607 = vmatprep.subr.mxu0 0.0
  %3608 = vmatpush1.msra.mxu0 0.0
  %3609 = vmatprep.subr.mxu0 0.0
  %3610 = vmatpush1.msra.mxu0 0.0
  %3611 = vmatprep.subr.mxu0 0.0
  %3612 = vmatpush1.msra.mxu0 0.0
  %3613 = vmatprep.subr.mxu0 0.0
  %3614 = vmatpush1.msra.mxu0 0.0
  %3615 = vmatprep.subr.mxu0 0.0
  %3616 = vmatpush1.msra.mxu0 0.0
  %3617 = vmatprep.subr.mxu0 0.0
  %3618 = vmatpush1.msra.mxu0 0.0
  %3619 = vmatprep.subr.mxu0 0.0
  %3620 = vmatpush1.msra.mxu0 0.0
  %3621 = vmatprep.mubr.f32.mxu0 0.0
  %3622 = vmatmul.mubr.f32.gmra.mrb[0].mxu0 %v3555
  %v3623 = vpop.f32.mrb[0].mxu0
  %v3624 = vadd.f32 0.0, %v3623
  %v3625 = vpop.f32.mrb[0].mxu0
  %3626 = vdwg.mxu0
  %v3627 = vadd.f32 %v3552, %v3624
  %v3628 = vxor.u32 %v3627, 2147483648
  %v3629 = vmul.f32 %v3628, 1.442695
  %v3630 = vpow.pop %v3629
  %v3631 = vadd.f32 %v3630, 1.0
  %v3632 = vrcp.pop %v3631
  %v3633 = vmul.f32 1.0, %v3632
  %v3634 = vtanh.pop %v3627
  %v3635 = vld [vmem:[#allocation6] sm:$0x1]
  %3637 = vrot.lane.b32.xlu0 %v3635, 32
  %v3638 = vpop.permute.xlu0 %3637
  %v3640 = vmul.f32 %v3633, %v3638
  %3642 = vrot.lane.b32.xlu0 %v3634, 64
  %v3643 = vpop.permute.xlu0 %3642
  %v3645 = vmul.f32 %v3633, %v3643
  %3647 = vrot.lane.b32.xlu0 %v3645, 32
  %v3648 = vpop.permute.xlu0 %3647
  %v3650 = vadd.f32 %v3640, %v3648
  %3652 = vrot.lane.b32.xlu0 %v3650, 96
  %v3653 = vpop.permute.xlu0 %3652
  %3655 = vst.msk [vmem:[#allocation6] sm:$0x1] %vm171, %v3653
  %v3656 = vtanh.pop %v3650
  %3658 = vrot.lane.b32.xlu0 %v3656, 64
  %v3659 = vpop.permute.xlu0 %3658
  %v3661 = vmul.f32 %v3633, %v3659
  %3663 = vrot.lane.b32.xlu0 %v3661, 32
  %v3664 = vpop.permute.xlu0 %3663
  %3666 = vst.msk [vmem:[#allocation4 + $0xc] sm:$0x1] %vm171, %v3664
  %v3667 = vld [vmem:[#allocation4] sm:$0xff]
  %v3668 = vld [vmem:[#allocation4 + $0x8] sm:$0x1f]
  %v3669 = vld [vmem:[#allocation3] sm:$0xff]
  %v3670 = vld [vmem:[#allocation3 + $0x8] sm:$0x1f]
  %v3671 = vadd.f32 %v3667, %v3669
  %v3672 = vadd.f32 %v3668, %v3670
  %3673 = vst.msk [vmem:[#allocation4] sm:$0xff] %vm186, %v3671
  %vm3674 = vcmask 258048
  %3675 = vst.msk [vmem:[#allocation4 + $0x8] sm:$0x1f] %vm3674, %v3672
  %v3676 = vld [vmem:[#allocation4] sm:$0xff]
  %v3677 = vld [vmem:[#allocation4 + $0x8] sm:$0x1f]
  %v3678 = vld [vmem:[%s13] sm:$0xff]
  %v3679 = vld [vmem:[%s13 + $0x8] sm:$0xff]
  %v3680 = vld [vmem:[%s13 + $0x10] sm:$0xff]
  %v3681 = vld [vmem:[%s13 + $0x18] sm:$0xff]
  %v3682 = vld [vmem:[%s14] sm:$0x1]
  %v3684 = vlaneseq
  %v3685 = vshrl.u32 %v3684, 7
  %v3686 = vsub.s32 0, %v3685
  %v3687 = vrot.slane %v3682, %v3686
  %v3690 = vsel %vm186, %v3676, 0
  %v3693 = vsel %vm186, %v3677, 0
  %3695 = vmatprep.subr.mxu0 0.0
  %3696 = vmatpush1.msra.mxu0 %v3678
  %3697 = vmatprep.subr.mxu0 0.0
  %3698 = vmatpush1.msra.mxu0 %v3679
  %3699 = vmatprep.subr.mxu0 0.0
  %3700 = vmatpush1.msra.mxu0 %v3680
  %3701 = vmatprep.subr.mxu0 0.0
  %3702 = vmatpush1.msra.mxu0 %v3681
  %3703 = vmatprep.subr.mxu0 0.0
  %3704 = vmatpush1.msra.mxu0 0.0
  %3705 = vmatprep.subr.mxu0 0.0
  %3706 = vmatpush1.msra.mxu0 0.0
  %3707 = vmatprep.subr.mxu0 0.0
  %3708 = vmatpush1.msra.mxu0 0.0
  %3709 = vmatprep.subr.mxu0 0.0
  %3710 = vmatpush1.msra.mxu0 0.0
  %3711 = vmatprep.subr.mxu0 0.0
  %3712 = vmatpush1.msra.mxu0 0.0
  %3713 = vmatprep.subr.mxu0 0.0
  %3714 = vmatpush1.msra.mxu0 0.0
  %3715 = vmatprep.subr.mxu0 0.0
  %3716 = vmatpush1.msra.mxu0 0.0
  %3717 = vmatprep.subr.mxu0 0.0
  %3718 = vmatpush1.msra.mxu0 0.0
  %3719 = vmatprep.subr.mxu0 0.0
  %3720 = vmatpush1.msra.mxu0 0.0
  %3721 = vmatprep.subr.mxu0 0.0
  %3722 = vmatpush1.msra.mxu0 0.0
  %3723 = vmatprep.subr.mxu0 0.0
  %3724 = vmatpush1.msra.mxu0 0.0
  %3725 = vmatprep.subr.mxu0 0.0
  %3726 = vmatpush1.msra.mxu0 0.0
  %3727 = vmatprep.subr.mxu0 0.0
  %3728 = vmatpush1.msra.mxu0 0.0
  %3729 = vmatprep.subr.mxu0 0.0
  %3730 = vmatpush1.msra.mxu0 0.0
  %3731 = vmatprep.subr.mxu0 0.0
  %3732 = vmatpush1.msra.mxu0 0.0
  %3733 = vmatprep.subr.mxu0 0.0
  %3734 = vmatpush1.msra.mxu0 0.0
  %3735 = vmatprep.subr.mxu0 0.0
  %3736 = vmatpush1.msra.mxu0 0.0
  %3737 = vmatprep.subr.mxu0 0.0
  %3738 = vmatpush1.msra.mxu0 0.0
  %3739 = vmatprep.subr.mxu0 0.0
  %3740 = vmatpush1.msra.mxu0 0.0
  %3741 = vmatprep.subr.mxu0 0.0
  %3742 = vmatpush1.msra.mxu0 0.0
  %3743 = vmatprep.subr.mxu0 0.0
  %3744 = vmatpush1.msra.mxu0 0.0
  %3745 = vmatprep.subr.mxu0 0.0
  %3746 = vmatpush1.msra.mxu0 0.0
  %3747 = vmatprep.subr.mxu0 0.0
  %3748 = vmatpush1.msra.mxu0 0.0
  %3749 = vmatprep.subr.mxu0 0.0
  %3750 = vmatpush1.msra.mxu0 0.0
  %3751 = vmatprep.subr.mxu0 0.0
  %3752 = vmatpush1.msra.mxu0 0.0
  %3753 = vmatprep.subr.mxu0 0.0
  %3754 = vmatpush1.msra.mxu0 0.0
  %3755 = vmatprep.subr.mxu0 0.0
  %3756 = vmatpush1.msra.mxu0 0.0
  %3757 = vmatprep.subr.mxu0 0.0
  %3758 = vmatpush1.msra.mxu0 0.0
  %3759 = vmatprep.mubr.f32.mxu0 0.0
  %3760 = vmatmul.mubr.f32.gmra.mrb[0].mxu0 %v3690
  %v3761 = vpop.f32.mrb[0].mxu0
  %v3762 = vadd.f32 %v3687, %v3761
  %v3763 = vpop.f32.mrb[0].mxu0
  %3764 = vmatprep.mubr.f32.mxu0 0.0
  %3765 = vmatmul.mubr.f32.gmra.mrb[0].mxu0 %v3693
  %v3766 = vpop.f32.mrb[0].mxu0
  %v3767 = vadd.f32 %v3687, %v3766
  %v3768 = vpop.f32.mrb[0].mxu0
  %3769 = vdwg.mxu0
  %v3770 = vtanh.pop %v3762
  %v3771 = vtanh.pop %v3767
  %v3772 = vld [vmem:[%s15] sm:$0xff]
  %v3773 = vld [vmem:[%s15 + $0x8] sm:$0xff]
  %v3774 = vld [vmem:[%s15 + $0x10] sm:$0xff]
  %v3775 = vld [vmem:[%s15 + $0x18] sm:$0xff]
  %v3776 = vld [vmem:[%s16] sm:$0x1]
  %v3778 = vlaneseq
  %v3779 = vshrl.u32 %v3778, 7
  %v3780 = vsub.s32 0, %v3779
  %v3781 = vrot.slane %v3776, %v3780
  %v3784 = vsel %vm186, %v3770, 0
  %v3787 = vsel %vm186, %v3771, 0
  %3789 = vmatprep.subr.mxu0 0.0
  %3790 = vmatpush1.msra.mxu0 %v3772
  %3791 = vmatprep.subr.mxu0 0.0
  %3792 = vmatpush1.msra.mxu0 %v3773
  %3793 = vmatprep.subr.mxu0 0.0
  %3794 = vmatpush1.msra.mxu0 %v3774
  %3795 = vmatprep.subr.mxu0 0.0
  %3796 = vmatpush1.msra.mxu0 %v3775
  %3797 = vmatprep.subr.mxu0 0.0
  %3798 = vmatpush1.msra.mxu0 0.0
  %3799 = vmatprep.subr.mxu0 0.0
  %3800 = vmatpush1.msra.mxu0 0.0
  %3801 = vmatprep.subr.mxu0 0.0
  %3802 = vmatpush1.msra.mxu0 0.0
  %3803 = vmatprep.subr.mxu0 0.0
  %3804 = vmatpush1.msra.mxu0 0.0
  %3805 = vmatprep.subr.mxu0 0.0
  %3806 = vmatpush1.msra.mxu0 0.0
  %3807 = vmatprep.subr.mxu0 0.0
  %3808 = vmatpush1.msra.mxu0 0.0
  %3809 = vmatprep.subr.mxu0 0.0
  %3810 = vmatpush1.msra.mxu0 0.0
  %3811 = vmatprep.subr.mxu0 0.0
  %3812 = vmatpush1.msra.mxu0 0.0
  %3813 = vmatprep.subr.mxu0 0.0
  %3814 = vmatpush1.msra.mxu0 0.0
  %3815 = vmatprep.subr.mxu0 0.0
  %3816 = vmatpush1.msra.mxu0 0.0
  %3817 = vmatprep.subr.mxu0 0.0
  %3818 = vmatpush1.msra.mxu0 0.0
  %3819 = vmatprep.subr.mxu0 0.0
  %3820 = vmatpush1.msra.mxu0 0.0
  %3821 = vmatprep.subr.mxu0 0.0
  %3822 = vmatpush1.msra.mxu0 0.0
  %3823 = vmatprep.subr.mxu0 0.0
  %3824 = vmatpush1.msra.mxu0 0.0
  %3825 = vmatprep.subr.mxu0 0.0
  %3826 = vmatpush1.msra.mxu0 0.0
  %3827 = vmatprep.subr.mxu0 0.0
  %3828 = vmatpush1.msra.mxu0 0.0
  %3829 = vmatprep.subr.mxu0 0.0
  %3830 = vmatpush1.msra.mxu0 0.0
  %3831 = vmatprep.subr.mxu0 0.0
  %3832 = vmatpush1.msra.mxu0 0.0
  %3833 = vmatprep.subr.mxu0 0.0
  %3834 = vmatpush1.msra.mxu0 0.0
  %3835 = vmatprep.subr.mxu0 0.0
  %3836 = vmatpush1.msra.mxu0 0.0
  %3837 = vmatprep.subr.mxu0 0.0
  %3838 = vmatpush1.msra.mxu0 0.0
  %3839 = vmatprep.subr.mxu0 0.0
  %3840 = vmatpush1.msra.mxu0 0.0
  %3841 = vmatprep.subr.mxu0 0.0
  %3842 = vmatpush1.msra.mxu0 0.0
  %3843 = vmatprep.subr.mxu0 0.0
  %3844 = vmatpush1.msra.mxu0 0.0
  %3845 = vmatprep.subr.mxu0 0.0
  %3846 = vmatpush1.msra.mxu0 0.0
  %3847 = vmatprep.subr.mxu0 0.0
  %3848 = vmatpush1.msra.mxu0 0.0
  %3849 = vmatprep.subr.mxu0 0.0
  %3850 = vmatpush1.msra.mxu0 0.0
  %3851 = vmatprep.subr.mxu0 0.0
  %3852 = vmatpush1.msra.mxu0 0.0
  %3853 = vmatprep.mubr.f32.mxu0 0.0
  %3854 = vmatmul.mubr.f32.gmra.mrb[0].mxu0 %v3784
  %v3855 = vpop.f32.mrb[0].mxu0
  %v3856 = vadd.f32 %v3781, %v3855
  %v3857 = vpop.f32.mrb[0].mxu0
  %3858 = vmatprep.mubr.f32.mxu0 0.0
  %3859 = vmatmul.mubr.f32.gmra.mrb[0].mxu0 %v3787
  %v3860 = vpop.f32.mrb[0].mxu0
  %v3861 = vadd.f32 %v3781, %v3860
  %v3862 = vpop.f32.mrb[0].mxu0
  %3863 = vdwg.mxu0
  %3864 = vst [vmem:[%s17] sm:$0xff] %v3856
  %3865 = vst [vmem:[%s17 + $0x8] sm:$0x1f] %v3861
  // Predicated region
  $region70: #{esrnn_forward.1} parent=0 // pred_check
    _
  $region71: #{esrnn_forward.1} parent=0 // pred_check_branch
    %3867 = sbr.rel (0) target = $region73
  $region72: #{esrnn_forward.1} parent=0 // pred_region
    _
  $region73: #{esrnn_forward.1} parent=0 // pred_fallthru
    _
  // Predicated region
  $region74: #{esrnn_forward.1} parent=0 // pred_check
    _
  $region75: #{esrnn_forward.1} parent=0 // pred_check_branch
    %3869 = sbr.rel (0) target = $region77
  $region76: #{esrnn_forward.1} parent=0 // pred_region
    _
  $region77: #{esrnn_forward.1} parent=0 // pred_fallthru
    _

</llo_original>
